<compile_context>
chip_gen: v5e
topology: v5e:2x2
jax: 0.10.0
libtpu: 0.0.40
codegen_flags: <defaults>
</compile_context>

<pallas_src>
import functools

import numpy as np
import jax
import jax.numpy as jnp
from jax.experimental import pallas as pl
from jax.experimental.pallas import tpu as pltpu


# ----------------------------- helpers --------------------------------------

def _round_up(n, m):
    return ((n + m - 1) // m) * m


def _pick_tn(np_, cap=512):
    """Largest multiple-of-128 divisor of the 128-aligned cout dim, <= cap."""
    best = 128
    for t in range(128, min(np_, cap) + 1, 128):
        if np_ % t == 0:
            best = t
    return best


# ----------------------------- Pallas kernels -------------------------------

def _direct_conv_kernel(x_ref, w_ref, b_ref, o_ref, *, kh, kw, oh, ow, n):
    """Direct (im2col-free) stride-1 conv: taps unrolled inside the kernel.

    x_ref: (N, Hp, Wp, C)   bf16 spatially-padded activation (whole array)
    w_ref: (kh*kw, C, tn)   bf16 weight tile for the current cout tile
    b_ref: (1, tn)          f32 folded-BN bias
    o_ref: (N*OH*OW, tn)    bf16 output tile
    """
    c = x_ref.shape[3]
    m = n * oh * ow
    xv = x_ref[...]
    acc = None
    for t in range(kh * kw):
        i, j = divmod(t, kw)
        patch = xv[:, i:i + oh, j:j + ow, :].reshape(m, c)
        part = jnp.dot(patch, w_ref[t], preferred_element_type=jnp.float32)
        acc = part if acc is None else acc + part
    o_ref[...] = jnp.maximum(acc + b_ref[...], 0.0).astype(o_ref.dtype)


@functools.partial(jax.jit, static_argnames=("kh", "kw", "oh", "ow", "tn"))
def _direct_conv(x, w, b, kh, kw, oh, ow, tn):
    n, hp, wp, c = x.shape
    taps, _, np_ = w.shape
    m = n * oh * ow
    kernel = functools.partial(_direct_conv_kernel, kh=kh, kw=kw, oh=oh, ow=ow, n=n)
    return pl.pallas_call(
        kernel,
        out_shape=jax.ShapeDtypeStruct((m, np_), jnp.bfloat16),
        grid_spec=pltpu.PrefetchScalarGridSpec(
            num_scalar_prefetch=0,
            grid=(np_ // tn,),
            in_specs=[
                # whole padded activation; block index is grid-invariant ->
                # DMA'd into VMEM once and kept resident across cout tiles.
                pl.BlockSpec((n, hp, wp, c), lambda j: (0, 0, 0, 0)),
                pl.BlockSpec((taps, c, tn), lambda j: (0, 0, j)),
                pl.BlockSpec((1, tn), lambda j: (0, j)),
            ],
            out_specs=pl.BlockSpec((m, tn), lambda j: (0, j)),
        ),
        compiler_params=pltpu.CompilerParams(
            dimension_semantics=("parallel",)),
    )(x, w, b)


def _mm_bias_relu_kernel(x_ref, w_ref, b_ref, o_ref):
    o_ref[...] = jnp.maximum(
        jnp.dot(x_ref[...], w_ref[...], preferred_element_type=jnp.float32)
        + b_ref[...], 0.0).astype(o_ref.dtype)


@functools.partial(jax.jit, static_argnames=("tn",))
def _mm_bias_relu(x, w, b, tn):
    """relu(x @ w + b); x:(M,K) bf16 unpadded, w:(K,Np) bf16, b:(1,Np) f32."""
    m, k = x.shape
    _, np_ = w.shape
    return pl.pallas_call(
        _mm_bias_relu_kernel,
        out_shape=jax.ShapeDtypeStruct((m, np_), jnp.bfloat16),
        grid_spec=pltpu.PrefetchScalarGridSpec(
            num_scalar_prefetch=0,
            grid=(np_ // tn,),
            in_specs=[
                pl.BlockSpec((m, k), lambda j: (0, 0)),
                pl.BlockSpec((k, tn), lambda j: (0, j)),
                pl.BlockSpec((1, tn), lambda j: (0, j)),
            ],
            out_specs=pl.BlockSpec((m, tn), lambda j: (0, j)),
        ),
        compiler_params=pltpu.CompilerParams(
            dimension_semantics=("parallel",)),
    )(x, w, b)


def _pool_kernel(x_ref, o_ref, *, k, oh, ow, op, scale):
    """Halo-style stride-1 k x k pooling on the padded activation in VMEM."""
    xv = x_ref[...]
    acc = None
    for t in range(k * k):
        i, j = divmod(t, k)
        win = xv[:, i:i + oh, j:j + ow, :]
        if op == "max":
            acc = win if acc is None else jnp.maximum(acc, win)
        else:
            w32 = win.astype(jnp.float32)
            acc = w32 if acc is None else acc + w32
    if op == "avg":
        acc = acc * scale
    o_ref[...] = acc.astype(o_ref.dtype)


@functools.partial(jax.jit, static_argnames=("k", "oh", "ow", "op", "scale"))
def _pool_direct(x, k, oh, ow, op, scale):
    n, hp, wp, c = x.shape
    kernel = functools.partial(_pool_kernel, k=k, oh=oh, ow=ow, op=op, scale=scale)
    return pl.pallas_call(
        kernel,
        out_shape=jax.ShapeDtypeStruct((n, oh, ow, c), x.dtype),
        grid_spec=pltpu.PrefetchScalarGridSpec(
            num_scalar_prefetch=0,
            grid=(1,),
            in_specs=[pl.BlockSpec((n, hp, wp, c), lambda i: (0, 0, 0, 0))],
            out_specs=pl.BlockSpec((n, oh, ow, c), lambda i: (0, 0, 0, 0)),
        ),
    )(x)


def _stack_reduce_kernel(x_ref, o_ref, *, op, scale):
    v = x_ref[...]
    if op == "max":
        o_ref[...] = jnp.max(v, axis=0).astype(o_ref.dtype)
    else:
        o_ref[...] = (jnp.sum(v.astype(jnp.float32), axis=0) * scale
                      ).astype(o_ref.dtype)


@functools.partial(jax.jit, static_argnames=("op", "scale"))
def _stack_reduce(x, op, scale):
    """(R, M, C) stacked windows -> (M, C); only used by the 4 tiny s2 pools."""
    r, m, c = x.shape
    kernel = functools.partial(_stack_reduce_kernel, op=op, scale=scale)
    return pl.pallas_call(
        kernel,
        out_shape=jax.ShapeDtypeStruct((m, c), x.dtype),
        grid_spec=pltpu.PrefetchScalarGridSpec(
            num_scalar_prefetch=0,
            grid=(1,),
            in_specs=[pl.BlockSpec((r, m, c), lambda i: (0, 0, 0))],
            out_specs=pl.BlockSpec((m, c), lambda i: (0, 0)),
        ),
    )(x)


# ----------------------------- conv / pool glue ------------------------------

def _im2col(x, kh, kw, stride, ph, pw):
    n, h, w_, c = x.shape
    if ph or pw:
        x = jnp.pad(x, ((0, 0), (ph, ph), (pw, pw), (0, 0)))
    hp, wp = h + 2 * ph, w_ + 2 * pw
    oh = (hp - kh) // stride + 1
    ow = (wp - kw) // stride + 1
    cols = [x[:, i:i + stride * oh:stride, j:j + stride * ow:stride, :]
            for i in range(kh) for j in range(kw)]
    patches = jnp.concatenate(cols, axis=-1).reshape(n * oh * ow, kh * kw * c)
    return patches, oh, ow


def basic_conv(x, p, stride=1, pad=(0, 0)):
    """BasicConv2d = Conv2d(bias=False) + BatchNorm2d(eps=1e-3, eval) + ReLU."""
    kh, kw, cout = p["kh"], p["kw"], p["cout"]
    n, h, w_, _ = x.shape
    ph, pw = pad
    oh = (h + 2 * ph - kh) // stride + 1
    ow = (w_ + 2 * pw - kw) // stride + 1
    if stride == 1:
        if ph or pw:
            x = jnp.pad(x, ((0, 0), (ph, ph), (pw, pw), (0, 0)))
        tn = _pick_tn(p["w"].shape[-1])
        y = _direct_conv(x, p["w"], p["b"], kh, kw, oh, ow, tn)
    else:
        # TODO(synk): the 5 stride-2 convs still build a (tiny) im2col patch
        # matrix; in-kernel phase-strided reads would remove that too.
        patches, oh, ow = _im2col(x, kh, kw, stride, ph, pw)
        taps, c, np_ = p["w"].shape
        tn = _pick_tn(np_)
        y = _mm_bias_relu(patches, p["w"].reshape(taps * c, np_), p["b"], tn)
    return y[:, :cout].reshape(n, oh, ow, cout)


def fused_conv1x1(x, p):
    """Several 1x1 BasicConv2d branches on the same input, fused along cout.
    Each branch sits at a 128-aligned column offset -> lane-aligned slices."""
    n, h, w_, _ = x.shape
    tn = _pick_tn(p["w"].shape[-1])
    y = _direct_conv(x, p["w"], p["b"], 1, 1, h, w_, tn)
    return [y[:, off:off + co].reshape(n, h, w_, co) for off, co in p["splits"]]


def pool2d(x, ksize, stride, pad, op):
    n, h, w_, c = x.shape
    oh = (h + 2 * pad - ksize) // stride + 1
    ow = (w_ + 2 * pad - ksize) // stride + 1
    if pad:
        x = jnp.pad(x, ((0, 0), (pad, pad), (pad, pad), (0, 0)))
    if stride == 1:
        # F.avg_pool2d default count_include_pad=True -> always divide by k*k.
        return _pool_direct(x, ksize, oh, ow, op, 1.0 / (ksize * ksize))
    # stride-2 fallback (only the 4 small max pools): stacked shifted windows.
    wins = [x[:, i:i + stride * oh:stride, j:j + stride * ow:stride, :]
            .reshape(n * oh * ow, c)
            for i in range(ksize) for j in range(ksize)]
    out = _stack_reduce(jnp.stack(wins, axis=0), op, 1.0 / (ksize * ksize))
    return out.reshape(n, oh, ow, c)


def global_avg_pool(x):
    """AdaptiveAvgPool2d((1,1)) -> (N, C) f32."""
    n, h, w_, c = x.shape
    if h * w_ == 1:                 # identity at this input size; no padded reduce
        return x.reshape(n, c).astype(jnp.float32)
    # TODO(synk): for larger inputs lower this tiny reduce into a Pallas kernel.
    return jnp.mean(x.astype(jnp.float32), axis=(1, 2))


# ----------------------------- parameters ------------------------------------

def _prepare(w, b, kh, kw, cout):
    """(kh*kw*cin, cout) folded weight -> (kh*kw, cin, Np) bf16; bias (1,Np) f32."""
    k_, nout = w.shape
    cin = k_ // (kh * kw)
    np_ = _round_up(nout, 128)
    wp = jnp.pad(w, ((0, 0), (0, np_ - nout))).reshape(kh * kw, cin, np_)
    bp = jnp.pad(b.reshape(1, -1), ((0, 0), (0, np_ - nout)))
    return dict(w=wp.astype(jnp.bfloat16), b=bp.astype(jnp.float32),
                kh=kh, kw=kw, cout=int(cout))


class ParamGen:
    def __init__(self, seed=0):
        self.key = jax.random.PRNGKey(seed)
        self.count = 0

    def _raw_conv_bn(self, cin, cout, kh, kw):
        k = jax.random.fold_in(self.key, self.count)
        self.count += 1
        k1, k2, k3, k4, k5 = jax.random.split(k, 5)
        fan_in = cin * kh * kw
        w = jax.random.normal(k1, (kh, kw, cin, cout), jnp.float32) * np.sqrt(2.0 / fan_in)
        gamma = 1.0 + 0.1 * jax.random.normal(k2, (cout,), jnp.float32)
        beta = 0.1 * jax.random.normal(k3, (cout,), jnp.float32)
        mean = 0.1 * jax.random.normal(k4, (cout,), jnp.float32)
        var = 1.0 + 0.5 * jax.random.uniform(k5, (cout,), jnp.float32)
        scale = gamma / jnp.sqrt(var + 1e-3)              # BN eps = 0.001 (eval)
        w_folded = (w * scale).reshape(kh * kw * cin, cout)
        b_folded = beta - mean * scale
        return w_folded, b_folded

    def conv_bn(self, cin, cout, kh, kw):
        w, b = self._raw_conv_bn(cin, cout, kh, kw)
        return _prepare(w, b, kh, kw, cout)

    def fused_1x1(self, cin, couts):
        """Sibling 1x1 convs fused along cout; each branch padded to a
        128-aligned column offset so the output slices are lane-aligned."""
        ws, bs, splits, off = [], [], [], 0
        for co in couts:
            w, b = self._raw_conv_bn(cin, co, 1, 1)
            co_p = _round_up(co, 128)
            ws.append(jnp.pad(w, ((0, 0), (0, co_p - co))))
            bs.append(jnp.pad(b, (0, co_p - co)))
            splits.append((off, int(co)))
            off += co_p
        w = jnp.concatenate(ws, axis=1).reshape(1, cin, off).astype(jnp.bfloat16)
        b = jnp.concatenate(bs, axis=0).reshape(1, -1).astype(jnp.float32)
        return dict(w=w, b=b, kh=1, kw=1, cout=off, splits=tuple(splits))


def make_inception_a(g, cin, pool_features):
    return dict(
        fused=g.fused_1x1(cin, (64, 48, 64)),          # b1x1, b5_1, d1
        b5_2=g.conv_bn(48, 64, 5, 5),
        d2=g.conv_bn(64, 96, 3, 3), d3=g.conv_bn(96, 96, 3, 3),
        bpool=g.conv_bn(cin, pool_features, 1, 1))


def make_inception_b(g, cin):
    return dict(
        b3=g.conv_bn(cin, 384, 3, 3),
        d1=g.conv_bn(cin, 64, 1, 1), d2=g.conv_bn(64, 96, 3, 3),
        d3=g.conv_bn(96, 96, 3, 3))


def make_inception_c(g, cin, c7):
    return dict(
        fused=g.fused_1x1(cin, (192, c7, c7)),         # b1, b7_1, d1
        b7_2=g.conv_bn(c7, c7, 1, 7), b7_3=g.conv_bn(c7, 192, 7, 1),
        d2=g.conv_bn(c7, c7, 7, 1), d3=g.conv_bn(c7, c7, 1, 7),
        d4=g.conv_bn(c7, c7, 7, 1), d5=g.conv_bn(c7, 192, 1, 7),
        bpool=g.conv_bn(cin, 192, 1, 1))


def make_inception_d(g, cin):
    return dict(
        fused=g.fused_1x1(cin, (192, 192)),            # b3_1, b7_1
        b3_2=g.conv_bn(192, 320, 3, 3),
        b7_2=g.conv_bn(192, 192, 1, 7),
        b7_3=g.conv_bn(192, 192, 7, 1), b7_4=g.conv_bn(192, 192, 3, 3))


def make_inception_e(g, cin):
    return dict(
        fused=g.fused_1x1(cin, (320, 384, 448)),       # b1, b3_1, d1
        b3_2a=g.conv_bn(384, 384, 1, 3), b3_2b=g.conv_bn(384, 384, 3, 1),
        d2=g.conv_bn(448, 384, 3, 3),
        d3a=g.conv_bn(384, 384, 1, 3), d3b=g.conv_bn(384, 384, 3, 1),
        bpool=g.conv_bn(cin, 192, 1, 1))


def make_params(seed=0):
    g = ParamGen(seed)
    return dict(
        c1a=g.conv_bn(3, 32, 3, 3), c2a=g.conv_bn(32, 32, 3, 3),
        c2b=g.conv_bn(32, 64, 3, 3),
        c3b=g.conv_bn(64, 80, 1, 1), c4a=g.conv_bn(80, 192, 3, 3),
        m5b=make_inception_a(g, 192, 32), m5c=make_inception_a(g, 256, 64),
        m5d=make_inception_a(g, 288, 64),
        m6a=make_inception_b(g, 288),
        m6b=make_inception_c(g, 768, 128), m6c=make_inception_c(g, 768, 160),
        m6d=make_inception_c(g, 768, 160), m6e=make_inception_c(g, 768, 192),
        m7a=make_inception_d(g, 768),
        m7b=make_inception_e(g, 1280), m7c=make_inception_e(g, 2048))


# ----------------------------- inception blocks ------------------------------

def inception_a(x, p):
    b1, b5, d = fused_conv1x1(x, p["fused"])
    b5 = basic_conv(b5, p["b5_2"], pad=(2, 2))
    d = basic_conv(d, p["d2"], pad=(1, 1))
    d = basic_conv(d, p["d3"], pad=(1, 1))
    bp = basic_conv(pool2d(x, 3, 1, 1, "avg"), p["bpool"])
    return jnp.concatenate([b1, b5, d, bp], axis=-1)


def inception_b(x, p):
    b3 = basic_conv(x, p["b3"], stride=2)
    d = basic_conv(x, p["d1"])
    d = basic_conv(d, p["d2"], pad=(1, 1))
    d = basic_conv(d, p["d3"], stride=2)
    bp = pool2d(x, 3, 2, 0, "max")
    return jnp.concatenate([b3, d, bp], axis=-1)


def inception_c(x, p):
    b1, b7, d = fused_conv1x1(x, p["fused"])
    b7 = basic_conv(b7, p["b7_2"], pad=(0, 3))
    b7 = basic_conv(b7, p["b7_3"], pad=(3, 0))
    d = basic_conv(d, p["d2"], pad=(3, 0))
    d = basic_conv(d, p["d3"], pad=(0, 3))
    d = basic_conv(d, p["d4"], pad=(3, 0))
    d = basic_conv(d, p["d5"], pad=(0, 3))
    bp = basic_conv(pool2d(x, 3, 1, 1, "avg"), p["bpool"])
    return jnp.concatenate([b1, b7, d, bp], axis=-1)


def inception_d(x, p):
    b3, b7 = fused_conv1x1(x, p["fused"])
    b3 = basic_conv(b3, p["b3_2"], stride=2)
    b7 = basic_conv(b7, p["b7_2"], pad=(0, 3))
    b7 = basic_conv(b7, p["b7_3"], pad=(3, 0))
    b7 = basic_conv(b7, p["b7_4"], stride=2)
    bp = pool2d(x, 3, 2, 0, "max")
    return jnp.concatenate([b3, b7, bp], axis=-1)


def inception_e(x, p):
    b1, b3, d = fused_conv1x1(x, p["fused"])
    b3 = jnp.concatenate([basic_conv(b3, p["b3_2a"], pad=(0, 1)),
                          basic_conv(b3, p["b3_2b"], pad=(1, 0))], axis=-1)
    d = basic_conv(d, p["d2"], pad=(1, 1))
    d = jnp.concatenate([basic_conv(d, p["d3a"], pad=(0, 1)),
                         basic_conv(d, p["d3b"], pad=(1, 0))], axis=-1)
    bp = basic_conv(pool2d(x, 3, 1, 1, "avg"), p["bpool"])
    return jnp.concatenate([b1, b3, d, bp], axis=-1)


# ----------------------------- full forward ----------------------------------

def inception_v3_fe_forward(params, x_nchw):
    """Inceptionv3Fe.forward: all inception_v3 children except the final fc.
    Input NCHW f32, output (N, 2048, 1, 1) f32 (eval-mode BN / dropout)."""
    x = jnp.transpose(x_nchw, (0, 2, 3, 1)).astype(jnp.bfloat16)  # NCHW -> NHWC
    x = basic_conv(x, params["c1a"], stride=2)                    # Conv2d_1a_3x3
    x = basic_conv(x, params["c2a"])                              # Conv2d_2a_3x3
    x = basic_conv(x, params["c2b"], pad=(1, 1))                  # Conv2d_2b_3x3
    x = pool2d(x, 3, 2, 0, "max")                                 # maxpool1
    x = basic_conv(x, params["c3b"])                              # Conv2d_3b_1x1
    x = basic_conv(x, params["c4a"])                              # Conv2d_4a_3x3
    x = pool2d(x, 3, 2, 0, "max")                                 # maxpool2
    x = inception_a(x, params["m5b"])
    x = inception_a(x, params["m5c"])
    x = inception_a(x, params["m5d"])
    x = inception_b(x, params["m6a"])
    x = inception_c(x, params["m6b"])
    x = inception_c(x, params["m6c"])
    x = inception_c(x, params["m6d"])
    x = inception_c(x, params["m6e"])
    x = inception_d(x, params["m7a"])
    x = inception_e(x, params["m7b"])
    x = inception_e(x, params["m7c"])
    feat = global_avg_pool(x)                                     # AdaptiveAvgPool2d(1)
    # TODO(synk): nn.Dropout is identity in eval mode; train-mode masking not implemented.
    return feat[:, :, None, None]                                 # (N, 2048, 1, 1)


if __name__ == "__main__":
    key = jax.random.PRNGKey(0)
    # 75x75 is the smallest spatial size inception_v3's stride-2 stages support.
    x = jax.random.normal(key, (2, 3, 75, 75), jnp.float32)
    params = make_params(seed=0)
    out = inception_v3_fe_forward(params, x)
    out = jax.block_until_ready(out)
    assert out.shape == (2, 2048, 1, 1), out.shape
    assert bool(jnp.all(jnp.isfinite(out)))
    print("KERNEL_OK")
</pallas_src>

<mosaic_0001>
module attributes {stable_mosaic.version = 11 : i64} {
  func.func @_mm_bias_relu_kernel(%arg0: i32, %arg1: memref<2738x27xbf16, #tpu.memory_space<vmem>>, %arg2: memref<27x128xbf16, #tpu.memory_space<vmem>>, %arg3: memref<1x128xf32, #tpu.memory_space<vmem>>, %arg4: memref<2738x128xbf16, #tpu.memory_space<vmem>>) attributes {dimension_semantics = [#tpu.dimension_semantics<parallel>], iteration_bounds = array<i64: 1>, scalar_prefetch = 0 : i64, scratch_operands = 0 : i64, tpu.core_type = #tpu.core_type<tc>, window_params = [{pipeline_mode = #tpu.pipeline_mode<synchronous>, transform_indices = @transform_0, window_bounds = array<i64: 2738, 27>}, {transform_indices = @transform_1, window_bounds = array<i64: 27, 128>}, {transform_indices = @transform_2, window_bounds = array<i64: 1, 128>}, {transform_indices = @transform_3, window_bounds = array<i64: 2738, 128>}]} {
    %c0 = arith.constant 0 : index
    %c0_0 = arith.constant 0 : index
    %0 = vector.load %arg1[%c0, %c0_0] : memref<2738x27xbf16, #tpu.memory_space<vmem>>, vector<2738x27xbf16>
    %c0_1 = arith.constant 0 : index
    %c0_2 = arith.constant 0 : index
    %1 = vector.load %arg2[%c0_1, %c0_2] : memref<27x128xbf16, #tpu.memory_space<vmem>>, vector<27x128xbf16>
    %cst = arith.constant dense<0.000000e+00> : vector<2738x128xf32>
    %2 = tpu.matmul %0, %1, %cst {dimension_numbers = #tpu.dot_dimension_numbers<[1], [0], [0], [1], [0, 0, 1, 1], [], []>} : vector<2738x27xbf16>, vector<27x128xbf16>, vector<2738x128xf32> -> vector<2738x128xf32>
    %c0_3 = arith.constant 0 : index
    %c0_4 = arith.constant 0 : index
    %3 = vector.load %arg3[%c0_3, %c0_4] : memref<1x128xf32, #tpu.memory_space<vmem>>, vector<1x128xf32>
    %4 = vector.broadcast %3 : vector<1x128xf32> to vector<2738x128xf32>
    %5 = arith.addf %2, %4 : vector<2738x128xf32>
    %cst_5 = arith.constant 0.000000e+00 : f32
    %6 = vector.broadcast %cst_5 : f32 to vector<2738x128xf32>
    %7 = arith.maximumf %5, %6 : vector<2738x128xf32>
    %8 = arith.truncf %7 : vector<2738x128xf32> to vector<2738x128xbf16>
    %c0_6 = arith.constant 0 : index
    %c0_7 = arith.constant 0 : index
    %9 = vector.load %arg4[%c0_6, %c0_7] : memref<2738x128xbf16, #tpu.memory_space<vmem>>, vector<2738x128xbf16>
    tpu.vector_store %arg4[%c0_6, %c0_7], %8 {strides = array<i32>} : memref<2738x128xbf16, #tpu.memory_space<vmem>>, vector<2738x128xbf16>,
    return
  }
  func.func @transform_0(%arg0: i32) -> (i32, i32) {
    %c0_i32 = arith.constant 0 : i32
    %c0_i32_0 = arith.constant 0 : i32
    %c0_i32_1 = arith.constant 0 : i32
    return %c0_i32, %c0_i32_0 : i32, i32
  }
  func.func @transform_1(%arg0: i32) -> (i32, i32) {
    %c0_i32 = arith.constant 0 : i32
    %c0_i32_0 = arith.constant 0 : i32
    return %c0_i32, %arg0 : i32, i32
  }
  func.func @transform_2(%arg0: i32) -> (i32, i32) {
    %c0_i32 = arith.constant 0 : i32
    %c0_i32_0 = arith.constant 0 : i32
    return %c0_i32, %arg0 : i32, i32
  }
  func.func @transform_3(%arg0: i32) -> (i32, i32) {
    %c0_i32 = arith.constant 0 : i32
    %c0_i32_0 = arith.constant 0 : i32
    return %c0_i32, %arg0 : i32, i32
  }
}

</mosaic_0001>

<llo_original>
// kernel: _mm_bias_relu.1
$region0: #{_mm_bias_relu.1}
  #allocation0 [shape = 'u32[]', space=smem, size = 0x4, offset = 0x4, fixed_abs, tag = 'smem constant byte address 0x4 - core index']
  #allocation1 [shape = 'u32[72,128]{1,0:T(1,128)}', space=vmem, size = 0x9000, scoped, tag = 'internal scratch']
  %s0 = inlined_call_operand.vmem [shape: bf16[2738,27], index: 0, kind: input, shape index: {}]
  %s1 = inlined_call_operand.vmem [shape: bf16[27,128], index: 1, kind: input, shape index: {}]
  %s2 = inlined_call_operand.vmem [shape: f32[1,128], index: 2, kind: input, shape index: {}]
  %s3 = inlined_call_operand.hbm [shape: bf16[2738,128], index: 3, kind: output, shape index: {}]
  %s4 = sld [smem:[#allocation0]]
  $region22: #{_mm_bias_relu.1} parent=0
    _
  %s6 = ssub.s32 1, %s4
  %s7 = scalar_select 0, %s6, %s4
  $region1: #{_mm_bias_relu.1} parent=0
    #allocation2 [shape = 'u8[702464]{0}', space=vmem, size = 0xab800, scoped, tag = 'output window, operand 0, single buffered']
    #allocation3 [shape = 's32[1]{0}', space=sflag, size = 0x4, scoped, tag = 'scoped memory for _mm_bias_relu.1']
    %8 = vsyncpa [#allocation3], 0
    // Predicated region
    $region2: #{_mm_bias_relu.1} parent=1 // pred_check
      _
    $region3: #{_mm_bias_relu.1} parent=1 // pred_check_branch
      %10 = sbr.rel (0) target = $region5
    $region4: #{_mm_bias_relu.1} parent=1 // pred_region
      _
    $region5: #{_mm_bias_relu.1} parent=1 // pred_fallthru
      _
    // Predicated region
    $region6: #{_mm_bias_relu.1} parent=1 // pred_check
      _
    $region7: #{_mm_bias_relu.1} parent=1 // pred_check_branch
      %12 = sbr.rel (0) target = $region9
    $region8: #{_mm_bias_relu.1} parent=1 // pred_region
      _
    $region9: #{_mm_bias_relu.1} parent=1 // pred_fallthru
      _
    // Predicated region
    $region10: #{_mm_bias_relu.1} parent=1 // pred_check
      _
    $region11: #{_mm_bias_relu.1} parent=1 // pred_check_branch
      %14 = sbr.rel (0) target = $region13
    $region12: #{_mm_bias_relu.1} parent=1 // pred_region
      _
    $region13: #{_mm_bias_relu.1} parent=1 // pred_fallthru
      _
    %v16 = vld [vmem:[%s0] sm:$0xf]
    %v17 = vld [vmem:[%s0 + $0x4] sm:$0xf]
    %v18 = vld [vmem:[%s0 + $0x8] sm:$0xf]
    %v19 = vld [vmem:[%s0 + $0xc] sm:$0xf]
    %v20 = vld [vmem:[%s0 + $0x10] sm:$0xf]
    %v21 = vld [vmem:[%s0 + $0x14] sm:$0xf]
    %v22 = vld [vmem:[%s0 + $0x18] sm:$0xf]
    %v23 = vld [vmem:[%s0 + $0x1c] sm:$0xf]
    %v24 = vld [vmem:[%s0 + $0x20] sm:$0xf]
    %v25 = vld [vmem:[%s0 + $0x24] sm:$0xf]
    %v26 = vld [vmem:[%s0 + $0x28] sm:$0xf]
    %v27 = vld [vmem:[%s0 + $0x2c] sm:$0xf]
    %v28 = vld [vmem:[%s0 + $0x30] sm:$0xf]
    %v29 = vld [vmem:[%s0 + $0x34] sm:$0xf]
    %v30 = vld [vmem:[%s0 + $0x38] sm:$0xf]
    %v31 = vld [vmem:[%s0 + $0x3c] sm:$0xf]
    %v32 = vld [vmem:[%s0 + $0x40] sm:$0xf]
    %v33 = vld [vmem:[%s0 + $0x44] sm:$0xf]
    %v34 = vld [vmem:[%s0 + $0x48] sm:$0xf]
    %v35 = vld [vmem:[%s0 + $0x4c] sm:$0xf]
    %v36 = vld [vmem:[%s0 + $0x50] sm:$0xf]
    %v37 = vld [vmem:[%s0 + $0x54] sm:$0xf]
    %v38 = vld [vmem:[%s0 + $0x58] sm:$0xf]
    %v39 = vld [vmem:[%s0 + $0x5c] sm:$0xf]
    %v40 = vld [vmem:[%s0 + $0x60] sm:$0xf]
    %v41 = vld [vmem:[%s0 + $0x64] sm:$0xf]
    %v42 = vld [vmem:[%s0 + $0x68] sm:$0xf]
    %v43 = vld [vmem:[%s0 + $0x6c] sm:$0xf]
    %v44 = vld [vmem:[%s0 + $0x70] sm:$0xf]
    %v45 = vld [vmem:[%s0 + $0x74] sm:$0xf]
    %v46 = vld [vmem:[%s0 + $0x78] sm:$0xf]
    %v47 = vld [vmem:[%s0 + $0x7c] sm:$0xf]
    %v48 = vld [vmem:[%s0 + $0x80] sm:$0xf]
    %v49 = vld [vmem:[%s0 + $0x84] sm:$0xf]
    %v50 = vld [vmem:[%s0 + $0x88] sm:$0xf]
    %v51 = vld [vmem:[%s0 + $0x8c] sm:$0xf]
    %v52 = vld [vmem:[%s0 + $0x90] sm:$0xf]
    %v53 = vld [vmem:[%s0 + $0x94] sm:$0xf]
    %v54 = vld [vmem:[%s0 + $0x98] sm:$0xf]
    %v55 = vld [vmem:[%s0 + $0x9c] sm:$0xf]
    %v56 = vld [vmem:[%s0 + $0xa0] sm:$0xf]
    %v57 = vld [vmem:[%s0 + $0xa4] sm:$0xf]
    %v58 = vld [vmem:[%s0 + $0xa8] sm:$0xf]
    %v59 = vld [vmem:[%s0 + $0xac] sm:$0xf]
    %v60 = vld [vmem:[%s0 + $0xb0] sm:$0xf]
    %v61 = vld [vmem:[%s0 + $0xb4] sm:$0xf]
    %v62 = vld [vmem:[%s0 + $0xb8] sm:$0xf]
    %v63 = vld [vmem:[%s0 + $0xbc] sm:$0xf]
    %v64 = vld [vmem:[%s0 + $0xc0] sm:$0xf]
    %v65 = vld [vmem:[%s0 + $0xc4] sm:$0xf]
    %v66 = vld [vmem:[%s0 + $0xc8] sm:$0xf]
    %v67 = vld [vmem:[%s0 + $0xcc] sm:$0xf]
    %v68 = vld [vmem:[%s0 + $0xd0] sm:$0xf]
    %v69 = vld [vmem:[%s0 + $0xd4] sm:$0xf]
    %v70 = vld [vmem:[%s0 + $0xd8] sm:$0xf]
    %v71 = vld [vmem:[%s0 + $0xdc] sm:$0xf]
    %v72 = vld [vmem:[%s0 + $0xe0] sm:$0xf]
    %v73 = vld [vmem:[%s0 + $0xe4] sm:$0xf]
    %v74 = vld [vmem:[%s0 + $0xe8] sm:$0xf]
    %v75 = vld [vmem:[%s0 + $0xec] sm:$0xf]
    %v76 = vld [vmem:[%s0 + $0xf0] sm:$0xf]
    %v77 = vld [vmem:[%s0 + $0xf4] sm:$0xf]
    %v78 = vld [vmem:[%s0 + $0xf8] sm:$0xf]
    %v79 = vld [vmem:[%s0 + $0xfc] sm:$0xf]
    %v80 = vld [vmem:[%s0 + $0x100] sm:$0xf]
    %v81 = vld [vmem:[%s0 + $0x104] sm:$0xf]
    %v82 = vld [vmem:[%s0 + $0x108] sm:$0xf]
    %v83 = vld [vmem:[%s0 + $0x10c] sm:$0xf]
    %v84 = vld [vmem:[%s0 + $0x110] sm:$0xf]
    %v85 = vld [vmem:[%s0 + $0x114] sm:$0xf]
    %v86 = vld [vmem:[%s0 + $0x118] sm:$0xf]
    %v87 = vld [vmem:[%s0 + $0x11c] sm:$0xf]
    %v88 = vld [vmem:[%s0 + $0x120] sm:$0xf]
    %v89 = vld [vmem:[%s0 + $0x124] sm:$0xf]
    %v90 = vld [vmem:[%s0 + $0x128] sm:$0xf]
    %v91 = vld [vmem:[%s0 + $0x12c] sm:$0xf]
    %v92 = vld [vmem:[%s0 + $0x130] sm:$0xf]
    %v93 = vld [vmem:[%s0 + $0x134] sm:$0xf]
    %v94 = vld [vmem:[%s0 + $0x138] sm:$0xf]
    %v95 = vld [vmem:[%s0 + $0x13c] sm:$0xf]
    %v96 = vld [vmem:[%s0 + $0x140] sm:$0xf]
    %v97 = vld [vmem:[%s0 + $0x144] sm:$0xf]
    %v98 = vld [vmem:[%s0 + $0x148] sm:$0xf]
    %v99 = vld [vmem:[%s0 + $0x14c] sm:$0xf]
    %v100 = vld [vmem:[%s0 + $0x150] sm:$0xf]
    %v101 = vld [vmem:[%s0 + $0x154] sm:$0xf]
    %v102 = vld [vmem:[%s0 + $0x158] sm:$0xf]
    %v103 = vld [vmem:[%s0 + $0x15c] sm:$0xf]
    %v104 = vld [vmem:[%s0 + $0x160] sm:$0xf]
    %v105 = vld [vmem:[%s0 + $0x164] sm:$0xf]
    %v106 = vld [vmem:[%s0 + $0x168] sm:$0xf]
    %v107 = vld [vmem:[%s0 + $0x16c] sm:$0xf]
    %v108 = vld [vmem:[%s0 + $0x170] sm:$0xf]
    %v109 = vld [vmem:[%s0 + $0x174] sm:$0xf]
    %v110 = vld [vmem:[%s0 + $0x178] sm:$0xf]
    %v111 = vld [vmem:[%s0 + $0x17c] sm:$0xf]
    %v112 = vld [vmem:[%s0 + $0x180] sm:$0xf]
    %v113 = vld [vmem:[%s0 + $0x184] sm:$0xf]
    %v114 = vld [vmem:[%s0 + $0x188] sm:$0xf]
    %v115 = vld [vmem:[%s0 + $0x18c] sm:$0xf]
    %v116 = vld [vmem:[%s0 + $0x190] sm:$0xf]
    %v117 = vld [vmem:[%s0 + $0x194] sm:$0xf]
    %v118 = vld [vmem:[%s0 + $0x198] sm:$0xf]
    %v119 = vld [vmem:[%s0 + $0x19c] sm:$0xf]
    %v120 = vld [vmem:[%s0 + $0x1a0] sm:$0xf]
    %v121 = vld [vmem:[%s0 + $0x1a4] sm:$0xf]
    %v122 = vld [vmem:[%s0 + $0x1a8] sm:$0xf]
    %v123 = vld [vmem:[%s0 + $0x1ac] sm:$0xf]
    %v124 = vld [vmem:[%s0 + $0x1b0] sm:$0xf]
    %v125 = vld [vmem:[%s0 + $0x1b4] sm:$0xf]
    %v126 = vld [vmem:[%s0 + $0x1b8] sm:$0xf]
    %v127 = vld [vmem:[%s0 + $0x1bc] sm:$0xf]
    %v128 = vld [vmem:[%s0 + $0x1c0] sm:$0xf]
    %v129 = vld [vmem:[%s0 + $0x1c4] sm:$0xf]
    %v130 = vld [vmem:[%s0 + $0x1c8] sm:$0xf]
    %v131 = vld [vmem:[%s0 + $0x1cc] sm:$0xf]
    %v132 = vld [vmem:[%s0 + $0x1d0] sm:$0xf]
    %v133 = vld [vmem:[%s0 + $0x1d4] sm:$0xf]
    %v134 = vld [vmem:[%s0 + $0x1d8] sm:$0xf]
    %v135 = vld [vmem:[%s0 + $0x1dc] sm:$0xf]
    %v136 = vld [vmem:[%s0 + $0x1e0] sm:$0xf]
    %v137 = vld [vmem:[%s0 + $0x1e4] sm:$0xf]
    %v138 = vld [vmem:[%s0 + $0x1e8] sm:$0xf]
    %v139 = vld [vmem:[%s0 + $0x1ec] sm:$0xf]
    %v140 = vld [vmem:[%s0 + $0x1f0] sm:$0xf]
    %v141 = vld [vmem:[%s0 + $0x1f4] sm:$0xf]
    %v142 = vld [vmem:[%s0 + $0x1f8] sm:$0xf]
    %v143 = vld [vmem:[%s0 + $0x1fc] sm:$0xf]
    %v144 = vld [vmem:[%s0 + $0x200] sm:$0xf]
    %v145 = vld [vmem:[%s0 + $0x204] sm:$0xf]
    %v146 = vld [vmem:[%s0 + $0x208] sm:$0xf]
    %v147 = vld [vmem:[%s0 + $0x20c] sm:$0xf]
    %v148 = vld [vmem:[%s0 + $0x210] sm:$0xf]
    %v149 = vld [vmem:[%s0 + $0x214] sm:$0xf]
    %v150 = vld [vmem:[%s0 + $0x218] sm:$0xf]
    %v151 = vld [vmem:[%s0 + $0x21c] sm:$0xf]
    %v152 = vld [vmem:[%s0 + $0x220] sm:$0xf]
    %v153 = vld [vmem:[%s0 + $0x224] sm:$0xf]
    %v154 = vld [vmem:[%s0 + $0x228] sm:$0xf]
    %v155 = vld [vmem:[%s0 + $0x22c] sm:$0xf]
    %v156 = vld [vmem:[%s0 + $0x230] sm:$0xf]
    %v157 = vld [vmem:[%s0 + $0x234] sm:$0xf]
    %v158 = vld [vmem:[%s0 + $0x238] sm:$0xf]
    %v159 = vld [vmem:[%s0 + $0x23c] sm:$0xf]
    %v160 = vld [vmem:[%s0 + $0x240] sm:$0xf]
    %v161 = vld [vmem:[%s0 + $0x244] sm:$0xf]
    %v162 = vld [vmem:[%s0 + $0x248] sm:$0xf]
    %v163 = vld [vmem:[%s0 + $0x24c] sm:$0xf]
    %v164 = vld [vmem:[%s0 + $0x250] sm:$0xf]
    %v165 = vld [vmem:[%s0 + $0x254] sm:$0xf]
    %v166 = vld [vmem:[%s0 + $0x258] sm:$0xf]
    %v167 = vld [vmem:[%s0 + $0x25c] sm:$0xf]
    %v168 = vld [vmem:[%s0 + $0x260] sm:$0xf]
    %v169 = vld [vmem:[%s0 + $0x264] sm:$0xf]
    %v170 = vld [vmem:[%s0 + $0x268] sm:$0xf]
    %v171 = vld [vmem:[%s0 + $0x26c] sm:$0xf]
    %v172 = vld [vmem:[%s0 + $0x270] sm:$0xf]
    %v173 = vld [vmem:[%s0 + $0x274] sm:$0xf]
    %v174 = vld [vmem:[%s0 + $0x278] sm:$0xf]
    %v175 = vld [vmem:[%s0 + $0x27c] sm:$0xf]
    %v176 = vld [vmem:[%s0 + $0x280] sm:$0xf]
    %v177 = vld [vmem:[%s0 + $0x284] sm:$0xf]
    %v178 = vld [vmem:[%s0 + $0x288] sm:$0xf]
    %v179 = vld [vmem:[%s0 + $0x28c] sm:$0xf]
    %v180 = vld [vmem:[%s0 + $0x290] sm:$0xf]
    %v181 = vld [vmem:[%s0 + $0x294] sm:$0xf]
    %v182 = vld [vmem:[%s0 + $0x298] sm:$0xf]
    %v183 = vld [vmem:[%s0 + $0x29c] sm:$0xf]
    %v184 = vld [vmem:[%s0 + $0x2a0] sm:$0xf]
    %v185 = vld [vmem:[%s0 + $0x2a4] sm:$0xf]
    %v186 = vld [vmem:[%s0 + $0x2a8] sm:$0xf]
    %v187 = vld [vmem:[%s0 + $0x2ac] sm:$0xf]
    %v188 = vld [vmem:[%s0 + $0x2b0] sm:$0xf]
    %v189 = vld [vmem:[%s0 + $0x2b4] sm:$0xf]
    %v190 = vld [vmem:[%s0 + $0x2b8] sm:$0xf]
    %v191 = vld [vmem:[%s0 + $0x2bc] sm:$0xf]
    %v192 = vld [vmem:[%s0 + $0x2c0] sm:$0xf]
    %v193 = vld [vmem:[%s0 + $0x2c4] sm:$0xf]
    %v194 = vld [vmem:[%s0 + $0x2c8] sm:$0xf]
    %v195 = vld [vmem:[%s0 + $0x2cc] sm:$0xf]
    %v196 = vld [vmem:[%s0 + $0x2d0] sm:$0xf]
    %v197 = vld [vmem:[%s0 + $0x2d4] sm:$0xf]
    %v198 = vld [vmem:[%s0 + $0x2d8] sm:$0xf]
    %v199 = vld [vmem:[%s0 + $0x2dc] sm:$0xf]
    %v200 = vld [vmem:[%s0 + $0x2e0] sm:$0xf]
    %v201 = vld [vmem:[%s0 + $0x2e4] sm:$0xf]
    %v202 = vld [vmem:[%s0 + $0x2e8] sm:$0xf]
    %v203 = vld [vmem:[%s0 + $0x2ec] sm:$0xf]
    %v204 = vld [vmem:[%s0 + $0x2f0] sm:$0xf]
    %v205 = vld [vmem:[%s0 + $0x2f4] sm:$0xf]
    %v206 = vld [vmem:[%s0 + $0x2f8] sm:$0xf]
    %v207 = vld [vmem:[%s0 + $0x2fc] sm:$0xf]
    %v208 = vld [vmem:[%s0 + $0x300] sm:$0xf]
    %v209 = vld [vmem:[%s0 + $0x304] sm:$0xf]
    %v210 = vld [vmem:[%s0 + $0x308] sm:$0xf]
    %v211 = vld [vmem:[%s0 + $0x30c] sm:$0xf]
    %v212 = vld [vmem:[%s0 + $0x310] sm:$0xf]
    %v213 = vld [vmem:[%s0 + $0x314] sm:$0xf]
    %v214 = vld [vmem:[%s0 + $0x318] sm:$0xf]
    %v215 = vld [vmem:[%s0 + $0x31c] sm:$0xf]
    %v216 = vld [vmem:[%s0 + $0x320] sm:$0xf]
    %v217 = vld [vmem:[%s0 + $0x324] sm:$0xf]
    %v218 = vld [vmem:[%s0 + $0x328] sm:$0xf]
    %v219 = vld [vmem:[%s0 + $0x32c] sm:$0xf]
    %v220 = vld [vmem:[%s0 + $0x330] sm:$0xf]
    %v221 = vld [vmem:[%s0 + $0x334] sm:$0xf]
    %v222 = vld [vmem:[%s0 + $0x338] sm:$0xf]
    %v223 = vld [vmem:[%s0 + $0x33c] sm:$0xf]
    %v224 = vld [vmem:[%s0 + $0x340] sm:$0xf]
    %v225 = vld [vmem:[%s0 + $0x344] sm:$0xf]
    %v226 = vld [vmem:[%s0 + $0x348] sm:$0xf]
    %v227 = vld [vmem:[%s0 + $0x34c] sm:$0xf]
    %v228 = vld [vmem:[%s0 + $0x350] sm:$0xf]
    %v229 = vld [vmem:[%s0 + $0x354] sm:$0xf]
    %v230 = vld [vmem:[%s0 + $0x358] sm:$0xf]
    %v231 = vld [vmem:[%s0 + $0x35c] sm:$0xf]
    %v232 = vld [vmem:[%s0 + $0x360] sm:$0xf]
    %v233 = vld [vmem:[%s0 + $0x364] sm:$0xf]
    %v234 = vld [vmem:[%s0 + $0x368] sm:$0xf]
    %v235 = vld [vmem:[%s0 + $0x36c] sm:$0xf]
    %v236 = vld [vmem:[%s0 + $0x370] sm:$0xf]
    %v237 = vld [vmem:[%s0 + $0x374] sm:$0xf]
    %v238 = vld [vmem:[%s0 + $0x378] sm:$0xf]
    %v239 = vld [vmem:[%s0 + $0x37c] sm:$0xf]
    %v240 = vld [vmem:[%s0 + $0x380] sm:$0xf]
    %v241 = vld [vmem:[%s0 + $0x384] sm:$0xf]
    %v242 = vld [vmem:[%s0 + $0x388] sm:$0xf]
    %v243 = vld [vmem:[%s0 + $0x38c] sm:$0xf]
    %v244 = vld [vmem:[%s0 + $0x390] sm:$0xf]
    %v245 = vld [vmem:[%s0 + $0x394] sm:$0xf]
    %v246 = vld [vmem:[%s0 + $0x398] sm:$0xf]
    %v247 = vld [vmem:[%s0 + $0x39c] sm:$0xf]
    %v248 = vld [vmem:[%s0 + $0x3a0] sm:$0xf]
    %v249 = vld [vmem:[%s0 + $0x3a4] sm:$0xf]
    %v250 = vld [vmem:[%s0 + $0x3a8] sm:$0xf]
    %v251 = vld [vmem:[%s0 + $0x3ac] sm:$0xf]
    %v252 = vld [vmem:[%s0 + $0x3b0] sm:$0xf]
    %v253 = vld [vmem:[%s0 + $0x3b4] sm:$0xf]
    %v254 = vld [vmem:[%s0 + $0x3b8] sm:$0xf]
    %v255 = vld [vmem:[%s0 + $0x3bc] sm:$0xf]
    %v256 = vld [vmem:[%s0 + $0x3c0] sm:$0xf]
    %v257 = vld [vmem:[%s0 + $0x3c4] sm:$0xf]
    %v258 = vld [vmem:[%s0 + $0x3c8] sm:$0xf]
    %v259 = vld [vmem:[%s0 + $0x3cc] sm:$0xf]
    %v260 = vld [vmem:[%s0 + $0x3d0] sm:$0xf]
    %v261 = vld [vmem:[%s0 + $0x3d4] sm:$0xf]
    %v262 = vld [vmem:[%s0 + $0x3d8] sm:$0xf]
    %v263 = vld [vmem:[%s0 + $0x3dc] sm:$0xf]
    %v264 = vld [vmem:[%s0 + $0x3e0] sm:$0xf]
    %v265 = vld [vmem:[%s0 + $0x3e4] sm:$0xf]
    %v266 = vld [vmem:[%s0 + $0x3e8] sm:$0xf]
    %v267 = vld [vmem:[%s0 + $0x3ec] sm:$0xf]
    %v268 = vld [vmem:[%s0 + $0x3f0] sm:$0xf]
    %v269 = vld [vmem:[%s0 + $0x3f4] sm:$0xf]
    %v270 = vld [vmem:[%s0 + $0x3f8] sm:$0xf]
    %v271 = vld [vmem:[%s0 + $0x3fc] sm:$0xf]
    %v272 = vld [vmem:[%s0 + $0x400] sm:$0xf]
    %v273 = vld [vmem:[%s0 + $0x404] sm:$0xf]
    %v274 = vld [vmem:[%s0 + $0x408] sm:$0xf]
    %v275 = vld [vmem:[%s0 + $0x40c] sm:$0xf]
    %v276 = vld [vmem:[%s0 + $0x410] sm:$0xf]
    %v277 = vld [vmem:[%s0 + $0x414] sm:$0xf]
    %v278 = vld [vmem:[%s0 + $0x418] sm:$0xf]
    %v279 = vld [vmem:[%s0 + $0x41c] sm:$0xf]
    %v280 = vld [vmem:[%s0 + $0x420] sm:$0xf]
    %v281 = vld [vmem:[%s0 + $0x424] sm:$0xf]
    %v282 = vld [vmem:[%s0 + $0x428] sm:$0xf]
    %v283 = vld [vmem:[%s0 + $0x42c] sm:$0xf]
    %v284 = vld [vmem:[%s0 + $0x430] sm:$0xf]
    %v285 = vld [vmem:[%s0 + $0x434] sm:$0xf]
    %v286 = vld [vmem:[%s0 + $0x438] sm:$0xf]
    %v287 = vld [vmem:[%s0 + $0x43c] sm:$0xf]
    %v288 = vld [vmem:[%s0 + $0x440] sm:$0xf]
    %v289 = vld [vmem:[%s0 + $0x444] sm:$0xf]
    %v290 = vld [vmem:[%s0 + $0x448] sm:$0xf]
    %v291 = vld [vmem:[%s0 + $0x44c] sm:$0xf]
    %v292 = vld [vmem:[%s0 + $0x450] sm:$0xf]
    %v293 = vld [vmem:[%s0 + $0x454] sm:$0xf]
    %v294 = vld [vmem:[%s0 + $0x458] sm:$0xf]
    %v295 = vld [vmem:[%s0 + $0x45c] sm:$0xf]
    %v296 = vld [vmem:[%s0 + $0x460] sm:$0xf]
    %v297 = vld [vmem:[%s0 + $0x464] sm:$0xf]
    %v298 = vld [vmem:[%s0 + $0x468] sm:$0xf]
    %v299 = vld [vmem:[%s0 + $0x46c] sm:$0xf]
    %v300 = vld [vmem:[%s0 + $0x470] sm:$0xf]
    %v301 = vld [vmem:[%s0 + $0x474] sm:$0xf]
    %v302 = vld [vmem:[%s0 + $0x478] sm:$0xf]
    %v303 = vld [vmem:[%s0 + $0x47c] sm:$0xf]
    %v304 = vld [vmem:[%s0 + $0x480] sm:$0xf]
    %v305 = vld [vmem:[%s0 + $0x484] sm:$0xf]
    %v306 = vld [vmem:[%s0 + $0x488] sm:$0xf]
    %v307 = vld [vmem:[%s0 + $0x48c] sm:$0xf]
    %v308 = vld [vmem:[%s0 + $0x490] sm:$0xf]
    %v309 = vld [vmem:[%s0 + $0x494] sm:$0xf]
    %v310 = vld [vmem:[%s0 + $0x498] sm:$0xf]
    %v311 = vld [vmem:[%s0 + $0x49c] sm:$0xf]
    %v312 = vld [vmem:[%s0 + $0x4a0] sm:$0xf]
    %v313 = vld [vmem:[%s0 + $0x4a4] sm:$0xf]
    %v314 = vld [vmem:[%s0 + $0x4a8] sm:$0xf]
    %v315 = vld [vmem:[%s0 + $0x4ac] sm:$0xf]
    %v316 = vld [vmem:[%s0 + $0x4b0] sm:$0xf]
    %v317 = vld [vmem:[%s0 + $0x4b4] sm:$0xf]
    %v318 = vld [vmem:[%s0 + $0x4b8] sm:$0xf]
    %v319 = vld [vmem:[%s0 + $0x4bc] sm:$0xf]
    %v320 = vld [vmem:[%s0 + $0x4c0] sm:$0xf]
    %v321 = vld [vmem:[%s0 + $0x4c4] sm:$0xf]
    %v322 = vld [vmem:[%s0 + $0x4c8] sm:$0xf]
    %v323 = vld [vmem:[%s0 + $0x4cc] sm:$0xf]
    %v324 = vld [vmem:[%s0 + $0x4d0] sm:$0xf]
    %v325 = vld [vmem:[%s0 + $0x4d4] sm:$0xf]
    %v326 = vld [vmem:[%s0 + $0x4d8] sm:$0xf]
    %v327 = vld [vmem:[%s0 + $0x4dc] sm:$0xf]
    %v328 = vld [vmem:[%s0 + $0x4e0] sm:$0xf]
    %v329 = vld [vmem:[%s0 + $0x4e4] sm:$0xf]
    %v330 = vld [vmem:[%s0 + $0x4e8] sm:$0xf]
    %v331 = vld [vmem:[%s0 + $0x4ec] sm:$0xf]
    %v332 = vld [vmem:[%s0 + $0x4f0] sm:$0xf]
    %v333 = vld [vmem:[%s0 + $0x4f4] sm:$0xf]
    %v334 = vld [vmem:[%s0 + $0x4f8] sm:$0xf]
    %v335 = vld [vmem:[%s0 + $0x4fc] sm:$0xf]
    %v336 = vld [vmem:[%s0 + $0x500] sm:$0xf]
    %v337 = vld [vmem:[%s0 + $0x504] sm:$0xf]
    %v338 = vld [vmem:[%s0 + $0x508] sm:$0xf]
    %v339 = vld [vmem:[%s0 + $0x50c] sm:$0xf]
    %v340 = vld [vmem:[%s0 + $0x510] sm:$0xf]
    %v341 = vld [vmem:[%s0 + $0x514] sm:$0xf]
    %v342 = vld [vmem:[%s0 + $0x518] sm:$0xf]
    %v343 = vld [vmem:[%s0 + $0x51c] sm:$0xf]
    %v344 = vld [vmem:[%s0 + $0x520] sm:$0xf]
    %v345 = vld [vmem:[%s0 + $0x524] sm:$0xf]
    %v346 = vld [vmem:[%s0 + $0x528] sm:$0xf]
    %v347 = vld [vmem:[%s0 + $0x52c] sm:$0xf]
    %v348 = vld [vmem:[%s0 + $0x530] sm:$0xf]
    %v349 = vld [vmem:[%s0 + $0x534] sm:$0xf]
    %v350 = vld [vmem:[%s0 + $0x538] sm:$0xf]
    %v351 = vld [vmem:[%s0 + $0x53c] sm:$0xf]
    %v352 = vld [vmem:[%s0 + $0x540] sm:$0xf]
    %v353 = vld [vmem:[%s0 + $0x544] sm:$0xf]
    %v354 = vld [vmem:[%s0 + $0x548] sm:$0xf]
    %v355 = vld [vmem:[%s0 + $0x54c] sm:$0xf]
    %v356 = vld [vmem:[%s0 + $0x550] sm:$0xf]
    %v357 = vld [vmem:[%s0 + $0x554] sm:$0xf]
    %v358 = vld [vmem:[%s0 + $0x558] sm:$0x1]
    %v359 = vld [vmem:[%s1] sm:$0xf]
    %v360 = vld [vmem:[%s1 + $0x4] sm:$0xf]
    %v361 = vld [vmem:[%s1 + $0x8] sm:$0xf]
    %v362 = vld [vmem:[%s1 + $0xc] sm:$0x3]
    %v363 = vld [vmem:[%s2] sm:$0x1]
    %v365 = vperm.slane %v363, 0
    %v710 = vunpack.c.l.b16 %v16
    %v711 = vunpack.c.l.b16 %v17
    %v712 = vunpack.c.l.b16 %v18
    %v713 = vunpack.c.l.b16 %v19
    %v714 = vunpack.c.l.b16 %v20
    %v715 = vunpack.c.l.b16 %v21
    %v716 = vunpack.c.l.b16 %v22
    %v717 = vunpack.c.l.b16 %v23
    %v718 = vunpack.c.l.b16 %v24
    %v719 = vunpack.c.l.b16 %v25
    %v720 = vunpack.c.l.b16 %v26
    %v721 = vunpack.c.l.b16 %v27
    %v722 = vunpack.c.l.b16 %v28
    %v723 = vunpack.c.l.b16 %v29
    %v724 = vunpack.c.l.b16 %v30
    %v725 = vunpack.c.l.b16 %v31
    %v726 = vunpack.c.l.b16 %v32
    %v727 = vunpack.c.l.b16 %v33
    %v728 = vunpack.c.l.b16 %v34
    %v729 = vunpack.c.l.b16 %v35
    %v730 = vunpack.c.l.b16 %v36
    %v731 = vunpack.c.l.b16 %v37
    %v732 = vunpack.c.l.b16 %v38
    %v733 = vunpack.c.l.b16 %v39
    %v734 = vunpack.c.l.b16 %v40
    %v735 = vunpack.c.l.b16 %v41
    %v736 = vunpack.c.l.b16 %v42
    %v737 = vunpack.c.l.b16 %v43
    %v738 = vunpack.c.l.b16 %v44
    %v739 = vunpack.c.l.b16 %v45
    %v740 = vunpack.c.l.b16 %v46
    %v741 = vunpack.c.l.b16 %v47
    %v742 = vunpack.c.l.b16 %v48
    %v743 = vunpack.c.l.b16 %v49
    %v744 = vunpack.c.l.b16 %v50
    %v745 = vunpack.c.l.b16 %v51
    %v746 = vunpack.c.l.b16 %v52
    %v747 = vunpack.c.l.b16 %v53
    %v748 = vunpack.c.l.b16 %v54
    %v749 = vunpack.c.l.b16 %v55
    %v750 = vunpack.c.l.b16 %v56
    %v751 = vunpack.c.l.b16 %v57
    %v752 = vunpack.c.l.b16 %v58
    %v753 = vunpack.c.l.b16 %v59
    %v754 = vunpack.c.l.b16 %v60
    %v755 = vunpack.c.l.b16 %v61
    %v756 = vunpack.c.l.b16 %v62
    %v757 = vunpack.c.l.b16 %v63
    %v758 = vunpack.c.l.b16 %v64
    %v759 = vunpack.c.l.b16 %v65
    %v760 = vunpack.c.l.b16 %v66
    %v761 = vunpack.c.l.b16 %v67
    %v762 = vunpack.c.l.b16 %v68
    %v763 = vunpack.c.l.b16 %v69
    %v764 = vunpack.c.l.b16 %v70
    %v765 = vunpack.c.l.b16 %v71
    %v766 = vunpack.c.l.b16 %v72
    %v767 = vunpack.c.l.b16 %v73
    %v768 = vunpack.c.l.b16 %v74
    %v769 = vunpack.c.l.b16 %v75
    %v770 = vunpack.c.l.b16 %v76
    %v771 = vunpack.c.l.b16 %v77
    %v772 = vunpack.c.l.b16 %v78
    %v773 = vunpack.c.l.b16 %v79
    %v774 = vunpack.c.l.b16 %v80
    %v775 = vunpack.c.l.b16 %v81
    %v776 = vunpack.c.l.b16 %v82
    %v777 = vunpack.c.l.b16 %v83
    %v778 = vunpack.c.l.b16 %v84
    %v779 = vunpack.c.l.b16 %v85
    %v780 = vunpack.c.l.b16 %v86
    %v781 = vunpack.c.l.b16 %v87
    %v782 = vunpack.c.l.b16 %v88
    %v783 = vunpack.c.l.b16 %v89
    %v784 = vunpack.c.l.b16 %v90
    %v785 = vunpack.c.l.b16 %v91
    %v786 = vunpack.c.l.b16 %v92
    %v787 = vunpack.c.l.b16 %v93
    %v788 = vunpack.c.l.b16 %v94
    %v789 = vunpack.c.l.b16 %v95
    %v790 = vunpack.c.l.b16 %v96
    %v791 = vunpack.c.l.b16 %v97
    %v792 = vunpack.c.l.b16 %v98
    %v793 = vunpack.c.l.b16 %v99
    %v794 = vunpack.c.l.b16 %v100
    %v795 = vunpack.c.l.b16 %v101
    %v796 = vunpack.c.l.b16 %v102
    %v797 = vunpack.c.l.b16 %v103
    %v798 = vunpack.c.l.b16 %v104
    %v799 = vunpack.c.l.b16 %v105
    %v800 = vunpack.c.l.b16 %v106
    %v801 = vunpack.c.l.b16 %v107
    %v802 = vunpack.c.l.b16 %v108
    %v803 = vunpack.c.l.b16 %v109
    %v804 = vunpack.c.l.b16 %v110
    %v805 = vunpack.c.l.b16 %v111
    %v806 = vunpack.c.l.b16 %v112
    %v807 = vunpack.c.l.b16 %v113
    %v808 = vunpack.c.l.b16 %v114
    %v809 = vunpack.c.l.b16 %v115
    %v810 = vunpack.c.l.b16 %v116
    %v811 = vunpack.c.l.b16 %v117
    %v812 = vunpack.c.l.b16 %v118
    %v813 = vunpack.c.l.b16 %v119
    %v814 = vunpack.c.l.b16 %v120
    %v815 = vunpack.c.l.b16 %v121
    %v816 = vunpack.c.l.b16 %v122
    %v817 = vunpack.c.l.b16 %v123
    %v818 = vunpack.c.l.b16 %v124
    %v819 = vunpack.c.l.b16 %v125
    %v820 = vunpack.c.l.b16 %v126
    %v821 = vunpack.c.l.b16 %v127
    %v822 = vunpack.c.l.b16 %v128
    %v823 = vunpack.c.l.b16 %v129
    %v824 = vunpack.c.l.b16 %v130
    %v825 = vunpack.c.l.b16 %v131
    %v826 = vunpack.c.l.b16 %v132
    %v827 = vunpack.c.l.b16 %v133
    %v828 = vunpack.c.l.b16 %v134
    %v829 = vunpack.c.l.b16 %v135
    %v830 = vunpack.c.l.b16 %v136
    %v831 = vunpack.c.l.b16 %v137
    %v832 = vunpack.c.l.b16 %v138
    %v833 = vunpack.c.l.b16 %v139
    %v834 = vunpack.c.l.b16 %v140
    %v835 = vunpack.c.l.b16 %v141
    %v836 = vunpack.c.l.b16 %v142
    %v837 = vunpack.c.l.b16 %v143
    %v838 = vunpack.c.l.b16 %v144
    %v839 = vunpack.c.l.b16 %v145
    %v840 = vunpack.c.l.b16 %v146
    %v841 = vunpack.c.l.b16 %v147
    %v842 = vunpack.c.l.b16 %v148
    %v843 = vunpack.c.l.b16 %v149
    %v844 = vunpack.c.l.b16 %v150
    %v845 = vunpack.c.l.b16 %v151
    %v846 = vunpack.c.l.b16 %v152
    %v847 = vunpack.c.l.b16 %v153
    %v848 = vunpack.c.l.b16 %v154
    %v849 = vunpack.c.l.b16 %v155
    %v850 = vunpack.c.l.b16 %v156
    %v851 = vunpack.c.l.b16 %v157
    %v852 = vunpack.c.l.b16 %v158
    %v853 = vunpack.c.l.b16 %v159
    %v854 = vunpack.c.l.b16 %v160
    %v855 = vunpack.c.l.b16 %v161
    %v856 = vunpack.c.l.b16 %v162
    %v857 = vunpack.c.l.b16 %v163
    %v858 = vunpack.c.l.b16 %v164
    %v859 = vunpack.c.l.b16 %v165
    %v860 = vunpack.c.l.b16 %v166
    %v861 = vunpack.c.l.b16 %v167
    %v862 = vunpack.c.l.b16 %v168
    %v863 = vunpack.c.l.b16 %v169
    %v864 = vunpack.c.l.b16 %v170
    %v865 = vunpack.c.l.b16 %v171
    %v866 = vunpack.c.l.b16 %v172
    %v867 = vunpack.c.l.b16 %v173
    %v868 = vunpack.c.l.b16 %v174
    %v869 = vunpack.c.l.b16 %v175
    %v870 = vunpack.c.l.b16 %v176
    %v871 = vunpack.c.l.b16 %v177
    %v872 = vunpack.c.l.b16 %v178
    %v873 = vunpack.c.l.b16 %v179
    %v874 = vunpack.c.l.b16 %v180
    %v875 = vunpack.c.l.b16 %v181
    %v876 = vunpack.c.l.b16 %v182
    %v877 = vunpack.c.l.b16 %v183
    %v878 = vunpack.c.l.b16 %v184
    %v879 = vunpack.c.l.b16 %v185
    %v880 = vunpack.c.l.b16 %v186
    %v881 = vunpack.c.l.b16 %v187
    %v882 = vunpack.c.l.b16 %v188
    %v883 = vunpack.c.l.b16 %v189
    %v884 = vunpack.c.l.b16 %v190
    %v885 = vunpack.c.l.b16 %v191
    %v886 = vunpack.c.l.b16 %v192
    %v887 = vunpack.c.l.b16 %v193
    %v888 = vunpack.c.l.b16 %v194
    %v889 = vunpack.c.l.b16 %v195
    %v890 = vunpack.c.l.b16 %v196
    %v891 = vunpack.c.l.b16 %v197
    %v892 = vunpack.c.l.b16 %v198
    %v893 = vunpack.c.l.b16 %v199
    %v894 = vunpack.c.l.b16 %v200
    %v895 = vunpack.c.l.b16 %v201
    %v896 = vunpack.c.l.b16 %v202
    %v897 = vunpack.c.l.b16 %v203
    %v898 = vunpack.c.l.b16 %v204
    %v899 = vunpack.c.l.b16 %v205
    %v900 = vunpack.c.l.b16 %v206
    %v901 = vunpack.c.l.b16 %v207
    %v902 = vunpack.c.l.b16 %v208
    %v903 = vunpack.c.l.b16 %v209
    %v904 = vunpack.c.l.b16 %v210
    %v905 = vunpack.c.l.b16 %v211
    %v906 = vunpack.c.l.b16 %v212
    %v907 = vunpack.c.l.b16 %v213
    %v908 = vunpack.c.l.b16 %v214
    %v909 = vunpack.c.l.b16 %v215
    %v910 = vunpack.c.l.b16 %v216
    %v911 = vunpack.c.l.b16 %v217
    %v912 = vunpack.c.l.b16 %v218
    %v913 = vunpack.c.l.b16 %v219
    %v914 = vunpack.c.l.b16 %v220
    %v915 = vunpack.c.l.b16 %v221
    %v916 = vunpack.c.l.b16 %v222
    %v917 = vunpack.c.l.b16 %v223
    %v918 = vunpack.c.l.b16 %v224
    %v919 = vunpack.c.l.b16 %v225
    %v920 = vunpack.c.l.b16 %v226
    %v921 = vunpack.c.l.b16 %v227
    %v922 = vunpack.c.l.b16 %v228
    %v923 = vunpack.c.l.b16 %v229
    %v924 = vunpack.c.l.b16 %v230
    %v925 = vunpack.c.l.b16 %v231
    %v926 = vunpack.c.l.b16 %v232
    %v927 = vunpack.c.l.b16 %v233
    %v928 = vunpack.c.l.b16 %v234
    %v929 = vunpack.c.l.b16 %v235
    %v930 = vunpack.c.l.b16 %v236
    %v931 = vunpack.c.l.b16 %v237
    %v932 = vunpack.c.l.b16 %v238
    %v933 = vunpack.c.l.b16 %v239
    %v934 = vunpack.c.l.b16 %v240
    %v935 = vunpack.c.l.b16 %v241
    %v936 = vunpack.c.l.b16 %v242
    %v937 = vunpack.c.l.b16 %v243
    %v938 = vunpack.c.l.b16 %v244
    %v939 = vunpack.c.l.b16 %v245
    %v940 = vunpack.c.l.b16 %v246
    %v941 = vunpack.c.l.b16 %v247
    %v942 = vunpack.c.l.b16 %v248
    %v943 = vunpack.c.l.b16 %v249
    %v944 = vunpack.c.l.b16 %v250
    %v945 = vunpack.c.l.b16 %v251
    %v946 = vunpack.c.l.b16 %v252
    %v947 = vunpack.c.l.b16 %v253
    %v948 = vunpack.c.l.b16 %v254
    %v949 = vunpack.c.l.b16 %v255
    %v950 = vunpack.c.l.b16 %v256
    %v951 = vunpack.c.l.b16 %v257
    %v952 = vunpack.c.l.b16 %v258
    %v953 = vunpack.c.l.b16 %v259
    %v954 = vunpack.c.l.b16 %v260
    %v955 = vunpack.c.l.b16 %v261
    %v956 = vunpack.c.l.b16 %v262
    %v957 = vunpack.c.l.b16 %v263
    %v958 = vunpack.c.l.b16 %v264
    %v959 = vunpack.c.l.b16 %v265
    %v960 = vunpack.c.l.b16 %v266
    %v961 = vunpack.c.l.b16 %v267
    %v962 = vunpack.c.l.b16 %v268
    %v963 = vunpack.c.l.b16 %v269
    %v964 = vunpack.c.l.b16 %v270
    %v965 = vunpack.c.l.b16 %v271
    %v966 = vunpack.c.l.b16 %v272
    %v967 = vunpack.c.l.b16 %v273
    %v968 = vunpack.c.l.b16 %v274
    %v969 = vunpack.c.l.b16 %v275
    %v970 = vunpack.c.l.b16 %v276
    %v971 = vunpack.c.l.b16 %v277
    %v972 = vunpack.c.l.b16 %v278
    %v973 = vunpack.c.l.b16 %v279
    %v974 = vunpack.c.l.b16 %v280
    %v975 = vunpack.c.l.b16 %v281
    %v976 = vunpack.c.l.b16 %v282
    %v977 = vunpack.c.l.b16 %v283
    %v978 = vunpack.c.l.b16 %v284
    %v979 = vunpack.c.l.b16 %v285
    %v980 = vunpack.c.l.b16 %v286
    %v981 = vunpack.c.l.b16 %v287
    %v982 = vunpack.c.l.b16 %v288
    %v983 = vunpack.c.l.b16 %v289
    %v984 = vunpack.c.l.b16 %v290
    %v985 = vunpack.c.l.b16 %v291
    %v986 = vunpack.c.l.b16 %v292
    %v987 = vunpack.c.l.b16 %v293
    %v988 = vunpack.c.l.b16 %v294
    %v989 = vunpack.c.l.b16 %v295
    %v990 = vunpack.c.l.b16 %v296
    %v991 = vunpack.c.l.b16 %v297
    %v992 = vunpack.c.l.b16 %v298
    %v993 = vunpack.c.l.b16 %v299
    %v994 = vunpack.c.l.b16 %v300
    %v995 = vunpack.c.l.b16 %v301
    %v996 = vunpack.c.l.b16 %v302
    %v997 = vunpack.c.l.b16 %v303
    %v998 = vunpack.c.l.b16 %v304
    %v999 = vunpack.c.l.b16 %v305
    %v1000 = vunpack.c.l.b16 %v306
    %v1001 = vunpack.c.l.b16 %v307
    %v1002 = vunpack.c.l.b16 %v308
    %v1003 = vunpack.c.l.b16 %v309
    %v1004 = vunpack.c.l.b16 %v310
    %v1005 = vunpack.c.l.b16 %v311
    %v1006 = vunpack.c.l.b16 %v312
    %v1007 = vunpack.c.l.b16 %v313
    %v1008 = vunpack.c.l.b16 %v314
    %v1009 = vunpack.c.l.b16 %v315
    %v1010 = vunpack.c.l.b16 %v316
    %v1011 = vunpack.c.l.b16 %v317
    %v1012 = vunpack.c.l.b16 %v318
    %v1013 = vunpack.c.l.b16 %v319
    %v1014 = vunpack.c.l.b16 %v320
    %v1015 = vunpack.c.l.b16 %v321
    %v1016 = vunpack.c.l.b16 %v322
    %v1017 = vunpack.c.l.b16 %v323
    %v1018 = vunpack.c.l.b16 %v324
    %v1019 = vunpack.c.l.b16 %v325
    %v1020 = vunpack.c.l.b16 %v326
    %v1021 = vunpack.c.l.b16 %v327
    %v1022 = vunpack.c.l.b16 %v328
    %v1023 = vunpack.c.l.b16 %v329
    %v1024 = vunpack.c.l.b16 %v330
    %v1025 = vunpack.c.l.b16 %v331
    %v1026 = vunpack.c.l.b16 %v332
    %v1027 = vunpack.c.l.b16 %v333
    %v1028 = vunpack.c.l.b16 %v334
    %v1029 = vunpack.c.l.b16 %v335
    %v1030 = vunpack.c.l.b16 %v336
    %v1031 = vunpack.c.l.b16 %v337
    %v1032 = vunpack.c.l.b16 %v338
    %v1033 = vunpack.c.l.b16 %v339
    %v1034 = vunpack.c.l.b16 %v340
    %v1035 = vunpack.c.l.b16 %v341
    %v1036 = vunpack.c.l.b16 %v342
    %v1037 = vunpack.c.l.b16 %v343
    %v1038 = vunpack.c.l.b16 %v344
    %v1039 = vunpack.c.l.b16 %v345
    %v1040 = vunpack.c.l.b16 %v346
    %v1041 = vunpack.c.l.b16 %v347
    %v1042 = vunpack.c.l.b16 %v348
    %v1043 = vunpack.c.l.b16 %v349
    %v1044 = vunpack.c.l.b16 %v350
    %v1045 = vunpack.c.l.b16 %v351
    %v1046 = vunpack.c.l.b16 %v352
    %v1047 = vunpack.c.l.b16 %v353
    %v1048 = vunpack.c.l.b16 %v354
    %v1049 = vunpack.c.l.b16 %v355
    %v1050 = vunpack.c.l.b16 %v356
    %v1051 = vunpack.c.l.b16 %v357
    %v1052 = vunpack.c.l.b16 %v358
    %v1053 = vpack.c.b16 %v711, %v710
    %v1054 = vpack.c.b16 %v713, %v712
    %v1055 = vpack.c.b16 %v715, %v714
    %v1056 = vpack.c.b16 %v717, %v716
    %v1057 = vpack.c.b16 %v719, %v718
    %v1058 = vpack.c.b16 %v721, %v720
    %v1059 = vpack.c.b16 %v723, %v722
    %v1060 = vpack.c.b16 %v725, %v724
    %v1061 = vpack.c.b16 %v727, %v726
    %v1062 = vpack.c.b16 %v729, %v728
    %v1063 = vpack.c.b16 %v731, %v730
    %v1064 = vpack.c.b16 %v733, %v732
    %v1065 = vpack.c.b16 %v735, %v734
    %v1066 = vpack.c.b16 %v737, %v736
    %v1067 = vpack.c.b16 %v739, %v738
    %v1068 = vpack.c.b16 %v741, %v740
    %v1069 = vpack.c.b16 %v743, %v742
    %v1070 = vpack.c.b16 %v745, %v744
    %v1071 = vpack.c.b16 %v747, %v746
    %v1072 = vpack.c.b16 %v749, %v748
    %v1073 = vpack.c.b16 %v751, %v750
    %v1074 = vpack.c.b16 %v753, %v752
    %v1075 = vpack.c.b16 %v755, %v754
    %v1076 = vpack.c.b16 %v757, %v756
    %v1077 = vpack.c.b16 %v759, %v758
    %v1078 = vpack.c.b16 %v761, %v760
    %v1079 = vpack.c.b16 %v763, %v762
    %v1080 = vpack.c.b16 %v765, %v764
    %v1081 = vpack.c.b16 %v767, %v766
    %v1082 = vpack.c.b16 %v769, %v768
    %v1083 = vpack.c.b16 %v771, %v770
    %v1084 = vpack.c.b16 %v773, %v772
    %v1085 = vpack.c.b16 %v775, %v774
    %v1086 = vpack.c.b16 %v777, %v776
    %v1087 = vpack.c.b16 %v779, %v778
    %v1088 = vpack.c.b16 %v781, %v780
    %v1089 = vpack.c.b16 %v783, %v782
    %v1090 = vpack.c.b16 %v785, %v784
    %v1091 = vpack.c.b16 %v787, %v786
    %v1092 = vpack.c.b16 %v789, %v788
    %v1093 = vpack.c.b16 %v791, %v790
    %v1094 = vpack.c.b16 %v793, %v792
    %v1095 = vpack.c.b16 %v795, %v794
    %v1096 = vpack.c.b16 %v797, %v796
    %v1097 = vpack.c.b16 %v799, %v798
    %v1098 = vpack.c.b16 %v801, %v800
    %v1099 = vpack.c.b16 %v803, %v802
    %v1100 = vpack.c.b16 %v805, %v804
    %v1101 = vpack.c.b16 %v807, %v806
    %v1102 = vpack.c.b16 %v809, %v808
    %v1103 = vpack.c.b16 %v811, %v810
    %v1104 = vpack.c.b16 %v813, %v812
    %v1105 = vpack.c.b16 %v815, %v814
    %v1106 = vpack.c.b16 %v817, %v816
    %v1107 = vpack.c.b16 %v819, %v818
    %v1108 = vpack.c.b16 %v821, %v820
    %v1109 = vpack.c.b16 %v823, %v822
    %v1110 = vpack.c.b16 %v825, %v824
    %v1111 = vpack.c.b16 %v827, %v826
    %v1112 = vpack.c.b16 %v829, %v828
    %v1113 = vpack.c.b16 %v831, %v830
    %v1114 = vpack.c.b16 %v833, %v832
    %v1115 = vpack.c.b16 %v835, %v834
    %v1116 = vpack.c.b16 %v837, %v836
    %v1117 = vpack.c.b16 %v839, %v838
    %v1118 = vpack.c.b16 %v841, %v840
    %v1119 = vpack.c.b16 %v843, %v842
    %v1120 = vpack.c.b16 %v845, %v844
    %v1121 = vpack.c.b16 %v847, %v846
    %v1122 = vpack.c.b16 %v849, %v848
    %v1123 = vpack.c.b16 %v851, %v850
    %v1124 = vpack.c.b16 %v853, %v852
    %v1125 = vpack.c.b16 %v855, %v854
    %v1126 = vpack.c.b16 %v857, %v856
    %v1127 = vpack.c.b16 %v859, %v858
    %v1128 = vpack.c.b16 %v861, %v860
    %v1129 = vpack.c.b16 %v863, %v862
    %v1130 = vpack.c.b16 %v865, %v864
    %v1131 = vpack.c.b16 %v867, %v866
    %v1132 = vpack.c.b16 %v869, %v868
    %v1133 = vpack.c.b16 %v871, %v870
    %v1134 = vpack.c.b16 %v873, %v872
    %v1135 = vpack.c.b16 %v875, %v874
    %v1136 = vpack.c.b16 %v877, %v876
    %v1137 = vpack.c.b16 %v879, %v878
    %v1138 = vpack.c.b16 %v881, %v880
    %v1139 = vpack.c.b16 %v883, %v882
    %v1140 = vpack.c.b16 %v885, %v884
    %v1141 = vpack.c.b16 %v887, %v886
    %v1142 = vpack.c.b16 %v889, %v888
    %v1143 = vpack.c.b16 %v891, %v890
    %v1144 = vpack.c.b16 %v893, %v892
    %v1145 = vpack.c.b16 %v895, %v894
    %v1146 = vpack.c.b16 %v897, %v896
    %v1147 = vpack.c.b16 %v899, %v898
    %v1148 = vpack.c.b16 %v901, %v900
    %v1149 = vpack.c.b16 %v903, %v902
    %v1150 = vpack.c.b16 %v905, %v904
    %v1151 = vpack.c.b16 %v907, %v906
    %v1152 = vpack.c.b16 %v909, %v908
    %v1153 = vpack.c.b16 %v911, %v910
    %v1154 = vpack.c.b16 %v913, %v912
    %v1155 = vpack.c.b16 %v915, %v914
    %v1156 = vpack.c.b16 %v917, %v916
    %v1157 = vpack.c.b16 %v919, %v918
    %v1158 = vpack.c.b16 %v921, %v920
    %v1159 = vpack.c.b16 %v923, %v922
    %v1160 = vpack.c.b16 %v925, %v924
    %v1161 = vpack.c.b16 %v927, %v926
    %v1162 = vpack.c.b16 %v929, %v928
    %v1163 = vpack.c.b16 %v931, %v930
    %v1164 = vpack.c.b16 %v933, %v932
    %v1165 = vpack.c.b16 %v935, %v934
    %v1166 = vpack.c.b16 %v937, %v936
    %v1167 = vpack.c.b16 %v939, %v938
    %v1168 = vpack.c.b16 %v941, %v940
    %v1169 = vpack.c.b16 %v943, %v942
    %v1170 = vpack.c.b16 %v945, %v944
    %v1171 = vpack.c.b16 %v947, %v946
    %v1172 = vpack.c.b16 %v949, %v948
    %v1173 = vpack.c.b16 %v951, %v950
    %v1174 = vpack.c.b16 %v953, %v952
    %v1175 = vpack.c.b16 %v955, %v954
    %v1176 = vpack.c.b16 %v957, %v956
    %v1177 = vpack.c.b16 %v959, %v958
    %v1178 = vpack.c.b16 %v961, %v960
    %v1179 = vpack.c.b16 %v963, %v962
    %v1180 = vpack.c.b16 %v965, %v964
    %v1181 = vpack.c.b16 %v967, %v966
    %v1182 = vpack.c.b16 %v969, %v968
    %v1183 = vpack.c.b16 %v971, %v970
    %v1184 = vpack.c.b16 %v973, %v972
    %v1185 = vpack.c.b16 %v975, %v974
    %v1186 = vpack.c.b16 %v977, %v976
    %v1187 = vpack.c.b16 %v979, %v978
    %v1188 = vpack.c.b16 %v981, %v980
    %v1189 = vpack.c.b16 %v983, %v982
    %v1190 = vpack.c.b16 %v985, %v984
    %v1191 = vpack.c.b16 %v987, %v986
    %v1192 = vpack.c.b16 %v989, %v988
    %v1193 = vpack.c.b16 %v991, %v990
    %v1194 = vpack.c.b16 %v993, %v992
    %v1195 = vpack.c.b16 %v995, %v994
    %v1196 = vpack.c.b16 %v997, %v996
    %v1197 = vpack.c.b16 %v999, %v998
    %v1198 = vpack.c.b16 %v1001, %v1000
    %v1199 = vpack.c.b16 %v1003, %v1002
    %v1200 = vpack.c.b16 %v1005, %v1004
    %v1201 = vpack.c.b16 %v1007, %v1006
    %v1202 = vpack.c.b16 %v1009, %v1008
    %v1203 = vpack.c.b16 %v1011, %v1010
    %v1204 = vpack.c.b16 %v1013, %v1012
    %v1205 = vpack.c.b16 %v1015, %v1014
    %v1206 = vpack.c.b16 %v1017, %v1016
    %v1207 = vpack.c.b16 %v1019, %v1018
    %v1208 = vpack.c.b16 %v1021, %v1020
    %v1209 = vpack.c.b16 %v1023, %v1022
    %v1210 = vpack.c.b16 %v1025, %v1024
    %v1211 = vpack.c.b16 %v1027, %v1026
    %v1212 = vpack.c.b16 %v1029, %v1028
    %v1213 = vpack.c.b16 %v1031, %v1030
    %v1214 = vpack.c.b16 %v1033, %v1032
    %v1215 = vpack.c.b16 %v1035, %v1034
    %v1216 = vpack.c.b16 %v1037, %v1036
    %v1217 = vpack.c.b16 %v1039, %v1038
    %v1218 = vpack.c.b16 %v1041, %v1040
    %v1219 = vpack.c.b16 %v1043, %v1042
    %v1220 = vpack.c.b16 %v1045, %v1044
    %v1221 = vpack.c.b16 %v1047, %v1046
    %v1222 = vpack.c.b16 %v1049, %v1048
    %v1223 = vpack.c.b16 %v1051, %v1050
    %v1224 = vpack.c.b16 %v1052, %v1052
    %v1229 = vunpack.c.l.b16 %v359
    %v1230 = vunpack.c.l.b16 %v360
    %v1231 = vunpack.c.l.b16 %v361
    %v1232 = vunpack.c.l.b16 %v362
    %v1233 = vpack.c.b16 %v1230, %v1229
    %v1234 = vpack.c.b16 %v1232, %v1231
    %vm1236 = vcmask 220160
    %v1238 = vsel %vm1236, %v1053, 0
    %v1241 = vsel %vm1236, %v1054, 0
    %v1244 = vsel %vm1236, %v1055, 0
    %v1247 = vsel %vm1236, %v1056, 0
    %v1250 = vsel %vm1236, %v1057, 0
    %v1253 = vsel %vm1236, %v1058, 0
    %v1256 = vsel %vm1236, %v1059, 0
    %v1259 = vsel %vm1236, %v1060, 0
    %v1262 = vsel %vm1236, %v1061, 0
    %v1265 = vsel %vm1236, %v1062, 0
    %v1268 = vsel %vm1236, %v1063, 0
    %v1271 = vsel %vm1236, %v1064, 0
    %v1274 = vsel %vm1236, %v1065, 0
    %v1277 = vsel %vm1236, %v1066, 0
    %v1280 = vsel %vm1236, %v1067, 0
    %v1283 = vsel %vm1236, %v1068, 0
    %v1286 = vsel %vm1236, %v1069, 0
    %v1289 = vsel %vm1236, %v1070, 0
    %v1292 = vsel %vm1236, %v1071, 0
    %v1295 = vsel %vm1236, %v1072, 0
    %v1298 = vsel %vm1236, %v1073, 0
    %v1301 = vsel %vm1236, %v1074, 0
    %v1304 = vsel %vm1236, %v1075, 0
    %v1307 = vsel %vm1236, %v1076, 0
    %v1310 = vsel %vm1236, %v1077, 0
    %v1313 = vsel %vm1236, %v1078, 0
    %v1316 = vsel %vm1236, %v1079, 0
    %v1319 = vsel %vm1236, %v1080, 0
    %v1322 = vsel %vm1236, %v1081, 0
    %v1325 = vsel %vm1236, %v1082, 0
    %v1328 = vsel %vm1236, %v1083, 0
    %v1331 = vsel %vm1236, %v1084, 0
    %v1334 = vsel %vm1236, %v1085, 0
    %v1337 = vsel %vm1236, %v1086, 0
    %v1340 = vsel %vm1236, %v1087, 0
    %v1343 = vsel %vm1236, %v1088, 0
    %v1346 = vsel %vm1236, %v1089, 0
    %v1349 = vsel %vm1236, %v1090, 0
    %v1352 = vsel %vm1236, %v1091, 0
    %v1355 = vsel %vm1236, %v1092, 0
    %v1358 = vsel %vm1236, %v1093, 0
    %v1361 = vsel %vm1236, %v1094, 0
    %v1364 = vsel %vm1236, %v1095, 0
    %v1367 = vsel %vm1236, %v1096, 0
    %v1370 = vsel %vm1236, %v1097, 0
    %v1373 = vsel %vm1236, %v1098, 0
    %v1376 = vsel %vm1236, %v1099, 0
    %v1379 = vsel %vm1236, %v1100, 0
    %v1382 = vsel %vm1236, %v1101, 0
    %v1385 = vsel %vm1236, %v1102, 0
    %v1388 = vsel %vm1236, %v1103, 0
    %v1391 = vsel %vm1236, %v1104, 0
    %v1394 = vsel %vm1236, %v1105, 0
    %v1397 = vsel %vm1236, %v1106, 0
    %v1400 = vsel %vm1236, %v1107, 0
    %v1403 = vsel %vm1236, %v1108, 0
    %v1406 = vsel %vm1236, %v1109, 0
    %v1409 = vsel %vm1236, %v1110, 0
    %v1412 = vsel %vm1236, %v1111, 0
    %v1415 = vsel %vm1236, %v1112, 0
    %v1418 = vsel %vm1236, %v1113, 0
    %v1421 = vsel %vm1236, %v1114, 0
    %v1424 = vsel %vm1236, %v1115, 0
    %v1427 = vsel %vm1236, %v1116, 0
    %v1430 = vsel %vm1236, %v1117, 0
    %v1433 = vsel %vm1236, %v1118, 0
    %v1436 = vsel %vm1236, %v1119, 0
    %v1439 = vsel %vm1236, %v1120, 0
    %v1442 = vsel %vm1236, %v1121, 0
    %v1445 = vsel %vm1236, %v1122, 0
    %v1448 = vsel %vm1236, %v1123, 0
    %v1451 = vsel %vm1236, %v1124, 0
    %v1454 = vsel %vm1236, %v1125, 0
    %v1457 = vsel %vm1236, %v1126, 0
    %v1460 = vsel %vm1236, %v1127, 0
    %v1463 = vsel %vm1236, %v1128, 0
    %v1466 = vsel %vm1236, %v1129, 0
    %v1469 = vsel %vm1236, %v1130, 0
    %v1472 = vsel %vm1236, %v1131, 0
    %v1475 = vsel %vm1236, %v1132, 0
    %v1478 = vsel %vm1236, %v1133, 0
    %v1481 = vsel %vm1236, %v1134, 0
    %v1484 = vsel %vm1236, %v1135, 0
    %v1487 = vsel %vm1236, %v1136, 0
    %v1490 = vsel %vm1236, %v1137, 0
    %v1493 = vsel %vm1236, %v1138, 0
    %v1496 = vsel %vm1236, %v1139, 0
    %v1499 = vsel %vm1236, %v1140, 0
    %v1502 = vsel %vm1236, %v1141, 0
    %v1505 = vsel %vm1236, %v1142, 0
    %v1508 = vsel %vm1236, %v1143, 0
    %v1511 = vsel %vm1236, %v1144, 0
    %v1514 = vsel %vm1236, %v1145, 0
    %v1517 = vsel %vm1236, %v1146, 0
    %v1520 = vsel %vm1236, %v1147, 0
    %v1523 = vsel %vm1236, %v1148, 0
    %v1526 = vsel %vm1236, %v1149, 0
    %v1529 = vsel %vm1236, %v1150, 0
    %v1532 = vsel %vm1236, %v1151, 0
    %v1535 = vsel %vm1236, %v1152, 0
    %v1538 = vsel %vm1236, %v1153, 0
    %v1541 = vsel %vm1236, %v1154, 0
    %v1544 = vsel %vm1236, %v1155, 0
    %v1547 = vsel %vm1236, %v1156, 0
    %v1550 = vsel %vm1236, %v1157, 0
    %v1553 = vsel %vm1236, %v1158, 0
    %v1556 = vsel %vm1236, %v1159, 0
    %v1559 = vsel %vm1236, %v1160, 0
    %v1562 = vsel %vm1236, %v1161, 0
    %v1565 = vsel %vm1236, %v1162, 0
    %v1568 = vsel %vm1236, %v1163, 0
    %v1571 = vsel %vm1236, %v1164, 0
    %v1574 = vsel %vm1236, %v1165, 0
    %v1577 = vsel %vm1236, %v1166, 0
    %v1580 = vsel %vm1236, %v1167, 0
    %v1583 = vsel %vm1236, %v1168, 0
    %v1586 = vsel %vm1236, %v1169, 0
    %v1589 = vsel %vm1236, %v1170, 0
    %v1592 = vsel %vm1236, %v1171, 0
    %v1595 = vsel %vm1236, %v1172, 0
    %v1598 = vsel %vm1236, %v1173, 0
    %v1601 = vsel %vm1236, %v1174, 0
    %v1604 = vsel %vm1236, %v1175, 0
    %v1607 = vsel %vm1236, %v1176, 0
    %v1610 = vsel %vm1236, %v1177, 0
    %v1613 = vsel %vm1236, %v1178, 0
    %v1616 = vsel %vm1236, %v1179, 0
    %v1619 = vsel %vm1236, %v1180, 0
    %v1622 = vsel %vm1236, %v1181, 0
    %v1625 = vsel %vm1236, %v1182, 0
    %v1628 = vsel %vm1236, %v1183, 0
    %v1631 = vsel %vm1236, %v1184, 0
    %v1634 = vsel %vm1236, %v1185, 0
    %v1637 = vsel %vm1236, %v1186, 0
    %v1640 = vsel %vm1236, %v1187, 0
    %v1643 = vsel %vm1236, %v1188, 0
    %v1646 = vsel %vm1236, %v1189, 0
    %v1649 = vsel %vm1236, %v1190, 0
    %v1652 = vsel %vm1236, %v1191, 0
    %v1655 = vsel %vm1236, %v1192, 0
    %v1658 = vsel %vm1236, %v1193, 0
    %v1661 = vsel %vm1236, %v1194, 0
    %v1664 = vsel %vm1236, %v1195, 0
    %v1667 = vsel %vm1236, %v1196, 0
    %v1670 = vsel %vm1236, %v1197, 0
    %v1673 = vsel %vm1236, %v1198, 0
    %v1676 = vsel %vm1236, %v1199, 0
    %v1679 = vsel %vm1236, %v1200, 0
    %v1682 = vsel %vm1236, %v1201, 0
    %v1685 = vsel %vm1236, %v1202, 0
    %v1688 = vsel %vm1236, %v1203, 0
    %v1691 = vsel %vm1236, %v1204, 0
    %v1694 = vsel %vm1236, %v1205, 0
    %v1697 = vsel %vm1236, %v1206, 0
    %v1700 = vsel %vm1236, %v1207, 0
    %v1703 = vsel %vm1236, %v1208, 0
    %v1706 = vsel %vm1236, %v1209, 0
    %v1709 = vsel %vm1236, %v1210, 0
    %v1712 = vsel %vm1236, %v1211, 0
    %v1715 = vsel %vm1236, %v1212, 0
    %v1718 = vsel %vm1236, %v1213, 0
    %v1721 = vsel %vm1236, %v1214, 0
    %v1724 = vsel %vm1236, %v1215, 0
    %v1727 = vsel %vm1236, %v1216, 0
    %v1730 = vsel %vm1236, %v1217, 0
    %v1733 = vsel %vm1236, %v1218, 0
    %v1736 = vsel %vm1236, %v1219, 0
    %v1739 = vsel %vm1236, %v1220, 0
    %v1742 = vsel %vm1236, %v1221, 0
    %v1745 = vsel %vm1236, %v1222, 0
    %v1748 = vsel %vm1236, %v1223, 0
    %v1751 = vsel %vm1236, %v1224, 0
    %vm1753 = vcmask 1044480
    %vm1754 = vcmask 1045504
    %v1755 = vsel %vm1753, 4294967295, 65535
    %v1756 = vsel %vm1754, %v1755, 0
    %v1758 = vand.u32 %v1234, %v1756
    %1760 = vmatpush.bf16.msra.mxu0 0
    %1761 = vmatpush.bf16.msra.mxu0 0
    %1762 = vmatpush.bf16.msra.mxu0 0
    %1763 = vmatpush.bf16.msra.mxu0 0
    %1764 = vmatpush.bf16.msra.mxu0 0
    %1765 = vmatpush.bf16.msra.mxu0 0
    %1766 = vmatpush.bf16.msra.mxu0 %v1758
    %1767 = vmatpush.bf16.msra.mxu0 %v1233
    %1768 = vmatmul.bf16.gmra.mxu0 %v1238
    %v1769 = vpop.f32.mrf.mxu0
    %v1770 = vadd.f32 %v365, %v1769
    %v1771 = vpop.f32.mrf.mxu0
    %v1772 = vadd.f32 %v365, %v1771
    %1773 = vmatmul.bf16.gmra.mxu0 %v1241
    %v1774 = vpop.f32.mrf.mxu0
    %v1775 = vadd.f32 %v365, %v1774
    %v1776 = vpop.f32.mrf.mxu0
    %v1777 = vadd.f32 %v365, %v1776
    %1778 = vmatmul.bf16.gmra.mxu0 %v1244
    %v1779 = vpop.f32.mrf.mxu0
    %v1780 = vadd.f32 %v365, %v1779
    %v1781 = vpop.f32.mrf.mxu0
    %v1782 = vadd.f32 %v365, %v1781
    %1783 = vmatmul.bf16.gmra.mxu0 %v1247
    %v1784 = vpop.f32.mrf.mxu0
    %v1785 = vadd.f32 %v365, %v1784
    %v1786 = vpop.f32.mrf.mxu0
    %v1787 = vadd.f32 %v365, %v1786
    %1788 = vmatmul.bf16.gmra.mxu0 %v1250
    %v1789 = vpop.f32.mrf.mxu0
    %v1790 = vadd.f32 %v365, %v1789
    %v1791 = vpop.f32.mrf.mxu0
    %v1792 = vadd.f32 %v365, %v1791
    %1793 = vmatmul.bf16.gmra.mxu0 %v1253
    %v1794 = vpop.f32.mrf.mxu0
    %v1795 = vadd.f32 %v365, %v1794
    %v1796 = vpop.f32.mrf.mxu0
    %v1797 = vadd.f32 %v365, %v1796
    %1798 = vmatmul.bf16.gmra.mxu0 %v1256
    %v1799 = vpop.f32.mrf.mxu0
    %v1800 = vadd.f32 %v365, %v1799
    %v1801 = vpop.f32.mrf.mxu0
    %v1802 = vadd.f32 %v365, %v1801
    %1803 = vmatmul.bf16.gmra.mxu0 %v1259
    %v1804 = vpop.f32.mrf.mxu0
    %v1805 = vadd.f32 %v365, %v1804
    %v1806 = vpop.f32.mrf.mxu0
    %v1807 = vadd.f32 %v365, %v1806
    %1808 = vmatmul.bf16.gmra.mxu0 %v1262
    %v1809 = vpop.f32.mrf.mxu0
    %v1810 = vadd.f32 %v365, %v1809
    %v1811 = vpop.f32.mrf.mxu0
    %v1812 = vadd.f32 %v365, %v1811
    %1813 = vmatmul.bf16.gmra.mxu0 %v1265
    %v1814 = vpop.f32.mrf.mxu0
    %v1815 = vadd.f32 %v365, %v1814
    %v1816 = vpop.f32.mrf.mxu0
    %v1817 = vadd.f32 %v365, %v1816
    %1818 = vmatmul.bf16.gmra.mxu0 %v1268
    %v1819 = vpop.f32.mrf.mxu0
    %v1820 = vadd.f32 %v365, %v1819
    %v1821 = vpop.f32.mrf.mxu0
    %v1822 = vadd.f32 %v365, %v1821
    %1823 = vmatmul.bf16.gmra.mxu0 %v1271
    %v1824 = vpop.f32.mrf.mxu0
    %v1825 = vadd.f32 %v365, %v1824
    %v1826 = vpop.f32.mrf.mxu0
    %v1827 = vadd.f32 %v365, %v1826
    %1828 = vmatmul.bf16.gmra.mxu0 %v1274
    %v1829 = vpop.f32.mrf.mxu0
    %v1830 = vadd.f32 %v365, %v1829
    %v1831 = vpop.f32.mrf.mxu0
    %v1832 = vadd.f32 %v365, %v1831
    %1833 = vmatmul.bf16.gmra.mxu0 %v1277
    %v1834 = vpop.f32.mrf.mxu0
    %v1835 = vadd.f32 %v365, %v1834
    %v1836 = vpop.f32.mrf.mxu0
    %v1837 = vadd.f32 %v365, %v1836
    %1838 = vmatmul.bf16.gmra.mxu0 %v1280
    %v1839 = vpop.f32.mrf.mxu0
    %v1840 = vadd.f32 %v365, %v1839
    %v1841 = vpop.f32.mrf.mxu0
    %v1842 = vadd.f32 %v365, %v1841
    %1843 = vmatmul.bf16.gmra.mxu0 %v1283
    %v1844 = vpop.f32.mrf.mxu0
    %v1845 = vadd.f32 %v365, %v1844
    %v1846 = vpop.f32.mrf.mxu0
    %v1847 = vadd.f32 %v365, %v1846
    %1848 = vmatmul.bf16.gmra.mxu0 %v1286
    %v1849 = vpop.f32.mrf.mxu0
    %v1850 = vadd.f32 %v365, %v1849
    %v1851 = vpop.f32.mrf.mxu0
    %v1852 = vadd.f32 %v365, %v1851
    %1853 = vmatmul.bf16.gmra.mxu0 %v1289
    %v1854 = vpop.f32.mrf.mxu0
    %v1855 = vadd.f32 %v365, %v1854
    %v1856 = vpop.f32.mrf.mxu0
    %v1857 = vadd.f32 %v365, %v1856
    %1858 = vmatmul.bf16.gmra.mxu0 %v1292
    %v1859 = vpop.f32.mrf.mxu0
    %v1860 = vadd.f32 %v365, %v1859
    %v1861 = vpop.f32.mrf.mxu0
    %v1862 = vadd.f32 %v365, %v1861
    %1863 = vmatmul.bf16.gmra.mxu0 %v1295
    %v1864 = vpop.f32.mrf.mxu0
    %v1865 = vadd.f32 %v365, %v1864
    %v1866 = vpop.f32.mrf.mxu0
    %v1867 = vadd.f32 %v365, %v1866
    %1868 = vmatmul.bf16.gmra.mxu0 %v1298
    %v1869 = vpop.f32.mrf.mxu0
    %v1870 = vadd.f32 %v365, %v1869
    %v1871 = vpop.f32.mrf.mxu0
    %v1872 = vadd.f32 %v365, %v1871
    %1873 = vmatmul.bf16.gmra.mxu0 %v1301
    %v1874 = vpop.f32.mrf.mxu0
    %v1875 = vadd.f32 %v365, %v1874
    %v1876 = vpop.f32.mrf.mxu0
    %v1877 = vadd.f32 %v365, %v1876
    %1878 = vmatmul.bf16.gmra.mxu0 %v1304
    %v1879 = vpop.f32.mrf.mxu0
    %v1880 = vadd.f32 %v365, %v1879
    %v1881 = vpop.f32.mrf.mxu0
    %v1882 = vadd.f32 %v365, %v1881
    %1883 = vmatmul.bf16.gmra.mxu0 %v1307
    %v1884 = vpop.f32.mrf.mxu0
    %v1885 = vadd.f32 %v365, %v1884
    %v1886 = vpop.f32.mrf.mxu0
    %v1887 = vadd.f32 %v365, %v1886
    %1888 = vmatmul.bf16.gmra.mxu0 %v1310
    %v1889 = vpop.f32.mrf.mxu0
    %v1890 = vadd.f32 %v365, %v1889
    %v1891 = vpop.f32.mrf.mxu0
    %v1892 = vadd.f32 %v365, %v1891
    %1893 = vmatmul.bf16.gmra.mxu0 %v1313
    %v1894 = vpop.f32.mrf.mxu0
    %v1895 = vadd.f32 %v365, %v1894
    %v1896 = vpop.f32.mrf.mxu0
    %v1897 = vadd.f32 %v365, %v1896
    %1898 = vmatmul.bf16.gmra.mxu0 %v1316
    %v1899 = vpop.f32.mrf.mxu0
    %v1900 = vadd.f32 %v365, %v1899
    %v1901 = vpop.f32.mrf.mxu0
    %v1902 = vadd.f32 %v365, %v1901
    %1903 = vmatmul.bf16.gmra.mxu0 %v1319
    %v1904 = vpop.f32.mrf.mxu0
    %v1905 = vadd.f32 %v365, %v1904
    %v1906 = vpop.f32.mrf.mxu0
    %v1907 = vadd.f32 %v365, %v1906
    %1908 = vmatmul.bf16.gmra.mxu0 %v1322
    %v1909 = vpop.f32.mrf.mxu0
    %v1910 = vadd.f32 %v365, %v1909
    %v1911 = vpop.f32.mrf.mxu0
    %v1912 = vadd.f32 %v365, %v1911
    %1913 = vmatmul.bf16.gmra.mxu0 %v1325
    %v1914 = vpop.f32.mrf.mxu0
    %v1915 = vadd.f32 %v365, %v1914
    %v1916 = vpop.f32.mrf.mxu0
    %v1917 = vadd.f32 %v365, %v1916
    %1918 = vmatmul.bf16.gmra.mxu0 %v1328
    %v1919 = vpop.f32.mrf.mxu0
    %v1920 = vadd.f32 %v365, %v1919
    %v1921 = vpop.f32.mrf.mxu0
    %v1922 = vadd.f32 %v365, %v1921
    %1923 = vmatmul.bf16.gmra.mxu0 %v1331
    %v1924 = vpop.f32.mrf.mxu0
    %v1925 = vadd.f32 %v365, %v1924
    %v1926 = vpop.f32.mrf.mxu0
    %v1927 = vadd.f32 %v365, %v1926
    %1928 = vmatmul.bf16.gmra.mxu0 %v1334
    %v1929 = vpop.f32.mrf.mxu0
    %v1930 = vadd.f32 %v365, %v1929
    %v1931 = vpop.f32.mrf.mxu0
    %v1932 = vadd.f32 %v365, %v1931
    %1933 = vmatmul.bf16.gmra.mxu0 %v1337
    %v1934 = vpop.f32.mrf.mxu0
    %v1935 = vadd.f32 %v365, %v1934
    %v1936 = vpop.f32.mrf.mxu0
    %v1937 = vadd.f32 %v365, %v1936
    %1938 = vmatmul.bf16.gmra.mxu0 %v1340
    %v1939 = vpop.f32.mrf.mxu0
    %v1940 = vadd.f32 %v365, %v1939
    %v1941 = vpop.f32.mrf.mxu0
    %v1942 = vadd.f32 %v365, %v1941
    %1943 = vmatmul.bf16.gmra.mxu0 %v1343
    %v1944 = vpop.f32.mrf.mxu0
    %v1945 = vadd.f32 %v365, %v1944
    %v1946 = vpop.f32.mrf.mxu0
    %v1947 = vadd.f32 %v365, %v1946
    %1948 = vmatmul.bf16.gmra.mxu0 %v1346
    %v1949 = vpop.f32.mrf.mxu0
    %v1950 = vadd.f32 %v365, %v1949
    %v1951 = vpop.f32.mrf.mxu0
    %v1952 = vadd.f32 %v365, %v1951
    %1953 = vmatmul.bf16.gmra.mxu0 %v1349
    %v1954 = vpop.f32.mrf.mxu0
    %v1955 = vadd.f32 %v365, %v1954
    %v1956 = vpop.f32.mrf.mxu0
    %v1957 = vadd.f32 %v365, %v1956
    %1958 = vmatmul.bf16.gmra.mxu0 %v1352
    %v1959 = vpop.f32.mrf.mxu0
    %v1960 = vadd.f32 %v365, %v1959
    %v1961 = vpop.f32.mrf.mxu0
    %v1962 = vadd.f32 %v365, %v1961
    %1963 = vmatmul.bf16.gmra.mxu0 %v1355
    %v1964 = vpop.f32.mrf.mxu0
    %v1965 = vadd.f32 %v365, %v1964
    %v1966 = vpop.f32.mrf.mxu0
    %v1967 = vadd.f32 %v365, %v1966
    %1968 = vmatmul.bf16.gmra.mxu0 %v1358
    %v1969 = vpop.f32.mrf.mxu0
    %v1970 = vadd.f32 %v365, %v1969
    %v1971 = vpop.f32.mrf.mxu0
    %v1972 = vadd.f32 %v365, %v1971
    %1973 = vmatmul.bf16.gmra.mxu0 %v1361
    %v1974 = vpop.f32.mrf.mxu0
    %v1975 = vadd.f32 %v365, %v1974
    %v1976 = vpop.f32.mrf.mxu0
    %v1977 = vadd.f32 %v365, %v1976
    %1978 = vmatmul.bf16.gmra.mxu0 %v1364
    %v1979 = vpop.f32.mrf.mxu0
    %v1980 = vadd.f32 %v365, %v1979
    %v1981 = vpop.f32.mrf.mxu0
    %v1982 = vadd.f32 %v365, %v1981
    %1983 = vmatmul.bf16.gmra.mxu0 %v1367
    %v1984 = vpop.f32.mrf.mxu0
    %v1985 = vadd.f32 %v365, %v1984
    %v1986 = vpop.f32.mrf.mxu0
    %v1987 = vadd.f32 %v365, %v1986
    %1988 = vmatmul.bf16.gmra.mxu0 %v1370
    %v1989 = vpop.f32.mrf.mxu0
    %v1990 = vadd.f32 %v365, %v1989
    %v1991 = vpop.f32.mrf.mxu0
    %v1992 = vadd.f32 %v365, %v1991
    %1993 = vmatmul.bf16.gmra.mxu0 %v1373
    %v1994 = vpop.f32.mrf.mxu0
    %v1995 = vadd.f32 %v365, %v1994
    %v1996 = vpop.f32.mrf.mxu0
    %v1997 = vadd.f32 %v365, %v1996
    %1998 = vmatmul.bf16.gmra.mxu0 %v1376
    %v1999 = vpop.f32.mrf.mxu0
    %v2000 = vadd.f32 %v365, %v1999
    %v2001 = vpop.f32.mrf.mxu0
    %v2002 = vadd.f32 %v365, %v2001
    %2003 = vmatmul.bf16.gmra.mxu0 %v1379
    %v2004 = vpop.f32.mrf.mxu0
    %v2005 = vadd.f32 %v365, %v2004
    %v2006 = vpop.f32.mrf.mxu0
    %v2007 = vadd.f32 %v365, %v2006
    %2008 = vmatmul.bf16.gmra.mxu0 %v1382
    %v2009 = vpop.f32.mrf.mxu0
    %v2010 = vadd.f32 %v365, %v2009
    %v2011 = vpop.f32.mrf.mxu0
    %v2012 = vadd.f32 %v365, %v2011
    %2013 = vmatmul.bf16.gmra.mxu0 %v1385
    %v2014 = vpop.f32.mrf.mxu0
    %v2015 = vadd.f32 %v365, %v2014
    %v2016 = vpop.f32.mrf.mxu0
    %v2017 = vadd.f32 %v365, %v2016
    %2018 = vmatmul.bf16.gmra.mxu0 %v1388
    %v2019 = vpop.f32.mrf.mxu0
    %v2020 = vadd.f32 %v365, %v2019
    %v2021 = vpop.f32.mrf.mxu0
    %v2022 = vadd.f32 %v365, %v2021
    %2023 = vmatmul.bf16.gmra.mxu0 %v1391
    %v2024 = vpop.f32.mrf.mxu0
    %v2025 = vadd.f32 %v365, %v2024
    %v2026 = vpop.f32.mrf.mxu0
    %v2027 = vadd.f32 %v365, %v2026
    %2028 = vmatmul.bf16.gmra.mxu0 %v1394
    %v2029 = vpop.f32.mrf.mxu0
    %v2030 = vadd.f32 %v365, %v2029
    %v2031 = vpop.f32.mrf.mxu0
    %v2032 = vadd.f32 %v365, %v2031
    %2033 = vmatmul.bf16.gmra.mxu0 %v1397
    %v2034 = vpop.f32.mrf.mxu0
    %v2035 = vadd.f32 %v365, %v2034
    %v2036 = vpop.f32.mrf.mxu0
    %v2037 = vadd.f32 %v365, %v2036
    %2038 = vmatmul.bf16.gmra.mxu0 %v1400
    %v2039 = vpop.f32.mrf.mxu0
    %v2040 = vadd.f32 %v365, %v2039
    %v2041 = vpop.f32.mrf.mxu0
    %v2042 = vadd.f32 %v365, %v2041
    %2043 = vmatmul.bf16.gmra.mxu0 %v1403
    %v2044 = vpop.f32.mrf.mxu0
    %v2045 = vadd.f32 %v365, %v2044
    %v2046 = vpop.f32.mrf.mxu0
    %v2047 = vadd.f32 %v365, %v2046
    %2048 = vmatmul.bf16.gmra.mxu0 %v1406
    %v2049 = vpop.f32.mrf.mxu0
    %v2050 = vadd.f32 %v365, %v2049
    %v2051 = vpop.f32.mrf.mxu0
    %v2052 = vadd.f32 %v365, %v2051
    %2053 = vmatmul.bf16.gmra.mxu0 %v1409
    %v2054 = vpop.f32.mrf.mxu0
    %v2055 = vadd.f32 %v365, %v2054
    %v2056 = vpop.f32.mrf.mxu0
    %v2057 = vadd.f32 %v365, %v2056
    %2058 = vmatmul.bf16.gmra.mxu0 %v1412
    %v2059 = vpop.f32.mrf.mxu0
    %v2060 = vadd.f32 %v365, %v2059
    %v2061 = vpop.f32.mrf.mxu0
    %v2062 = vadd.f32 %v365, %v2061
    %2063 = vmatmul.bf16.gmra.mxu0 %v1415
    %v2064 = vpop.f32.mrf.mxu0
    %v2065 = vadd.f32 %v365, %v2064
    %v2066 = vpop.f32.mrf.mxu0
    %v2067 = vadd.f32 %v365, %v2066
    %2068 = vmatmul.bf16.gmra.mxu0 %v1418
    %v2069 = vpop.f32.mrf.mxu0
    %v2070 = vadd.f32 %v365, %v2069
    %v2071 = vpop.f32.mrf.mxu0
    %v2072 = vadd.f32 %v365, %v2071
    %2073 = vmatmul.bf16.gmra.mxu0 %v1421
    %v2074 = vpop.f32.mrf.mxu0
    %v2075 = vadd.f32 %v365, %v2074
    %v2076 = vpop.f32.mrf.mxu0
    %v2077 = vadd.f32 %v365, %v2076
    %2078 = vmatmul.bf16.gmra.mxu0 %v1424
    %v2079 = vpop.f32.mrf.mxu0
    %v2080 = vadd.f32 %v365, %v2079
    %v2081 = vpop.f32.mrf.mxu0
    %v2082 = vadd.f32 %v365, %v2081
    %2083 = vmatmul.bf16.gmra.mxu0 %v1427
    %v2084 = vpop.f32.mrf.mxu0
    %v2085 = vadd.f32 %v365, %v2084
    %v2086 = vpop.f32.mrf.mxu0
    %v2087 = vadd.f32 %v365, %v2086
    %2088 = vmatmul.bf16.gmra.mxu0 %v1430
    %v2089 = vpop.f32.mrf.mxu0
    %v2090 = vadd.f32 %v365, %v2089
    %v2091 = vpop.f32.mrf.mxu0
    %v2092 = vadd.f32 %v365, %v2091
    %2093 = vmatmul.bf16.gmra.mxu0 %v1433
    %v2094 = vpop.f32.mrf.mxu0
    %v2095 = vadd.f32 %v365, %v2094
    %v2096 = vpop.f32.mrf.mxu0
    %v2097 = vadd.f32 %v365, %v2096
    %2098 = vmatmul.bf16.gmra.mxu0 %v1436
    %v2099 = vpop.f32.mrf.mxu0
    %v2100 = vadd.f32 %v365, %v2099
    %v2101 = vpop.f32.mrf.mxu0
    %v2102 = vadd.f32 %v365, %v2101
    %2103 = vmatmul.bf16.gmra.mxu0 %v1439
    %v2104 = vpop.f32.mrf.mxu0
    %v2105 = vadd.f32 %v365, %v2104
    %v2106 = vpop.f32.mrf.mxu0
    %v2107 = vadd.f32 %v365, %v2106
    %2108 = vmatmul.bf16.gmra.mxu0 %v1442
    %v2109 = vpop.f32.mrf.mxu0
    %v2110 = vadd.f32 %v365, %v2109
    %v2111 = vpop.f32.mrf.mxu0
    %v2112 = vadd.f32 %v365, %v2111
    %2113 = vmatmul.bf16.gmra.mxu0 %v1445
    %v2114 = vpop.f32.mrf.mxu0
    %v2115 = vadd.f32 %v365, %v2114
    %v2116 = vpop.f32.mrf.mxu0
    %v2117 = vadd.f32 %v365, %v2116
    %2118 = vmatmul.bf16.gmra.mxu0 %v1448
    %v2119 = vpop.f32.mrf.mxu0
    %v2120 = vadd.f32 %v365, %v2119
    %v2121 = vpop.f32.mrf.mxu0
    %v2122 = vadd.f32 %v365, %v2121
    %2123 = vmatmul.bf16.gmra.mxu0 %v1451
    %v2124 = vpop.f32.mrf.mxu0
    %v2125 = vadd.f32 %v365, %v2124
    %v2126 = vpop.f32.mrf.mxu0
    %v2127 = vadd.f32 %v365, %v2126
    %2128 = vmatmul.bf16.gmra.mxu0 %v1454
    %v2129 = vpop.f32.mrf.mxu0
    %v2130 = vadd.f32 %v365, %v2129
    %v2131 = vpop.f32.mrf.mxu0
    %v2132 = vadd.f32 %v365, %v2131
    %2133 = vmatmul.bf16.gmra.mxu0 %v1457
    %v2134 = vpop.f32.mrf.mxu0
    %v2135 = vadd.f32 %v365, %v2134
    %v2136 = vpop.f32.mrf.mxu0
    %v2137 = vadd.f32 %v365, %v2136
    %2138 = vmatmul.bf16.gmra.mxu0 %v1460
    %v2139 = vpop.f32.mrf.mxu0
    %v2140 = vadd.f32 %v365, %v2139
    %v2141 = vpop.f32.mrf.mxu0
    %v2142 = vadd.f32 %v365, %v2141
    %2143 = vmatmul.bf16.gmra.mxu0 %v1463
    %v2144 = vpop.f32.mrf.mxu0
    %v2145 = vadd.f32 %v365, %v2144
    %v2146 = vpop.f32.mrf.mxu0
    %v2147 = vadd.f32 %v365, %v2146
    %2148 = vmatmul.bf16.gmra.mxu0 %v1466
    %v2149 = vpop.f32.mrf.mxu0
    %v2150 = vadd.f32 %v365, %v2149
    %v2151 = vpop.f32.mrf.mxu0
    %v2152 = vadd.f32 %v365, %v2151
    %2153 = vmatmul.bf16.gmra.mxu0 %v1469
    %v2154 = vpop.f32.mrf.mxu0
    %v2155 = vadd.f32 %v365, %v2154
    %v2156 = vpop.f32.mrf.mxu0
    %v2157 = vadd.f32 %v365, %v2156
    %2158 = vmatmul.bf16.gmra.mxu0 %v1472
    %v2159 = vpop.f32.mrf.mxu0
    %v2160 = vadd.f32 %v365, %v2159
    %v2161 = vpop.f32.mrf.mxu0
    %v2162 = vadd.f32 %v365, %v2161
    %2163 = vmatmul.bf16.gmra.mxu0 %v1475
    %v2164 = vpop.f32.mrf.mxu0
    %v2165 = vadd.f32 %v365, %v2164
    %v2166 = vpop.f32.mrf.mxu0
    %v2167 = vadd.f32 %v365, %v2166
    %2168 = vmatmul.bf16.gmra.mxu0 %v1478
    %v2169 = vpop.f32.mrf.mxu0
    %v2170 = vadd.f32 %v365, %v2169
    %v2171 = vpop.f32.mrf.mxu0
    %v2172 = vadd.f32 %v365, %v2171
    %2173 = vmatmul.bf16.gmra.mxu0 %v1481
    %v2174 = vpop.f32.mrf.mxu0
    %v2175 = vadd.f32 %v365, %v2174
    %v2176 = vpop.f32.mrf.mxu0
    %v2177 = vadd.f32 %v365, %v2176
    %2178 = vmatmul.bf16.gmra.mxu0 %v1484
    %v2179 = vpop.f32.mrf.mxu0
    %v2180 = vadd.f32 %v365, %v2179
    %v2181 = vpop.f32.mrf.mxu0
    %v2182 = vadd.f32 %v365, %v2181
    %2183 = vmatmul.bf16.gmra.mxu0 %v1487
    %v2184 = vpop.f32.mrf.mxu0
    %v2185 = vadd.f32 %v365, %v2184
    %v2186 = vpop.f32.mrf.mxu0
    %v2187 = vadd.f32 %v365, %v2186
    %2188 = vmatmul.bf16.gmra.mxu0 %v1490
    %v2189 = vpop.f32.mrf.mxu0
    %v2190 = vadd.f32 %v365, %v2189
    %v2191 = vpop.f32.mrf.mxu0
    %v2192 = vadd.f32 %v365, %v2191
    %2193 = vmatmul.bf16.gmra.mxu0 %v1493
    %v2194 = vpop.f32.mrf.mxu0
    %v2195 = vadd.f32 %v365, %v2194
    %v2196 = vpop.f32.mrf.mxu0
    %v2197 = vadd.f32 %v365, %v2196
    %2198 = vmatmul.bf16.gmra.mxu0 %v1496
    %v2199 = vpop.f32.mrf.mxu0
    %v2200 = vadd.f32 %v365, %v2199
    %v2201 = vpop.f32.mrf.mxu0
    %v2202 = vadd.f32 %v365, %v2201
    %2203 = vmatmul.bf16.gmra.mxu0 %v1499
    %v2204 = vpop.f32.mrf.mxu0
    %v2205 = vadd.f32 %v365, %v2204
    %v2206 = vpop.f32.mrf.mxu0
    %v2207 = vadd.f32 %v365, %v2206
    %2208 = vmatmul.bf16.gmra.mxu0 %v1502
    %v2209 = vpop.f32.mrf.mxu0
    %v2210 = vadd.f32 %v365, %v2209
    %v2211 = vpop.f32.mrf.mxu0
    %v2212 = vadd.f32 %v365, %v2211
    %2213 = vmatmul.bf16.gmra.mxu0 %v1505
    %v2214 = vpop.f32.mrf.mxu0
    %v2215 = vadd.f32 %v365, %v2214
    %v2216 = vpop.f32.mrf.mxu0
    %v2217 = vadd.f32 %v365, %v2216
    %2218 = vmatmul.bf16.gmra.mxu0 %v1508
    %v2219 = vpop.f32.mrf.mxu0
    %v2220 = vadd.f32 %v365, %v2219
    %v2221 = vpop.f32.mrf.mxu0
    %v2222 = vadd.f32 %v365, %v2221
    %2223 = vmatmul.bf16.gmra.mxu0 %v1511
    %v2224 = vpop.f32.mrf.mxu0
    %v2225 = vadd.f32 %v365, %v2224
    %v2226 = vpop.f32.mrf.mxu0
    %v2227 = vadd.f32 %v365, %v2226
    %2228 = vmatmul.bf16.gmra.mxu0 %v1514
    %v2229 = vpop.f32.mrf.mxu0
    %v2230 = vadd.f32 %v365, %v2229
    %v2231 = vpop.f32.mrf.mxu0
    %v2232 = vadd.f32 %v365, %v2231
    %2233 = vmatmul.bf16.gmra.mxu0 %v1517
    %v2234 = vpop.f32.mrf.mxu0
    %v2235 = vadd.f32 %v365, %v2234
    %v2236 = vpop.f32.mrf.mxu0
    %v2237 = vadd.f32 %v365, %v2236
    %2238 = vmatmul.bf16.gmra.mxu0 %v1520
    %v2239 = vpop.f32.mrf.mxu0
    %v2240 = vadd.f32 %v365, %v2239
    %v2241 = vpop.f32.mrf.mxu0
    %v2242 = vadd.f32 %v365, %v2241
    %2243 = vmatmul.bf16.gmra.mxu0 %v1523
    %v2244 = vpop.f32.mrf.mxu0
    %v2245 = vadd.f32 %v365, %v2244
    %v2246 = vpop.f32.mrf.mxu0
    %v2247 = vadd.f32 %v365, %v2246
    %2248 = vmatmul.bf16.gmra.mxu0 %v1526
    %v2249 = vpop.f32.mrf.mxu0
    %v2250 = vadd.f32 %v365, %v2249
    %v2251 = vpop.f32.mrf.mxu0
    %v2252 = vadd.f32 %v365, %v2251
    %2253 = vmatmul.bf16.gmra.mxu0 %v1529
    %v2254 = vpop.f32.mrf.mxu0
    %v2255 = vadd.f32 %v365, %v2254
    %v2256 = vpop.f32.mrf.mxu0
    %v2257 = vadd.f32 %v365, %v2256
    %2258 = vmatmul.bf16.gmra.mxu0 %v1532
    %v2259 = vpop.f32.mrf.mxu0
    %v2260 = vadd.f32 %v365, %v2259
    %v2261 = vpop.f32.mrf.mxu0
    %v2262 = vadd.f32 %v365, %v2261
    %2263 = vmatmul.bf16.gmra.mxu0 %v1535
    %v2264 = vpop.f32.mrf.mxu0
    %v2265 = vadd.f32 %v365, %v2264
    %v2266 = vpop.f32.mrf.mxu0
    %v2267 = vadd.f32 %v365, %v2266
    %2268 = vmatmul.bf16.gmra.mxu0 %v1538
    %v2269 = vpop.f32.mrf.mxu0
    %v2270 = vadd.f32 %v365, %v2269
    %v2271 = vpop.f32.mrf.mxu0
    %v2272 = vadd.f32 %v365, %v2271
    %2273 = vmatmul.bf16.gmra.mxu0 %v1541
    %v2274 = vpop.f32.mrf.mxu0
    %v2275 = vadd.f32 %v365, %v2274
    %v2276 = vpop.f32.mrf.mxu0
    %v2277 = vadd.f32 %v365, %v2276
    %2278 = vmatmul.bf16.gmra.mxu0 %v1544
    %v2279 = vpop.f32.mrf.mxu0
    %v2280 = vadd.f32 %v365, %v2279
    %v2281 = vpop.f32.mrf.mxu0
    %v2282 = vadd.f32 %v365, %v2281
    %2283 = vmatmul.bf16.gmra.mxu0 %v1547
    %v2284 = vpop.f32.mrf.mxu0
    %v2285 = vadd.f32 %v365, %v2284
    %v2286 = vpop.f32.mrf.mxu0
    %v2287 = vadd.f32 %v365, %v2286
    %2288 = vmatmul.bf16.gmra.mxu0 %v1550
    %v2289 = vpop.f32.mrf.mxu0
    %v2290 = vadd.f32 %v365, %v2289
    %v2291 = vpop.f32.mrf.mxu0
    %v2292 = vadd.f32 %v365, %v2291
    %2293 = vmatmul.bf16.gmra.mxu0 %v1553
    %v2294 = vpop.f32.mrf.mxu0
    %v2295 = vadd.f32 %v365, %v2294
    %v2296 = vpop.f32.mrf.mxu0
    %v2297 = vadd.f32 %v365, %v2296
    %2298 = vmatmul.bf16.gmra.mxu0 %v1556
    %v2299 = vpop.f32.mrf.mxu0
    %v2300 = vadd.f32 %v365, %v2299
    %v2301 = vpop.f32.mrf.mxu0
    %v2302 = vadd.f32 %v365, %v2301
    %2303 = vmatmul.bf16.gmra.mxu0 %v1559
    %v2304 = vpop.f32.mrf.mxu0
    %v2305 = vadd.f32 %v365, %v2304
    %v2306 = vpop.f32.mrf.mxu0
    %v2307 = vadd.f32 %v365, %v2306
    %2308 = vmatmul.bf16.gmra.mxu0 %v1562
    %v2309 = vpop.f32.mrf.mxu0
    %v2310 = vadd.f32 %v365, %v2309
    %v2311 = vpop.f32.mrf.mxu0
    %v2312 = vadd.f32 %v365, %v2311
    %2313 = vmatmul.bf16.gmra.mxu0 %v1565
    %v2314 = vpop.f32.mrf.mxu0
    %v2315 = vadd.f32 %v365, %v2314
    %v2316 = vpop.f32.mrf.mxu0
    %v2317 = vadd.f32 %v365, %v2316
    %2318 = vmatmul.bf16.gmra.mxu0 %v1568
    %v2319 = vpop.f32.mrf.mxu0
    %v2320 = vadd.f32 %v365, %v2319
    %v2321 = vpop.f32.mrf.mxu0
    %v2322 = vadd.f32 %v365, %v2321
    %2323 = vmatmul.bf16.gmra.mxu0 %v1571
    %v2324 = vpop.f32.mrf.mxu0
    %v2325 = vadd.f32 %v365, %v2324
    %v2326 = vpop.f32.mrf.mxu0
    %v2327 = vadd.f32 %v365, %v2326
    %2328 = vmatmul.bf16.gmra.mxu0 %v1574
    %v2329 = vpop.f32.mrf.mxu0
    %v2330 = vadd.f32 %v365, %v2329
    %v2331 = vpop.f32.mrf.mxu0
    %v2332 = vadd.f32 %v365, %v2331
    %2333 = vmatmul.bf16.gmra.mxu0 %v1577
    %v2334 = vpop.f32.mrf.mxu0
    %v2335 = vadd.f32 %v365, %v2334
    %v2336 = vpop.f32.mrf.mxu0
    %v2337 = vadd.f32 %v365, %v2336
    %2338 = vmatmul.bf16.gmra.mxu0 %v1580
    %v2339 = vpop.f32.mrf.mxu0
    %v2340 = vadd.f32 %v365, %v2339
    %v2341 = vpop.f32.mrf.mxu0
    %v2342 = vadd.f32 %v365, %v2341
    %2343 = vmatmul.bf16.gmra.mxu0 %v1583
    %v2344 = vpop.f32.mrf.mxu0
    %v2345 = vadd.f32 %v365, %v2344
    %v2346 = vpop.f32.mrf.mxu0
    %v2347 = vadd.f32 %v365, %v2346
    %2348 = vmatmul.bf16.gmra.mxu0 %v1586
    %v2349 = vpop.f32.mrf.mxu0
    %v2350 = vadd.f32 %v365, %v2349
    %v2351 = vpop.f32.mrf.mxu0
    %v2352 = vadd.f32 %v365, %v2351
    %2353 = vmatmul.bf16.gmra.mxu0 %v1589
    %v2354 = vpop.f32.mrf.mxu0
    %v2355 = vadd.f32 %v365, %v2354
    %v2356 = vpop.f32.mrf.mxu0
    %v2357 = vadd.f32 %v365, %v2356
    %2358 = vmatmul.bf16.gmra.mxu0 %v1592
    %v2359 = vpop.f32.mrf.mxu0
    %v2360 = vadd.f32 %v365, %v2359
    %v2361 = vpop.f32.mrf.mxu0
    %v2362 = vadd.f32 %v365, %v2361
    %2363 = vmatmul.bf16.gmra.mxu0 %v1595
    %v2364 = vpop.f32.mrf.mxu0
    %v2365 = vadd.f32 %v365, %v2364
    %v2366 = vpop.f32.mrf.mxu0
    %v2367 = vadd.f32 %v365, %v2366
    %2368 = vmatmul.bf16.gmra.mxu0 %v1598
    %v2369 = vpop.f32.mrf.mxu0
    %v2370 = vadd.f32 %v365, %v2369
    %v2371 = vpop.f32.mrf.mxu0
    %v2372 = vadd.f32 %v365, %v2371
    %2373 = vmatmul.bf16.gmra.mxu0 %v1601
    %v2374 = vpop.f32.mrf.mxu0
    %v2375 = vadd.f32 %v365, %v2374
    %v2376 = vpop.f32.mrf.mxu0
    %v2377 = vadd.f32 %v365, %v2376
    %2378 = vmatmul.bf16.gmra.mxu0 %v1604
    %v2379 = vpop.f32.mrf.mxu0
    %v2380 = vadd.f32 %v365, %v2379
    %v2381 = vpop.f32.mrf.mxu0
    %v2382 = vadd.f32 %v365, %v2381
    %2383 = vmatmul.bf16.gmra.mxu0 %v1607
    %v2384 = vpop.f32.mrf.mxu0
    %v2385 = vadd.f32 %v365, %v2384
    %v2386 = vpop.f32.mrf.mxu0
    %v2387 = vadd.f32 %v365, %v2386
    %2388 = vmatmul.bf16.gmra.mxu0 %v1610
    %v2389 = vpop.f32.mrf.mxu0
    %v2390 = vadd.f32 %v365, %v2389
    %v2391 = vpop.f32.mrf.mxu0
    %v2392 = vadd.f32 %v365, %v2391
    %2393 = vmatmul.bf16.gmra.mxu0 %v1613
    %v2394 = vpop.f32.mrf.mxu0
    %v2395 = vadd.f32 %v365, %v2394
    %v2396 = vpop.f32.mrf.mxu0
    %v2397 = vadd.f32 %v365, %v2396
    %2398 = vmatmul.bf16.gmra.mxu0 %v1616
    %v2399 = vpop.f32.mrf.mxu0
    %v2400 = vadd.f32 %v365, %v2399
    %v2401 = vpop.f32.mrf.mxu0
    %v2402 = vadd.f32 %v365, %v2401
    %2403 = vmatmul.bf16.gmra.mxu0 %v1619
    %v2404 = vpop.f32.mrf.mxu0
    %v2405 = vadd.f32 %v365, %v2404
    %v2406 = vpop.f32.mrf.mxu0
    %v2407 = vadd.f32 %v365, %v2406
    %2408 = vmatmul.bf16.gmra.mxu0 %v1622
    %v2409 = vpop.f32.mrf.mxu0
    %v2410 = vadd.f32 %v365, %v2409
    %v2411 = vpop.f32.mrf.mxu0
    %v2412 = vadd.f32 %v365, %v2411
    %2413 = vmatmul.bf16.gmra.mxu0 %v1625
    %v2414 = vpop.f32.mrf.mxu0
    %v2415 = vadd.f32 %v365, %v2414
    %v2416 = vpop.f32.mrf.mxu0
    %v2417 = vadd.f32 %v365, %v2416
    %2418 = vmatmul.bf16.gmra.mxu0 %v1628
    %v2419 = vpop.f32.mrf.mxu0
    %v2420 = vadd.f32 %v365, %v2419
    %v2421 = vpop.f32.mrf.mxu0
    %v2422 = vadd.f32 %v365, %v2421
    %2423 = vmatmul.bf16.gmra.mxu0 %v1631
    %v2424 = vpop.f32.mrf.mxu0
    %v2425 = vadd.f32 %v365, %v2424
    %v2426 = vpop.f32.mrf.mxu0
    %v2427 = vadd.f32 %v365, %v2426
    %2428 = vmatmul.bf16.gmra.mxu0 %v1634
    %v2429 = vpop.f32.mrf.mxu0
    %v2430 = vadd.f32 %v365, %v2429
    %v2431 = vpop.f32.mrf.mxu0
    %v2432 = vadd.f32 %v365, %v2431
    %2433 = vmatmul.bf16.gmra.mxu0 %v1637
    %v2434 = vpop.f32.mrf.mxu0
    %v2435 = vadd.f32 %v365, %v2434
    %v2436 = vpop.f32.mrf.mxu0
    %v2437 = vadd.f32 %v365, %v2436
    %2438 = vmatmul.bf16.gmra.mxu0 %v1640
    %v2439 = vpop.f32.mrf.mxu0
    %v2440 = vadd.f32 %v365, %v2439
    %v2441 = vpop.f32.mrf.mxu0
    %v2442 = vadd.f32 %v365, %v2441
    %2443 = vmatmul.bf16.gmra.mxu0 %v1643
    %v2444 = vpop.f32.mrf.mxu0
    %v2445 = vadd.f32 %v365, %v2444
    %v2446 = vpop.f32.mrf.mxu0
    %v2447 = vadd.f32 %v365, %v2446
    %2448 = vmatmul.bf16.gmra.mxu0 %v1646
    %v2449 = vpop.f32.mrf.mxu0
    %v2450 = vadd.f32 %v365, %v2449
    %v2451 = vpop.f32.mrf.mxu0
    %v2452 = vadd.f32 %v365, %v2451
    %2453 = vmatmul.bf16.gmra.mxu0 %v1649
    %v2454 = vpop.f32.mrf.mxu0
    %v2455 = vadd.f32 %v365, %v2454
    %v2456 = vpop.f32.mrf.mxu0
    %v2457 = vadd.f32 %v365, %v2456
    %2458 = vmatmul.bf16.gmra.mxu0 %v1652
    %v2459 = vpop.f32.mrf.mxu0
    %v2460 = vadd.f32 %v365, %v2459
    %v2461 = vpop.f32.mrf.mxu0
    %v2462 = vadd.f32 %v365, %v2461
    %2463 = vmatmul.bf16.gmra.mxu0 %v1655
    %v2464 = vpop.f32.mrf.mxu0
    %v2465 = vadd.f32 %v365, %v2464
    %v2466 = vpop.f32.mrf.mxu0
    %v2467 = vadd.f32 %v365, %v2466
    %2468 = vmatmul.bf16.gmra.mxu0 %v1658
    %v2469 = vpop.f32.mrf.mxu0
    %v2470 = vadd.f32 %v365, %v2469
    %v2471 = vpop.f32.mrf.mxu0
    %v2472 = vadd.f32 %v365, %v2471
    %2473 = vmatmul.bf16.gmra.mxu0 %v1661
    %v2474 = vpop.f32.mrf.mxu0
    %v2475 = vadd.f32 %v365, %v2474
    %v2476 = vpop.f32.mrf.mxu0
    %v2477 = vadd.f32 %v365, %v2476
    %2478 = vmatmul.bf16.gmra.mxu0 %v1664
    %v2479 = vpop.f32.mrf.mxu0
    %v2480 = vadd.f32 %v365, %v2479
    %v2481 = vpop.f32.mrf.mxu0
    %v2482 = vadd.f32 %v365, %v2481
    %2483 = vmatmul.bf16.gmra.mxu0 %v1667
    %v2484 = vpop.f32.mrf.mxu0
    %v2485 = vadd.f32 %v365, %v2484
    %v2486 = vpop.f32.mrf.mxu0
    %v2487 = vadd.f32 %v365, %v2486
    %2488 = vmatmul.bf16.gmra.mxu0 %v1670
    %v2489 = vpop.f32.mrf.mxu0
    %v2490 = vadd.f32 %v365, %v2489
    %v2491 = vpop.f32.mrf.mxu0
    %v2492 = vadd.f32 %v365, %v2491
    %2493 = vmatmul.bf16.gmra.mxu0 %v1673
    %v2494 = vpop.f32.mrf.mxu0
    %v2495 = vadd.f32 %v365, %v2494
    %v2496 = vpop.f32.mrf.mxu0
    %v2497 = vadd.f32 %v365, %v2496
    %2498 = vmatmul.bf16.gmra.mxu0 %v1676
    %v2499 = vpop.f32.mrf.mxu0
    %v2500 = vadd.f32 %v365, %v2499
    %v2501 = vpop.f32.mrf.mxu0
    %v2502 = vadd.f32 %v365, %v2501
    %2503 = vmatmul.bf16.gmra.mxu0 %v1679
    %v2504 = vpop.f32.mrf.mxu0
    %v2505 = vadd.f32 %v365, %v2504
    %v2506 = vpop.f32.mrf.mxu0
    %v2507 = vadd.f32 %v365, %v2506
    %2508 = vmatmul.bf16.gmra.mxu0 %v1682
    %v2509 = vpop.f32.mrf.mxu0
    %v2510 = vadd.f32 %v365, %v2509
    %v2511 = vpop.f32.mrf.mxu0
    %v2512 = vadd.f32 %v365, %v2511
    %2513 = vmatmul.bf16.gmra.mxu0 %v1685
    %v2514 = vpop.f32.mrf.mxu0
    %v2515 = vadd.f32 %v365, %v2514
    %v2516 = vpop.f32.mrf.mxu0
    %v2517 = vadd.f32 %v365, %v2516
    %2518 = vmatmul.bf16.gmra.mxu0 %v1688
    %v2519 = vpop.f32.mrf.mxu0
    %v2520 = vadd.f32 %v365, %v2519
    %v2521 = vpop.f32.mrf.mxu0
    %v2522 = vadd.f32 %v365, %v2521
    %2523 = vmatmul.bf16.gmra.mxu0 %v1691
    %v2524 = vpop.f32.mrf.mxu0
    %v2525 = vadd.f32 %v365, %v2524
    %v2526 = vpop.f32.mrf.mxu0
    %v2527 = vadd.f32 %v365, %v2526
    %2528 = vmatmul.bf16.gmra.mxu0 %v1694
    %v2529 = vpop.f32.mrf.mxu0
    %v2530 = vadd.f32 %v365, %v2529
    %v2531 = vpop.f32.mrf.mxu0
    %v2532 = vadd.f32 %v365, %v2531
    %2533 = vmatmul.bf16.gmra.mxu0 %v1697
    %v2534 = vpop.f32.mrf.mxu0
    %v2535 = vadd.f32 %v365, %v2534
    %v2536 = vpop.f32.mrf.mxu0
    %v2537 = vadd.f32 %v365, %v2536
    %2538 = vmatmul.bf16.gmra.mxu0 %v1700
    %v2539 = vpop.f32.mrf.mxu0
    %v2540 = vadd.f32 %v365, %v2539
    %v2541 = vpop.f32.mrf.mxu0
    %v2542 = vadd.f32 %v365, %v2541
    %2543 = vmatmul.bf16.gmra.mxu0 %v1703
    %v2544 = vpop.f32.mrf.mxu0
    %v2545 = vadd.f32 %v365, %v2544
    %v2546 = vpop.f32.mrf.mxu0
    %v2547 = vadd.f32 %v365, %v2546
    %2548 = vmatmul.bf16.gmra.mxu0 %v1706
    %v2549 = vpop.f32.mrf.mxu0
    %v2550 = vadd.f32 %v365, %v2549
    %v2551 = vpop.f32.mrf.mxu0
    %v2552 = vadd.f32 %v365, %v2551
    %2553 = vmatmul.bf16.gmra.mxu0 %v1709
    %v2554 = vpop.f32.mrf.mxu0
    %v2555 = vadd.f32 %v365, %v2554
    %v2556 = vpop.f32.mrf.mxu0
    %v2557 = vadd.f32 %v365, %v2556
    %2558 = vmatmul.bf16.gmra.mxu0 %v1712
    %v2559 = vpop.f32.mrf.mxu0
    %v2560 = vadd.f32 %v365, %v2559
    %v2561 = vpop.f32.mrf.mxu0
    %v2562 = vadd.f32 %v365, %v2561
    %2563 = vmatmul.bf16.gmra.mxu0 %v1715
    %v2564 = vpop.f32.mrf.mxu0
    %v2565 = vadd.f32 %v365, %v2564
    %v2566 = vpop.f32.mrf.mxu0
    %v2567 = vadd.f32 %v365, %v2566
    %2568 = vmatmul.bf16.gmra.mxu0 %v1718
    %v2569 = vpop.f32.mrf.mxu0
    %v2570 = vadd.f32 %v365, %v2569
    %v2571 = vpop.f32.mrf.mxu0
    %v2572 = vadd.f32 %v365, %v2571
    %2573 = vmatmul.bf16.gmra.mxu0 %v1721
    %v2574 = vpop.f32.mrf.mxu0
    %v2575 = vadd.f32 %v365, %v2574
    %v2576 = vpop.f32.mrf.mxu0
    %v2577 = vadd.f32 %v365, %v2576
    %2578 = vmatmul.bf16.gmra.mxu0 %v1724
    %v2579 = vpop.f32.mrf.mxu0
    %v2580 = vadd.f32 %v365, %v2579
    %v2581 = vpop.f32.mrf.mxu0
    %v2582 = vadd.f32 %v365, %v2581
    %2583 = vmatmul.bf16.gmra.mxu0 %v1727
    %v2584 = vpop.f32.mrf.mxu0
    %v2585 = vadd.f32 %v365, %v2584
    %v2586 = vpop.f32.mrf.mxu0
    %v2587 = vadd.f32 %v365, %v2586
    %2588 = vmatmul.bf16.gmra.mxu0 %v1730
    %v2589 = vpop.f32.mrf.mxu0
    %v2590 = vadd.f32 %v365, %v2589
    %v2591 = vpop.f32.mrf.mxu0
    %v2592 = vadd.f32 %v365, %v2591
    %2593 = vmatmul.bf16.gmra.mxu0 %v1733
    %v2594 = vpop.f32.mrf.mxu0
    %v2595 = vadd.f32 %v365, %v2594
    %v2596 = vpop.f32.mrf.mxu0
    %v2597 = vadd.f32 %v365, %v2596
    %2598 = vmatmul.bf16.gmra.mxu0 %v1736
    %v2599 = vpop.f32.mrf.mxu0
    %v2600 = vadd.f32 %v365, %v2599
    %v2601 = vpop.f32.mrf.mxu0
    %v2602 = vadd.f32 %v365, %v2601
    %2603 = vmatmul.bf16.gmra.mxu0 %v1739
    %v2604 = vpop.f32.mrf.mxu0
    %v2605 = vadd.f32 %v365, %v2604
    %v2606 = vpop.f32.mrf.mxu0
    %v2607 = vadd.f32 %v365, %v2606
    %2608 = vmatmul.bf16.gmra.mxu0 %v1742
    %v2609 = vpop.f32.mrf.mxu0
    %v2610 = vadd.f32 %v365, %v2609
    %v2611 = vpop.f32.mrf.mxu0
    %v2612 = vadd.f32 %v365, %v2611
    %2613 = vmatmul.bf16.gmra.mxu0 %v1745
    %v2614 = vpop.f32.mrf.mxu0
    %v2615 = vadd.f32 %v365, %v2614
    %v2616 = vpop.f32.mrf.mxu0
    %v2617 = vadd.f32 %v365, %v2616
    %2618 = vmatmul.bf16.gmra.mxu0 %v1748
    %v2619 = vpop.f32.mrf.mxu0
    %v2620 = vadd.f32 %v365, %v2619
    %v2621 = vpop.f32.mrf.mxu0
    %v2622 = vadd.f32 %v365, %v2621
    %2623 = vmatmul.bf16.gmra.mxu0 %v1751
    %v2624 = vpop.f32.mrf.mxu0
    %v2625 = vadd.f32 %v365, %v2624
    %v2626 = vpop.f32.mrf.mxu0
    %2627 = vdwg.mxu0
    %v2628 = vmax.f32 %v1770, 0.0
    %v2629 = vmax.f32 %v1772, 0.0
    %v2630 = vmax.f32 %v1775, 0.0
    %v2631 = vmax.f32 %v1777, 0.0
    %v2632 = vmax.f32 %v1780, 0.0
    %v2633 = vmax.f32 %v1782, 0.0
    %v2634 = vmax.f32 %v1785, 0.0
    %v2635 = vmax.f32 %v1787, 0.0
    %v2636 = vmax.f32 %v1790, 0.0
    %v2637 = vmax.f32 %v1792, 0.0
    %v2638 = vmax.f32 %v1795, 0.0
    %v2639 = vmax.f32 %v1797, 0.0
    %v2640 = vmax.f32 %v1800, 0.0
    %v2641 = vmax.f32 %v1802, 0.0
    %v2642 = vmax.f32 %v1805, 0.0
    %v2643 = vmax.f32 %v1807, 0.0
    %v2644 = vmax.f32 %v1810, 0.0
    %v2645 = vmax.f32 %v1812, 0.0
    %v2646 = vmax.f32 %v1815, 0.0
    %v2647 = vmax.f32 %v1817, 0.0
    %v2648 = vmax.f32 %v1820, 0.0
    %v2649 = vmax.f32 %v1822, 0.0
    %v2650 = vmax.f32 %v1825, 0.0
    %v2651 = vmax.f32 %v1827, 0.0
    %v2652 = vmax.f32 %v1830, 0.0
    %v2653 = vmax.f32 %v1832, 0.0
    %v2654 = vmax.f32 %v1835, 0.0
    %v2655 = vmax.f32 %v1837, 0.0
    %v2656 = vmax.f32 %v1840, 0.0
    %v2657 = vmax.f32 %v1842, 0.0
    %v2658 = vmax.f32 %v1845, 0.0
    %v2659 = vmax.f32 %v1847, 0.0
    %v2660 = vmax.f32 %v1850, 0.0
    %v2661 = vmax.f32 %v1852, 0.0
    %v2662 = vmax.f32 %v1855, 0.0
    %v2663 = vmax.f32 %v1857, 0.0
    %v2664 = vmax.f32 %v1860, 0.0
    %v2665 = vmax.f32 %v1862, 0.0
    %v2666 = vmax.f32 %v1865, 0.0
    %v2667 = vmax.f32 %v1867, 0.0
    %v2668 = vmax.f32 %v1870, 0.0
    %v2669 = vmax.f32 %v1872, 0.0
    %v2670 = vmax.f32 %v1875, 0.0
    %v2671 = vmax.f32 %v1877, 0.0
    %v2672 = vmax.f32 %v1880, 0.0
    %v2673 = vmax.f32 %v1882, 0.0
    %v2674 = vmax.f32 %v1885, 0.0
    %v2675 = vmax.f32 %v1887, 0.0
    %v2676 = vmax.f32 %v1890, 0.0
    %v2677 = vmax.f32 %v1892, 0.0
    %v2678 = vmax.f32 %v1895, 0.0
    %v2679 = vmax.f32 %v1897, 0.0
    %v2680 = vmax.f32 %v1900, 0.0
    %v2681 = vmax.f32 %v1902, 0.0
    %v2682 = vmax.f32 %v1905, 0.0
    %v2683 = vmax.f32 %v1907, 0.0
    %v2684 = vmax.f32 %v1910, 0.0
    %v2685 = vmax.f32 %v1912, 0.0
    %v2686 = vmax.f32 %v1915, 0.0
    %v2687 = vmax.f32 %v1917, 0.0
    %v2688 = vmax.f32 %v1920, 0.0
    %v2689 = vmax.f32 %v1922, 0.0
    %v2690 = vmax.f32 %v1925, 0.0
    %v2691 = vmax.f32 %v1927, 0.0
    %v2692 = vmax.f32 %v1930, 0.0
    %v2693 = vmax.f32 %v1932, 0.0
    %v2694 = vmax.f32 %v1935, 0.0
    %v2695 = vmax.f32 %v1937, 0.0
    %v2696 = vmax.f32 %v1940, 0.0
    %v2697 = vmax.f32 %v1942, 0.0
    %v2698 = vmax.f32 %v1945, 0.0
    %v2699 = vmax.f32 %v1947, 0.0
    %v2700 = vmax.f32 %v1950, 0.0
    %v2701 = vmax.f32 %v1952, 0.0
    %v2702 = vmax.f32 %v1955, 0.0
    %v2703 = vmax.f32 %v1957, 0.0
    %v2704 = vmax.f32 %v1960, 0.0
    %v2705 = vmax.f32 %v1962, 0.0
    %v2706 = vmax.f32 %v1965, 0.0
    %v2707 = vmax.f32 %v1967, 0.0
    %v2708 = vmax.f32 %v1970, 0.0
    %v2709 = vmax.f32 %v1972, 0.0
    %v2710 = vmax.f32 %v1975, 0.0
    %v2711 = vmax.f32 %v1977, 0.0
    %v2712 = vmax.f32 %v1980, 0.0
    %v2713 = vmax.f32 %v1982, 0.0
    %v2714 = vmax.f32 %v1985, 0.0
    %v2715 = vmax.f32 %v1987, 0.0
    %v2716 = vmax.f32 %v1990, 0.0
    %v2717 = vmax.f32 %v1992, 0.0
    %v2718 = vmax.f32 %v1995, 0.0
    %v2719 = vmax.f32 %v1997, 0.0
    %v2720 = vmax.f32 %v2000, 0.0
    %v2721 = vmax.f32 %v2002, 0.0
    %v2722 = vmax.f32 %v2005, 0.0
    %v2723 = vmax.f32 %v2007, 0.0
    %v2724 = vmax.f32 %v2010, 0.0
    %v2725 = vmax.f32 %v2012, 0.0
    %v2726 = vmax.f32 %v2015, 0.0
    %v2727 = vmax.f32 %v2017, 0.0
    %v2728 = vmax.f32 %v2020, 0.0
    %v2729 = vmax.f32 %v2022, 0.0
    %v2730 = vmax.f32 %v2025, 0.0
    %v2731 = vmax.f32 %v2027, 0.0
    %v2732 = vmax.f32 %v2030, 0.0
    %v2733 = vmax.f32 %v2032, 0.0
    %v2734 = vmax.f32 %v2035, 0.0
    %v2735 = vmax.f32 %v2037, 0.0
    %v2736 = vmax.f32 %v2040, 0.0
    %v2737 = vmax.f32 %v2042, 0.0
    %v2738 = vmax.f32 %v2045, 0.0
    %v2739 = vmax.f32 %v2047, 0.0
    %v2740 = vmax.f32 %v2050, 0.0
    %v2741 = vmax.f32 %v2052, 0.0
    %v2742 = vmax.f32 %v2055, 0.0
    %v2743 = vmax.f32 %v2057, 0.0
    %v2744 = vmax.f32 %v2060, 0.0
    %v2745 = vmax.f32 %v2062, 0.0
    %v2746 = vmax.f32 %v2065, 0.0
    %v2747 = vmax.f32 %v2067, 0.0
    %v2748 = vmax.f32 %v2070, 0.0
    %v2749 = vmax.f32 %v2072, 0.0
    %v2750 = vmax.f32 %v2075, 0.0
    %v2751 = vmax.f32 %v2077, 0.0
    %v2752 = vmax.f32 %v2080, 0.0
    %v2753 = vmax.f32 %v2082, 0.0
    %v2754 = vmax.f32 %v2085, 0.0
    %v2755 = vmax.f32 %v2087, 0.0
    %v2756 = vmax.f32 %v2090, 0.0
    %v2757 = vmax.f32 %v2092, 0.0
    %v2758 = vmax.f32 %v2095, 0.0
    %v2759 = vmax.f32 %v2097, 0.0
    %v2760 = vmax.f32 %v2100, 0.0
    %v2761 = vmax.f32 %v2102, 0.0
    %v2762 = vmax.f32 %v2105, 0.0
    %v2763 = vmax.f32 %v2107, 0.0
    %v2764 = vmax.f32 %v2110, 0.0
    %v2765 = vmax.f32 %v2112, 0.0
    %v2766 = vmax.f32 %v2115, 0.0
    %v2767 = vmax.f32 %v2117, 0.0
    %v2768 = vmax.f32 %v2120, 0.0
    %v2769 = vmax.f32 %v2122, 0.0
    %v2770 = vmax.f32 %v2125, 0.0
    %v2771 = vmax.f32 %v2127, 0.0
    %v2772 = vmax.f32 %v2130, 0.0
    %v2773 = vmax.f32 %v2132, 0.0
    %v2774 = vmax.f32 %v2135, 0.0
    %v2775 = vmax.f32 %v2137, 0.0
    %v2776 = vmax.f32 %v2140, 0.0
    %v2777 = vmax.f32 %v2142, 0.0
    %v2778 = vmax.f32 %v2145, 0.0
    %v2779 = vmax.f32 %v2147, 0.0
    %v2780 = vmax.f32 %v2150, 0.0
    %v2781 = vmax.f32 %v2152, 0.0
    %v2782 = vmax.f32 %v2155, 0.0
    %v2783 = vmax.f32 %v2157, 0.0
    %v2784 = vmax.f32 %v2160, 0.0
    %v2785 = vmax.f32 %v2162, 0.0
    %v2786 = vmax.f32 %v2165, 0.0
    %v2787 = vmax.f32 %v2167, 0.0
    %v2788 = vmax.f32 %v2170, 0.0
    %v2789 = vmax.f32 %v2172, 0.0
    %v2790 = vmax.f32 %v2175, 0.0
    %v2791 = vmax.f32 %v2177, 0.0
    %v2792 = vmax.f32 %v2180, 0.0
    %v2793 = vmax.f32 %v2182, 0.0
    %v2794 = vmax.f32 %v2185, 0.0
    %v2795 = vmax.f32 %v2187, 0.0
    %v2796 = vmax.f32 %v2190, 0.0
    %v2797 = vmax.f32 %v2192, 0.0
    %v2798 = vmax.f32 %v2195, 0.0
    %v2799 = vmax.f32 %v2197, 0.0
    %v2800 = vmax.f32 %v2200, 0.0
    %v2801 = vmax.f32 %v2202, 0.0
    %v2802 = vmax.f32 %v2205, 0.0
    %v2803 = vmax.f32 %v2207, 0.0
    %v2804 = vmax.f32 %v2210, 0.0
    %v2805 = vmax.f32 %v2212, 0.0
    %v2806 = vmax.f32 %v2215, 0.0
    %v2807 = vmax.f32 %v2217, 0.0
    %v2808 = vmax.f32 %v2220, 0.0
    %v2809 = vmax.f32 %v2222, 0.0
    %v2810 = vmax.f32 %v2225, 0.0
    %v2811 = vmax.f32 %v2227, 0.0
    %v2812 = vmax.f32 %v2230, 0.0
    %v2813 = vmax.f32 %v2232, 0.0
    %v2814 = vmax.f32 %v2235, 0.0
    %v2815 = vmax.f32 %v2237, 0.0
    %v2816 = vmax.f32 %v2240, 0.0
    %v2817 = vmax.f32 %v2242, 0.0
    %v2818 = vmax.f32 %v2245, 0.0
    %v2819 = vmax.f32 %v2247, 0.0
    %v2820 = vmax.f32 %v2250, 0.0
    %v2821 = vmax.f32 %v2252, 0.0
    %v2822 = vmax.f32 %v2255, 0.0
    %v2823 = vmax.f32 %v2257, 0.0
    %v2824 = vmax.f32 %v2260, 0.0
    %v2825 = vmax.f32 %v2262, 0.0
    %v2826 = vmax.f32 %v2265, 0.0
    %v2827 = vmax.f32 %v2267, 0.0
    %v2828 = vmax.f32 %v2270, 0.0
    %v2829 = vmax.f32 %v2272, 0.0
    %v2830 = vmax.f32 %v2275, 0.0
    %v2831 = vmax.f32 %v2277, 0.0
    %v2832 = vmax.f32 %v2280, 0.0
    %v2833 = vmax.f32 %v2282, 0.0
    %v2834 = vmax.f32 %v2285, 0.0
    %v2835 = vmax.f32 %v2287, 0.0
    %v2836 = vmax.f32 %v2290, 0.0
    %v2837 = vmax.f32 %v2292, 0.0
    %v2838 = vmax.f32 %v2295, 0.0
    %v2839 = vmax.f32 %v2297, 0.0
    %v2840 = vmax.f32 %v2300, 0.0
    %v2841 = vmax.f32 %v2302, 0.0
    %v2842 = vmax.f32 %v2305, 0.0
    %v2843 = vmax.f32 %v2307, 0.0
    %v2844 = vmax.f32 %v2310, 0.0
    %v2845 = vmax.f32 %v2312, 0.0
    %v2846 = vmax.f32 %v2315, 0.0
    %v2847 = vmax.f32 %v2317, 0.0
    %v2848 = vmax.f32 %v2320, 0.0
    %v2849 = vmax.f32 %v2322, 0.0
    %v2850 = vmax.f32 %v2325, 0.0
    %v2851 = vmax.f32 %v2327, 0.0
    %v2852 = vmax.f32 %v2330, 0.0
    %v2853 = vmax.f32 %v2332, 0.0
    %v2854 = vmax.f32 %v2335, 0.0
    %v2855 = vmax.f32 %v2337, 0.0
    %v2856 = vmax.f32 %v2340, 0.0
    %v2857 = vmax.f32 %v2342, 0.0
    %v2858 = vmax.f32 %v2345, 0.0
    %v2859 = vmax.f32 %v2347, 0.0
    %v2860 = vmax.f32 %v2350, 0.0
    %v2861 = vmax.f32 %v2352, 0.0
    %v2862 = vmax.f32 %v2355, 0.0
    %v2863 = vmax.f32 %v2357, 0.0
    %v2864 = vmax.f32 %v2360, 0.0
    %v2865 = vmax.f32 %v2362, 0.0
    %v2866 = vmax.f32 %v2365, 0.0
    %v2867 = vmax.f32 %v2367, 0.0
    %v2868 = vmax.f32 %v2370, 0.0
    %v2869 = vmax.f32 %v2372, 0.0
    %v2870 = vmax.f32 %v2375, 0.0
    %v2871 = vmax.f32 %v2377, 0.0
    %v2872 = vmax.f32 %v2380, 0.0
    %v2873 = vmax.f32 %v2382, 0.0
    %v2874 = vmax.f32 %v2385, 0.0
    %v2875 = vmax.f32 %v2387, 0.0
    %v2876 = vmax.f32 %v2390, 0.0
    %v2877 = vmax.f32 %v2392, 0.0
    %v2878 = vmax.f32 %v2395, 0.0
    %v2879 = vmax.f32 %v2397, 0.0
    %v2880 = vmax.f32 %v2400, 0.0
    %v2881 = vmax.f32 %v2402, 0.0
    %v2882 = vmax.f32 %v2405, 0.0
    %v2883 = vmax.f32 %v2407, 0.0
    %v2884 = vmax.f32 %v2410, 0.0
    %v2885 = vmax.f32 %v2412, 0.0
    %v2886 = vmax.f32 %v2415, 0.0
    %v2887 = vmax.f32 %v2417, 0.0
    %v2888 = vmax.f32 %v2420, 0.0
    %v2889 = vmax.f32 %v2422, 0.0
    %v2890 = vmax.f32 %v2425, 0.0
    %v2891 = vmax.f32 %v2427, 0.0
    %v2892 = vmax.f32 %v2430, 0.0
    %v2893 = vmax.f32 %v2432, 0.0
    %v2894 = vmax.f32 %v2435, 0.0
    %v2895 = vmax.f32 %v2437, 0.0
    %v2896 = vmax.f32 %v2440, 0.0
    %v2897 = vmax.f32 %v2442, 0.0
    %v2898 = vmax.f32 %v2445, 0.0
    %v2899 = vmax.f32 %v2447, 0.0
    %v2900 = vmax.f32 %v2450, 0.0
    %v2901 = vmax.f32 %v2452, 0.0
    %v2902 = vmax.f32 %v2455, 0.0
    %v2903 = vmax.f32 %v2457, 0.0
    %v2904 = vmax.f32 %v2460, 0.0
    %v2905 = vmax.f32 %v2462, 0.0
    %v2906 = vmax.f32 %v2465, 0.0
    %v2907 = vmax.f32 %v2467, 0.0
    %v2908 = vmax.f32 %v2470, 0.0
    %v2909 = vmax.f32 %v2472, 0.0
    %v2910 = vmax.f32 %v2475, 0.0
    %v2911 = vmax.f32 %v2477, 0.0
    %v2912 = vmax.f32 %v2480, 0.0
    %v2913 = vmax.f32 %v2482, 0.0
    %v2914 = vmax.f32 %v2485, 0.0
    %v2915 = vmax.f32 %v2487, 0.0
    %v2916 = vmax.f32 %v2490, 0.0
    %v2917 = vmax.f32 %v2492, 0.0
    %v2918 = vmax.f32 %v2495, 0.0
    %v2919 = vmax.f32 %v2497, 0.0
    %v2920 = vmax.f32 %v2500, 0.0
    %v2921 = vmax.f32 %v2502, 0.0
    %v2922 = vmax.f32 %v2505, 0.0
    %v2923 = vmax.f32 %v2507, 0.0
    %v2924 = vmax.f32 %v2510, 0.0
    %v2925 = vmax.f32 %v2512, 0.0
    %v2926 = vmax.f32 %v2515, 0.0
    %v2927 = vmax.f32 %v2517, 0.0
    %v2928 = vmax.f32 %v2520, 0.0
    %v2929 = vmax.f32 %v2522, 0.0
    %v2930 = vmax.f32 %v2525, 0.0
    %v2931 = vmax.f32 %v2527, 0.0
    %v2932 = vmax.f32 %v2530, 0.0
    %v2933 = vmax.f32 %v2532, 0.0
    %v2934 = vmax.f32 %v2535, 0.0
    %v2935 = vmax.f32 %v2537, 0.0
    %v2936 = vmax.f32 %v2540, 0.0
    %v2937 = vmax.f32 %v2542, 0.0
    %v2938 = vmax.f32 %v2545, 0.0
    %v2939 = vmax.f32 %v2547, 0.0
    %v2940 = vmax.f32 %v2550, 0.0
    %v2941 = vmax.f32 %v2552, 0.0
    %v2942 = vmax.f32 %v2555, 0.0
    %v2943 = vmax.f32 %v2557, 0.0
    %v2944 = vmax.f32 %v2560, 0.0
    %v2945 = vmax.f32 %v2562, 0.0
    %v2946 = vmax.f32 %v2565, 0.0
    %v2947 = vmax.f32 %v2567, 0.0
    %v2948 = vmax.f32 %v2570, 0.0
    %v2949 = vmax.f32 %v2572, 0.0
    %v2950 = vmax.f32 %v2575, 0.0
    %v2951 = vmax.f32 %v2577, 0.0
    %v2952 = vmax.f32 %v2580, 0.0
    %v2953 = vmax.f32 %v2582, 0.0
    %v2954 = vmax.f32 %v2585, 0.0
    %v2955 = vmax.f32 %v2587, 0.0
    %v2956 = vmax.f32 %v2590, 0.0
    %v2957 = vmax.f32 %v2592, 0.0
    %v2958 = vmax.f32 %v2595, 0.0
    %v2959 = vmax.f32 %v2597, 0.0
    %v2960 = vmax.f32 %v2600, 0.0
    %v2961 = vmax.f32 %v2602, 0.0
    %v2962 = vmax.f32 %v2605, 0.0
    %v2963 = vmax.f32 %v2607, 0.0
    %v2964 = vmax.f32 %v2610, 0.0
    %v2965 = vmax.f32 %v2612, 0.0
    %v2966 = vmax.f32 %v2615, 0.0
    %v2967 = vmax.f32 %v2617, 0.0
    %v2968 = vmax.f32 %v2620, 0.0
    %v2969 = vmax.f32 %v2622, 0.0
    %v2970 = vmax.f32 %v2625, 0.0
    %v2971 = vpack.c.bf16 %v2628, %v2628
    %v2972 = vpack.c.bf16 %v2629, %v2629
    %v2973 = vpack.c.bf16 %v2630, %v2630
    %v2974 = vpack.c.bf16 %v2631, %v2631
    %v2975 = vpack.c.bf16 %v2632, %v2632
    %v2976 = vpack.c.bf16 %v2633, %v2633
    %v2977 = vpack.c.bf16 %v2634, %v2634
    %v2978 = vpack.c.bf16 %v2635, %v2635
    %v2979 = vpack.c.bf16 %v2636, %v2636
    %v2980 = vpack.c.bf16 %v2637, %v2637
    %v2981 = vpack.c.bf16 %v2638, %v2638
    %v2982 = vpack.c.bf16 %v2639, %v2639
    %v2983 = vpack.c.bf16 %v2640, %v2640
    %v2984 = vpack.c.bf16 %v2641, %v2641
    %v2985 = vpack.c.bf16 %v2642, %v2642
    %v2986 = vpack.c.bf16 %v2643, %v2643
    %v2987 = vpack.c.bf16 %v2644, %v2644
    %v2988 = vpack.c.bf16 %v2645, %v2645
    %v2989 = vpack.c.bf16 %v2646, %v2646
    %v2990 = vpack.c.bf16 %v2647, %v2647
    %v2991 = vpack.c.bf16 %v2648, %v2648
    %v2992 = vpack.c.bf16 %v2649, %v2649
    %v2993 = vpack.c.bf16 %v2650, %v2650
    %v2994 = vpack.c.bf16 %v2651, %v2651
    %v2995 = vpack.c.bf16 %v2652, %v2652
    %v2996 = vpack.c.bf16 %v2653, %v2653
    %v2997 = vpack.c.bf16 %v2654, %v2654
    %v2998 = vpack.c.bf16 %v2655, %v2655
    %v2999 = vpack.c.bf16 %v2656, %v2656
    %v3000 = vpack.c.bf16 %v2657, %v2657
    %v3001 = vpack.c.bf16 %v2658, %v2658
    %v3002 = vpack.c.bf16 %v2659, %v2659
    %v3003 = vpack.c.bf16 %v2660, %v2660
    %v3004 = vpack.c.bf16 %v2661, %v2661
    %v3005 = vpack.c.bf16 %v2662, %v2662
    %v3006 = vpack.c.bf16 %v2663, %v2663
    %v3007 = vpack.c.bf16 %v2664, %v2664
    %v3008 = vpack.c.bf16 %v2665, %v2665
    %v3009 = vpack.c.bf16 %v2666, %v2666
    %v3010 = vpack.c.bf16 %v2667, %v2667
    %v3011 = vpack.c.bf16 %v2668, %v2668
    %v3012 = vpack.c.bf16 %v2669, %v2669
    %v3013 = vpack.c.bf16 %v2670, %v2670
    %v3014 = vpack.c.bf16 %v2671, %v2671
    %v3015 = vpack.c.bf16 %v2672, %v2672
    %v3016 = vpack.c.bf16 %v2673, %v2673
    %v3017 = vpack.c.bf16 %v2674, %v2674
    %v3018 = vpack.c.bf16 %v2675, %v2675
    %v3019 = vpack.c.bf16 %v2676, %v2676
    %v3020 = vpack.c.bf16 %v2677, %v2677
    %v3021 = vpack.c.bf16 %v2678, %v2678
    %v3022 = vpack.c.bf16 %v2679, %v2679
    %v3023 = vpack.c.bf16 %v2680, %v2680
    %v3024 = vpack.c.bf16 %v2681, %v2681
    %v3025 = vpack.c.bf16 %v2682, %v2682
    %v3026 = vpack.c.bf16 %v2683, %v2683
    %v3027 = vpack.c.bf16 %v2684, %v2684
    %v3028 = vpack.c.bf16 %v2685, %v2685
    %v3029 = vpack.c.bf16 %v2686, %v2686
    %v3030 = vpack.c.bf16 %v2687, %v2687
    %v3031 = vpack.c.bf16 %v2688, %v2688
    %v3032 = vpack.c.bf16 %v2689, %v2689
    %v3033 = vpack.c.bf16 %v2690, %v2690
    %v3034 = vpack.c.bf16 %v2691, %v2691
    %v3035 = vpack.c.bf16 %v2692, %v2692
    %v3036 = vpack.c.bf16 %v2693, %v2693
    %v3037 = vpack.c.bf16 %v2694, %v2694
    %v3038 = vpack.c.bf16 %v2695, %v2695
    %v3039 = vpack.c.bf16 %v2696, %v2696
    %v3040 = vpack.c.bf16 %v2697, %v2697
    %v3041 = vpack.c.bf16 %v2698, %v2698
    %v3042 = vpack.c.bf16 %v2699, %v2699
    %v3043 = vpack.c.bf16 %v2700, %v2700
    %v3044 = vpack.c.bf16 %v2701, %v2701
    %v3045 = vpack.c.bf16 %v2702, %v2702
    %v3046 = vpack.c.bf16 %v2703, %v2703
    %v3047 = vpack.c.bf16 %v2704, %v2704
    %v3048 = vpack.c.bf16 %v2705, %v2705
    %v3049 = vpack.c.bf16 %v2706, %v2706
    %v3050 = vpack.c.bf16 %v2707, %v2707
    %v3051 = vpack.c.bf16 %v2708, %v2708
    %v3052 = vpack.c.bf16 %v2709, %v2709
    %v3053 = vpack.c.bf16 %v2710, %v2710
    %v3054 = vpack.c.bf16 %v2711, %v2711
    %v3055 = vpack.c.bf16 %v2712, %v2712
    %v3056 = vpack.c.bf16 %v2713, %v2713
    %v3057 = vpack.c.bf16 %v2714, %v2714
    %v3058 = vpack.c.bf16 %v2715, %v2715
    %v3059 = vpack.c.bf16 %v2716, %v2716
    %v3060 = vpack.c.bf16 %v2717, %v2717
    %v3061 = vpack.c.bf16 %v2718, %v2718
    %v3062 = vpack.c.bf16 %v2719, %v2719
    %v3063 = vpack.c.bf16 %v2720, %v2720
    %v3064 = vpack.c.bf16 %v2721, %v2721
    %v3065 = vpack.c.bf16 %v2722, %v2722
    %v3066 = vpack.c.bf16 %v2723, %v2723
    %v3067 = vpack.c.bf16 %v2724, %v2724
    %v3068 = vpack.c.bf16 %v2725, %v2725
    %v3069 = vpack.c.bf16 %v2726, %v2726
    %v3070 = vpack.c.bf16 %v2727, %v2727
    %v3071 = vpack.c.bf16 %v2728, %v2728
    %v3072 = vpack.c.bf16 %v2729, %v2729
    %v3073 = vpack.c.bf16 %v2730, %v2730
    %v3074 = vpack.c.bf16 %v2731, %v2731
    %v3075 = vpack.c.bf16 %v2732, %v2732
    %v3076 = vpack.c.bf16 %v2733, %v2733
    %v3077 = vpack.c.bf16 %v2734, %v2734
    %v3078 = vpack.c.bf16 %v2735, %v2735
    %v3079 = vpack.c.bf16 %v2736, %v2736
    %v3080 = vpack.c.bf16 %v2737, %v2737
    %v3081 = vpack.c.bf16 %v2738, %v2738
    %v3082 = vpack.c.bf16 %v2739, %v2739
    %v3083 = vpack.c.bf16 %v2740, %v2740
    %v3084 = vpack.c.bf16 %v2741, %v2741
    %v3085 = vpack.c.bf16 %v2742, %v2742
    %v3086 = vpack.c.bf16 %v2743, %v2743
    %v3087 = vpack.c.bf16 %v2744, %v2744
    %v3088 = vpack.c.bf16 %v2745, %v2745
    %v3089 = vpack.c.bf16 %v2746, %v2746
    %v3090 = vpack.c.bf16 %v2747, %v2747
    %v3091 = vpack.c.bf16 %v2748, %v2748
    %v3092 = vpack.c.bf16 %v2749, %v2749
    %v3093 = vpack.c.bf16 %v2750, %v2750
    %v3094 = vpack.c.bf16 %v2751, %v2751
    %v3095 = vpack.c.bf16 %v2752, %v2752
    %v3096 = vpack.c.bf16 %v2753, %v2753
    %v3097 = vpack.c.bf16 %v2754, %v2754
    %v3098 = vpack.c.bf16 %v2755, %v2755
    %v3099 = vpack.c.bf16 %v2756, %v2756
    %v3100 = vpack.c.bf16 %v2757, %v2757
    %v3101 = vpack.c.bf16 %v2758, %v2758
    %v3102 = vpack.c.bf16 %v2759, %v2759
    %v3103 = vpack.c.bf16 %v2760, %v2760
    %v3104 = vpack.c.bf16 %v2761, %v2761
    %v3105 = vpack.c.bf16 %v2762, %v2762
    %v3106 = vpack.c.bf16 %v2763, %v2763
    %v3107 = vpack.c.bf16 %v2764, %v2764
    %v3108 = vpack.c.bf16 %v2765, %v2765
    %v3109 = vpack.c.bf16 %v2766, %v2766
    %v3110 = vpack.c.bf16 %v2767, %v2767
    %v3111 = vpack.c.bf16 %v2768, %v2768
    %v3112 = vpack.c.bf16 %v2769, %v2769
    %v3113 = vpack.c.bf16 %v2770, %v2770
    %v3114 = vpack.c.bf16 %v2771, %v2771
    %v3115 = vpack.c.bf16 %v2772, %v2772
    %v3116 = vpack.c.bf16 %v2773, %v2773
    %v3117 = vpack.c.bf16 %v2774, %v2774
    %v3118 = vpack.c.bf16 %v2775, %v2775
    %v3119 = vpack.c.bf16 %v2776, %v2776
    %v3120 = vpack.c.bf16 %v2777, %v2777
    %v3121 = vpack.c.bf16 %v2778, %v2778
    %v3122 = vpack.c.bf16 %v2779, %v2779
    %v3123 = vpack.c.bf16 %v2780, %v2780
    %v3124 = vpack.c.bf16 %v2781, %v2781
    %v3125 = vpack.c.bf16 %v2782, %v2782
    %v3126 = vpack.c.bf16 %v2783, %v2783
    %v3127 = vpack.c.bf16 %v2784, %v2784
    %v3128 = vpack.c.bf16 %v2785, %v2785
    %v3129 = vpack.c.bf16 %v2786, %v2786
    %v3130 = vpack.c.bf16 %v2787, %v2787
    %v3131 = vpack.c.bf16 %v2788, %v2788
    %v3132 = vpack.c.bf16 %v2789, %v2789
    %v3133 = vpack.c.bf16 %v2790, %v2790
    %v3134 = vpack.c.bf16 %v2791, %v2791
    %v3135 = vpack.c.bf16 %v2792, %v2792
    %v3136 = vpack.c.bf16 %v2793, %v2793
    %v3137 = vpack.c.bf16 %v2794, %v2794
    %v3138 = vpack.c.bf16 %v2795, %v2795
    %v3139 = vpack.c.bf16 %v2796, %v2796
    %v3140 = vpack.c.bf16 %v2797, %v2797
    %v3141 = vpack.c.bf16 %v2798, %v2798
    %v3142 = vpack.c.bf16 %v2799, %v2799
    %v3143 = vpack.c.bf16 %v2800, %v2800
    %v3144 = vpack.c.bf16 %v2801, %v2801
    %v3145 = vpack.c.bf16 %v2802, %v2802
    %v3146 = vpack.c.bf16 %v2803, %v2803
    %v3147 = vpack.c.bf16 %v2804, %v2804
    %v3148 = vpack.c.bf16 %v2805, %v2805
    %v3149 = vpack.c.bf16 %v2806, %v2806
    %v3150 = vpack.c.bf16 %v2807, %v2807
    %v3151 = vpack.c.bf16 %v2808, %v2808
    %v3152 = vpack.c.bf16 %v2809, %v2809
    %v3153 = vpack.c.bf16 %v2810, %v2810
    %v3154 = vpack.c.bf16 %v2811, %v2811
    %v3155 = vpack.c.bf16 %v2812, %v2812
    %v3156 = vpack.c.bf16 %v2813, %v2813
    %v3157 = vpack.c.bf16 %v2814, %v2814
    %v3158 = vpack.c.bf16 %v2815, %v2815
    %v3159 = vpack.c.bf16 %v2816, %v2816
    %v3160 = vpack.c.bf16 %v2817, %v2817
    %v3161 = vpack.c.bf16 %v2818, %v2818
    %v3162 = vpack.c.bf16 %v2819, %v2819
    %v3163 = vpack.c.bf16 %v2820, %v2820
    %v3164 = vpack.c.bf16 %v2821, %v2821
    %v3165 = vpack.c.bf16 %v2822, %v2822
    %v3166 = vpack.c.bf16 %v2823, %v2823
    %v3167 = vpack.c.bf16 %v2824, %v2824
    %v3168 = vpack.c.bf16 %v2825, %v2825
    %v3169 = vpack.c.bf16 %v2826, %v2826
    %v3170 = vpack.c.bf16 %v2827, %v2827
    %v3171 = vpack.c.bf16 %v2828, %v2828
    %v3172 = vpack.c.bf16 %v2829, %v2829
    %v3173 = vpack.c.bf16 %v2830, %v2830
    %v3174 = vpack.c.bf16 %v2831, %v2831
    %v3175 = vpack.c.bf16 %v2832, %v2832
    %v3176 = vpack.c.bf16 %v2833, %v2833
    %v3177 = vpack.c.bf16 %v2834, %v2834
    %v3178 = vpack.c.bf16 %v2835, %v2835
    %v3179 = vpack.c.bf16 %v2836, %v2836
    %v3180 = vpack.c.bf16 %v2837, %v2837
    %v3181 = vpack.c.bf16 %v2838, %v2838
    %v3182 = vpack.c.bf16 %v2839, %v2839
    %v3183 = vpack.c.bf16 %v2840, %v2840
    %v3184 = vpack.c.bf16 %v2841, %v2841
    %v3185 = vpack.c.bf16 %v2842, %v2842
    %v3186 = vpack.c.bf16 %v2843, %v2843
    %v3187 = vpack.c.bf16 %v2844, %v2844
    %v3188 = vpack.c.bf16 %v2845, %v2845
    %v3189 = vpack.c.bf16 %v2846, %v2846
    %v3190 = vpack.c.bf16 %v2847, %v2847
    %v3191 = vpack.c.bf16 %v2848, %v2848
    %v3192 = vpack.c.bf16 %v2849, %v2849
    %v3193 = vpack.c.bf16 %v2850, %v2850
    %v3194 = vpack.c.bf16 %v2851, %v2851
    %v3195 = vpack.c.bf16 %v2852, %v2852
    %v3196 = vpack.c.bf16 %v2853, %v2853
    %v3197 = vpack.c.bf16 %v2854, %v2854
    %v3198 = vpack.c.bf16 %v2855, %v2855
    %v3199 = vpack.c.bf16 %v2856, %v2856
    %v3200 = vpack.c.bf16 %v2857, %v2857
    %v3201 = vpack.c.bf16 %v2858, %v2858
    %v3202 = vpack.c.bf16 %v2859, %v2859
    %v3203 = vpack.c.bf16 %v2860, %v2860
    %v3204 = vpack.c.bf16 %v2861, %v2861
    %v3205 = vpack.c.bf16 %v2862, %v2862
    %v3206 = vpack.c.bf16 %v2863, %v2863
    %v3207 = vpack.c.bf16 %v2864, %v2864
    %v3208 = vpack.c.bf16 %v2865, %v2865
    %v3209 = vpack.c.bf16 %v2866, %v2866
    %v3210 = vpack.c.bf16 %v2867, %v2867
    %v3211 = vpack.c.bf16 %v2868, %v2868
    %v3212 = vpack.c.bf16 %v2869, %v2869
    %v3213 = vpack.c.bf16 %v2870, %v2870
    %v3214 = vpack.c.bf16 %v2871, %v2871
    %v3215 = vpack.c.bf16 %v2872, %v2872
    %v3216 = vpack.c.bf16 %v2873, %v2873
    %v3217 = vpack.c.bf16 %v2874, %v2874
    %v3218 = vpack.c.bf16 %v2875, %v2875
    %v3219 = vpack.c.bf16 %v2876, %v2876
    %v3220 = vpack.c.bf16 %v2877, %v2877
    %v3221 = vpack.c.bf16 %v2878, %v2878
    %v3222 = vpack.c.bf16 %v2879, %v2879
    %v3223 = vpack.c.bf16 %v2880, %v2880
    %v3224 = vpack.c.bf16 %v2881, %v2881
    %v3225 = vpack.c.bf16 %v2882, %v2882
    %v3226 = vpack.c.bf16 %v2883, %v2883
    %v3227 = vpack.c.bf16 %v2884, %v2884
    %v3228 = vpack.c.bf16 %v2885, %v2885
    %v3229 = vpack.c.bf16 %v2886, %v2886
    %v3230 = vpack.c.bf16 %v2887, %v2887
    %v3231 = vpack.c.bf16 %v2888, %v2888
    %v3232 = vpack.c.bf16 %v2889, %v2889
    %v3233 = vpack.c.bf16 %v2890, %v2890
    %v3234 = vpack.c.bf16 %v2891, %v2891
    %v3235 = vpack.c.bf16 %v2892, %v2892
    %v3236 = vpack.c.bf16 %v2893, %v2893
    %v3237 = vpack.c.bf16 %v2894, %v2894
    %v3238 = vpack.c.bf16 %v2895, %v2895
    %v3239 = vpack.c.bf16 %v2896, %v2896
    %v3240 = vpack.c.bf16 %v2897, %v2897
    %v3241 = vpack.c.bf16 %v2898, %v2898
    %v3242 = vpack.c.bf16 %v2899, %v2899
    %v3243 = vpack.c.bf16 %v2900, %v2900
    %v3244 = vpack.c.bf16 %v2901, %v2901
    %v3245 = vpack.c.bf16 %v2902, %v2902
    %v3246 = vpack.c.bf16 %v2903, %v2903
    %v3247 = vpack.c.bf16 %v2904, %v2904
    %v3248 = vpack.c.bf16 %v2905, %v2905
    %v3249 = vpack.c.bf16 %v2906, %v2906
    %v3250 = vpack.c.bf16 %v2907, %v2907
    %v3251 = vpack.c.bf16 %v2908, %v2908
    %v3252 = vpack.c.bf16 %v2909, %v2909
    %v3253 = vpack.c.bf16 %v2910, %v2910
    %v3254 = vpack.c.bf16 %v2911, %v2911
    %v3255 = vpack.c.bf16 %v2912, %v2912
    %v3256 = vpack.c.bf16 %v2913, %v2913
    %v3257 = vpack.c.bf16 %v2914, %v2914
    %v3258 = vpack.c.bf16 %v2915, %v2915
    %v3259 = vpack.c.bf16 %v2916, %v2916
    %v3260 = vpack.c.bf16 %v2917, %v2917
    %v3261 = vpack.c.bf16 %v2918, %v2918
    %v3262 = vpack.c.bf16 %v2919, %v2919
    %v3263 = vpack.c.bf16 %v2920, %v2920
    %v3264 = vpack.c.bf16 %v2921, %v2921
    %v3265 = vpack.c.bf16 %v2922, %v2922
    %v3266 = vpack.c.bf16 %v2923, %v2923
    %v3267 = vpack.c.bf16 %v2924, %v2924
    %v3268 = vpack.c.bf16 %v2925, %v2925
    %v3269 = vpack.c.bf16 %v2926, %v2926
    %v3270 = vpack.c.bf16 %v2927, %v2927
    %v3271 = vpack.c.bf16 %v2928, %v2928
    %v3272 = vpack.c.bf16 %v2929, %v2929
    %v3273 = vpack.c.bf16 %v2930, %v2930
    %v3274 = vpack.c.bf16 %v2931, %v2931
    %v3275 = vpack.c.bf16 %v2932, %v2932
    %v3276 = vpack.c.bf16 %v2933, %v2933
    %v3277 = vpack.c.bf16 %v2934, %v2934
    %v3278 = vpack.c.bf16 %v2935, %v2935
    %v3279 = vpack.c.bf16 %v2936, %v2936
    %v3280 = vpack.c.bf16 %v2937, %v2937
    %v3281 = vpack.c.bf16 %v2938, %v2938
    %v3282 = vpack.c.bf16 %v2939, %v2939
    %v3283 = vpack.c.bf16 %v2940, %v2940
    %v3284 = vpack.c.bf16 %v2941, %v2941
    %v3285 = vpack.c.bf16 %v2942, %v2942
    %v3286 = vpack.c.bf16 %v2943, %v2943
    %v3287 = vpack.c.bf16 %v2944, %v2944
    %v3288 = vpack.c.bf16 %v2945, %v2945
    %v3289 = vpack.c.bf16 %v2946, %v2946
    %v3290 = vpack.c.bf16 %v2947, %v2947
    %v3291 = vpack.c.bf16 %v2948, %v2948
    %v3292 = vpack.c.bf16 %v2949, %v2949
    %v3293 = vpack.c.bf16 %v2950, %v2950
    %v3294 = vpack.c.bf16 %v2951, %v2951
    %v3295 = vpack.c.bf16 %v2952, %v2952
    %v3296 = vpack.c.bf16 %v2953, %v2953
    %v3297 = vpack.c.bf16 %v2954, %v2954
    %v3298 = vpack.c.bf16 %v2955, %v2955
    %v3299 = vpack.c.bf16 %v2956, %v2956
    %v3300 = vpack.c.bf16 %v2957, %v2957
    %v3301 = vpack.c.bf16 %v2958, %v2958
    %v3302 = vpack.c.bf16 %v2959, %v2959
    %v3303 = vpack.c.bf16 %v2960, %v2960
    %v3304 = vpack.c.bf16 %v2961, %v2961
    %v3305 = vpack.c.bf16 %v2962, %v2962
    %v3306 = vpack.c.bf16 %v2963, %v2963
    %v3307 = vpack.c.bf16 %v2964, %v2964
    %v3308 = vpack.c.bf16 %v2965, %v2965
    %v3309 = vpack.c.bf16 %v2966, %v2966
    %v3310 = vpack.c.bf16 %v2967, %v2967
    %v3311 = vpack.c.bf16 %v2968, %v2968
    %v3312 = vpack.c.bf16 %v2969, %v2969
    %v3313 = vpack.c.bf16 %v2970, %v2970
    %3314 = vst [vmem:[#allocation2] sm:$0xf] %v2971
    %3315 = vst [vmem:[#allocation2 + $0x4] sm:$0xf] %v2972
    %3316 = vst [vmem:[#allocation2 + $0x8] sm:$0xf] %v2973
    %3317 = vst [vmem:[#allocation2 + $0xc] sm:$0xf] %v2974
    %3318 = vst [vmem:[#allocation2 + $0x10] sm:$0xf] %v2975
    %3319 = vst [vmem:[#allocation2 + $0x14] sm:$0xf] %v2976
    %3320 = vst [vmem:[#allocation2 + $0x18] sm:$0xf] %v2977
    %3321 = vst [vmem:[#allocation2 + $0x1c] sm:$0xf] %v2978
    %3322 = vst [vmem:[#allocation2 + $0x20] sm:$0xf] %v2979
    %3323 = vst [vmem:[#allocation2 + $0x24] sm:$0xf] %v2980
    %3324 = vst [vmem:[#allocation2 + $0x28] sm:$0xf] %v2981
    %3325 = vst [vmem:[#allocation2 + $0x2c] sm:$0xf] %v2982
    %3326 = vst [vmem:[#allocation2 + $0x30] sm:$0xf] %v2983
    %3327 = vst [vmem:[#allocation2 + $0x34] sm:$0xf] %v2984
    %3328 = vst [vmem:[#allocation2 + $0x38] sm:$0xf] %v2985
    %3329 = vst [vmem:[#allocation2 + $0x3c] sm:$0xf] %v2986
    %3330 = vst [vmem:[#allocation2 + $0x40] sm:$0xf] %v2987
    %3331 = vst [vmem:[#allocation2 + $0x44] sm:$0xf] %v2988
    %3332 = vst [vmem:[#allocation2 + $0x48] sm:$0xf] %v2989
    %3333 = vst [vmem:[#allocation2 + $0x4c] sm:$0xf] %v2990
    %3334 = vst [vmem:[#allocation2 + $0x50] sm:$0xf] %v2991
    %3335 = vst [vmem:[#allocation2 + $0x54] sm:$0xf] %v2992
    %3336 = vst [vmem:[#allocation2 + $0x58] sm:$0xf] %v2993
    %3337 = vst [vmem:[#allocation2 + $0x5c] sm:$0xf] %v2994
    %3338 = vst [vmem:[#allocation2 + $0x60] sm:$0xf] %v2995
    %3339 = vst [vmem:[#allocation2 + $0x64] sm:$0xf] %v2996
    %3340 = vst [vmem:[#allocation2 + $0x68] sm:$0xf] %v2997
    %3341 = vst [vmem:[#allocation2 + $0x6c] sm:$0xf] %v2998
    %3342 = vst [vmem:[#allocation2 + $0x70] sm:$0xf] %v2999
    %3343 = vst [vmem:[#allocation2 + $0x74] sm:$0xf] %v3000
    %3344 = vst [vmem:[#allocation2 + $0x78] sm:$0xf] %v3001
    %3345 = vst [vmem:[#allocation2 + $0x7c] sm:$0xf] %v3002
    %3346 = vst [vmem:[#allocation2 + $0x80] sm:$0xf] %v3003
    %3347 = vst [vmem:[#allocation2 + $0x84] sm:$0xf] %v3004
    %3348 = vst [vmem:[#allocation2 + $0x88] sm:$0xf] %v3005
    %3349 = vst [vmem:[#allocation2 + $0x8c] sm:$0xf] %v3006
    %3350 = vst [vmem:[#allocation2 + $0x90] sm:$0xf] %v3007
    %3351 = vst [vmem:[#allocation2 + $0x94] sm:$0xf] %v3008
    %3352 = vst [vmem:[#allocation2 + $0x98] sm:$0xf] %v3009
    %3353 = vst [vmem:[#allocation2 + $0x9c] sm:$0xf] %v3010
    %3354 = vst [vmem:[#allocation2 + $0xa0] sm:$0xf] %v3011
    %3355 = vst [vmem:[#allocation2 + $0xa4] sm:$0xf] %v3012
    %3356 = vst [vmem:[#allocation2 + $0xa8] sm:$0xf] %v3013
    %3357 = vst [vmem:[#allocation2 + $0xac] sm:$0xf] %v3014
    %3358 = vst [vmem:[#allocation2 + $0xb0] sm:$0xf] %v3015
    %3359 = vst [vmem:[#allocation2 + $0xb4] sm:$0xf] %v3016
    %3360 = vst [vmem:[#allocation2 + $0xb8] sm:$0xf] %v3017
    %3361 = vst [vmem:[#allocation2 + $0xbc] sm:$0xf] %v3018
    %3362 = vst [vmem:[#allocation2 + $0xc0] sm:$0xf] %v3019
    %3363 = vst [vmem:[#allocation2 + $0xc4] sm:$0xf] %v3020
    %3364 = vst [vmem:[#allocation2 + $0xc8] sm:$0xf] %v3021
    %3365 = vst [vmem:[#allocation2 + $0xcc] sm:$0xf] %v3022
    %3366 = vst [vmem:[#allocation2 + $0xd0] sm:$0xf] %v3023
    %3367 = vst [vmem:[#allocation2 + $0xd4] sm:$0xf] %v3024
    %3368 = vst [vmem:[#allocation2 + $0xd8] sm:$0xf] %v3025
    %3369 = vst [vmem:[#allocation2 + $0xdc] sm:$0xf] %v3026
    %3370 = vst [vmem:[#allocation2 + $0xe0] sm:$0xf] %v3027
    %3371 = vst [vmem:[#allocation2 + $0xe4] sm:$0xf] %v3028
    %3372 = vst [vmem:[#allocation2 + $0xe8] sm:$0xf] %v3029
    %3373 = vst [vmem:[#allocation2 + $0xec] sm:$0xf] %v3030
    %3374 = vst [vmem:[#allocation2 + $0xf0] sm:$0xf] %v3031
    %3375 = vst [vmem:[#allocation2 + $0xf4] sm:$0xf] %v3032
    %3376 = vst [vmem:[#allocation2 + $0xf8] sm:$0xf] %v3033
    %3377 = vst [vmem:[#allocation2 + $0xfc] sm:$0xf] %v3034
    %3378 = vst [vmem:[#allocation2 + $0x100] sm:$0xf] %v3035
    %3379 = vst [vmem:[#allocation2 + $0x104] sm:$0xf] %v3036
    %3380 = vst [vmem:[#allocation2 + $0x108] sm:$0xf] %v3037
    %3381 = vst [vmem:[#allocation2 + $0x10c] sm:$0xf] %v3038
    %3382 = vst [vmem:[#allocation2 + $0x110] sm:$0xf] %v3039
    %3383 = vst [vmem:[#allocation2 + $0x114] sm:$0xf] %v3040
    %3384 = vst [vmem:[#allocation2 + $0x118] sm:$0xf] %v3041
    %3385 = vst [vmem:[#allocation2 + $0x11c] sm:$0xf] %v3042
    %3386 = vst [vmem:[#allocation2 + $0x120] sm:$0xf] %v3043
    %3387 = vst [vmem:[#allocation2 + $0x124] sm:$0xf] %v3044
    %3388 = vst [vmem:[#allocation2 + $0x128] sm:$0xf] %v3045
    %3389 = vst [vmem:[#allocation2 + $0x12c] sm:$0xf] %v3046
    %3390 = vst [vmem:[#allocation2 + $0x130] sm:$0xf] %v3047
    %3391 = vst [vmem:[#allocation2 + $0x134] sm:$0xf] %v3048
    %3392 = vst [vmem:[#allocation2 + $0x138] sm:$0xf] %v3049
    %3393 = vst [vmem:[#allocation2 + $0x13c] sm:$0xf] %v3050
    %3394 = vst [vmem:[#allocation2 + $0x140] sm:$0xf] %v3051
    %3395 = vst [vmem:[#allocation2 + $0x144] sm:$0xf] %v3052
    %3396 = vst [vmem:[#allocation2 + $0x148] sm:$0xf] %v3053
    %3397 = vst [vmem:[#allocation2 + $0x14c] sm:$0xf] %v3054
    %3398 = vst [vmem:[#allocation2 + $0x150] sm:$0xf] %v3055
    %3399 = vst [vmem:[#allocation2 + $0x154] sm:$0xf] %v3056
    %3400 = vst [vmem:[#allocation2 + $0x158] sm:$0xf] %v3057
    %3401 = vst [vmem:[#allocation2 + $0x15c] sm:$0xf] %v3058
    %3402 = vst [vmem:[#allocation2 + $0x160] sm:$0xf] %v3059
    %3403 = vst [vmem:[#allocation2 + $0x164] sm:$0xf] %v3060
    %3404 = vst [vmem:[#allocation2 + $0x168] sm:$0xf] %v3061
    %3405 = vst [vmem:[#allocation2 + $0x16c] sm:$0xf] %v3062
    %3406 = vst [vmem:[#allocation2 + $0x170] sm:$0xf] %v3063
    %3407 = vst [vmem:[#allocation2 + $0x174] sm:$0xf] %v3064
    %3408 = vst [vmem:[#allocation2 + $0x178] sm:$0xf] %v3065
    %3409 = vst [vmem:[#allocation2 + $0x17c] sm:$0xf] %v3066
    %3410 = vst [vmem:[#allocation2 + $0x180] sm:$0xf] %v3067
    %3411 = vst [vmem:[#allocation2 + $0x184] sm:$0xf] %v3068
    %3412 = vst [vmem:[#allocation2 + $0x188] sm:$0xf] %v3069
    %3413 = vst [vmem:[#allocation2 + $0x18c] sm:$0xf] %v3070
    %3414 = vst [vmem:[#allocation2 + $0x190] sm:$0xf] %v3071
    %3415 = vst [vmem:[#allocation2 + $0x194] sm:$0xf] %v3072
    %3416 = vst [vmem:[#allocation2 + $0x198] sm:$0xf] %v3073
    %3417 = vst [vmem:[#allocation2 + $0x19c] sm:$0xf] %v3074
    %3418 = vst [vmem:[#allocation2 + $0x1a0] sm:$0xf] %v3075
    %3419 = vst [vmem:[#allocation2 + $0x1a4] sm:$0xf] %v3076
    %3420 = vst [vmem:[#allocation2 + $0x1a8] sm:$0xf] %v3077
    %3421 = vst [vmem:[#allocation2 + $0x1ac] sm:$0xf] %v3078
    %3422 = vst [vmem:[#allocation2 + $0x1b0] sm:$0xf] %v3079
    %3423 = vst [vmem:[#allocation2 + $0x1b4] sm:$0xf] %v3080
    %3424 = vst [vmem:[#allocation2 + $0x1b8] sm:$0xf] %v3081
    %3425 = vst [vmem:[#allocation2 + $0x1bc] sm:$0xf] %v3082
    %3426 = vst [vmem:[#allocation2 + $0x1c0] sm:$0xf] %v3083
    %3427 = vst [vmem:[#allocation2 + $0x1c4] sm:$0xf] %v3084
    %3428 = vst [vmem:[#allocation2 + $0x1c8] sm:$0xf] %v3085
    %3429 = vst [vmem:[#allocation2 + $0x1cc] sm:$0xf] %v3086
    %3430 = vst [vmem:[#allocation2 + $0x1d0] sm:$0xf] %v3087
    %3431 = vst [vmem:[#allocation2 + $0x1d4] sm:$0xf] %v3088
    %3432 = vst [vmem:[#allocation2 + $0x1d8] sm:$0xf] %v3089
    %3433 = vst [vmem:[#allocation2 + $0x1dc] sm:$0xf] %v3090
    %3434 = vst [vmem:[#allocation2 + $0x1e0] sm:$0xf] %v3091
    %3435 = vst [vmem:[#allocation2 + $0x1e4] sm:$0xf] %v3092
    %3436 = vst [vmem:[#allocation2 + $0x1e8] sm:$0xf] %v3093
    %3437 = vst [vmem:[#allocation2 + $0x1ec] sm:$0xf] %v3094
    %3438 = vst [vmem:[#allocation2 + $0x1f0] sm:$0xf] %v3095
    %3439 = vst [vmem:[#allocation2 + $0x1f4] sm:$0xf] %v3096
    %3440 = vst [vmem:[#allocation2 + $0x1f8] sm:$0xf] %v3097
    %3441 = vst [vmem:[#allocation2 + $0x1fc] sm:$0xf] %v3098
    %3442 = vst [vmem:[#allocation2 + $0x200] sm:$0xf] %v3099
    %3443 = vst [vmem:[#allocation2 + $0x204] sm:$0xf] %v3100
    %3444 = vst [vmem:[#allocation2 + $0x208] sm:$0xf] %v3101
    %3445 = vst [vmem:[#allocation2 + $0x20c] sm:$0xf] %v3102
    %3446 = vst [vmem:[#allocation2 + $0x210] sm:$0xf] %v3103
    %3447 = vst [vmem:[#allocation2 + $0x214] sm:$0xf] %v3104
    %3448 = vst [vmem:[#allocation2 + $0x218] sm:$0xf] %v3105
    %3449 = vst [vmem:[#allocation2 + $0x21c] sm:$0xf] %v3106
    %3450 = vst [vmem:[#allocation2 + $0x220] sm:$0xf] %v3107
    %3451 = vst [vmem:[#allocation2 + $0x224] sm:$0xf] %v3108
    %3452 = vst [vmem:[#allocation2 + $0x228] sm:$0xf] %v3109
    %3453 = vst [vmem:[#allocation2 + $0x22c] sm:$0xf] %v3110
    %3454 = vst [vmem:[#allocation2 + $0x230] sm:$0xf] %v3111
    %3455 = vst [vmem:[#allocation2 + $0x234] sm:$0xf] %v3112
    %3456 = vst [vmem:[#allocation2 + $0x238] sm:$0xf] %v3113
    %3457 = vst [vmem:[#allocation2 + $0x23c] sm:$0xf] %v3114
    %3458 = vst [vmem:[#allocation2 + $0x240] sm:$0xf] %v3115
    %3459 = vst [vmem:[#allocation2 + $0x244] sm:$0xf] %v3116
    %3460 = vst [vmem:[#allocation2 + $0x248] sm:$0xf] %v3117
    %3461 = vst [vmem:[#allocation2 + $0x24c] sm:$0xf] %v3118
    %3462 = vst [vmem:[#allocation2 + $0x250] sm:$0xf] %v3119
    %3463 = vst [vmem:[#allocation2 + $0x254] sm:$0xf] %v3120
    %3464 = vst [vmem:[#allocation2 + $0x258] sm:$0xf] %v3121
    %3465 = vst [vmem:[#allocation2 + $0x25c] sm:$0xf] %v3122
    %3466 = vst [vmem:[#allocation2 + $0x260] sm:$0xf] %v3123
    %3467 = vst [vmem:[#allocation2 + $0x264] sm:$0xf] %v3124
    %3468 = vst [vmem:[#allocation2 + $0x268] sm:$0xf] %v3125
    %3469 = vst [vmem:[#allocation2 + $0x26c] sm:$0xf] %v3126
    %3470 = vst [vmem:[#allocation2 + $0x270] sm:$0xf] %v3127
    %3471 = vst [vmem:[#allocation2 + $0x274] sm:$0xf] %v3128
    %3472 = vst [vmem:[#allocation2 + $0x278] sm:$0xf] %v3129
    %3473 = vst [vmem:[#allocation2 + $0x27c] sm:$0xf] %v3130
    %3474 = vst [vmem:[#allocation2 + $0x280] sm:$0xf] %v3131
    %3475 = vst [vmem:[#allocation2 + $0x284] sm:$0xf] %v3132
    %3476 = vst [vmem:[#allocation2 + $0x288] sm:$0xf] %v3133
    %3477 = vst [vmem:[#allocation2 + $0x28c] sm:$0xf] %v3134
    %3478 = vst [vmem:[#allocation2 + $0x290] sm:$0xf] %v3135
    %3479 = vst [vmem:[#allocation2 + $0x294] sm:$0xf] %v3136
    %3480 = vst [vmem:[#allocation2 + $0x298] sm:$0xf] %v3137
    %3481 = vst [vmem:[#allocation2 + $0x29c] sm:$0xf] %v3138
    %3482 = vst [vmem:[#allocation2 + $0x2a0] sm:$0xf] %v3139
    %3483 = vst [vmem:[#allocation2 + $0x2a4] sm:$0xf] %v3140
    %3484 = vst [vmem:[#allocation2 + $0x2a8] sm:$0xf] %v3141
    %3485 = vst [vmem:[#allocation2 + $0x2ac] sm:$0xf] %v3142
    %3486 = vst [vmem:[#allocation2 + $0x2b0] sm:$0xf] %v3143
    %3487 = vst [vmem:[#allocation2 + $0x2b4] sm:$0xf] %v3144
    %3488 = vst [vmem:[#allocation2 + $0x2b8] sm:$0xf] %v3145
    %3489 = vst [vmem:[#allocation2 + $0x2bc] sm:$0xf] %v3146
    %3490 = vst [vmem:[#allocation2 + $0x2c0] sm:$0xf] %v3147
    %3491 = vst [vmem:[#allocation2 + $0x2c4] sm:$0xf] %v3148
    %3492 = vst [vmem:[#allocation2 + $0x2c8] sm:$0xf] %v3149
    %3493 = vst [vmem:[#allocation2 + $0x2cc] sm:$0xf] %v3150
    %3494 = vst [vmem:[#allocation2 + $0x2d0] sm:$0xf] %v3151
    %3495 = vst [vmem:[#allocation2 + $0x2d4] sm:$0xf] %v3152
    %3496 = vst [vmem:[#allocation2 + $0x2d8] sm:$0xf] %v3153
    %3497 = vst [vmem:[#allocation2 + $0x2dc] sm:$0xf] %v3154
    %3498 = vst [vmem:[#allocation2 + $0x2e0] sm:$0xf] %v3155
    %3499 = vst [vmem:[#allocation2 + $0x2e4] sm:$0xf] %v3156
    %3500 = vst [vmem:[#allocation2 + $0x2e8] sm:$0xf] %v3157
    %3501 = vst [vmem:[#allocation2 + $0x2ec] sm:$0xf] %v3158
    %3502 = vst [vmem:[#allocation2 + $0x2f0] sm:$0xf] %v3159
    %3503 = vst [vmem:[#allocation2 + $0x2f4] sm:$0xf] %v3160
    %3504 = vst [vmem:[#allocation2 + $0x2f8] sm:$0xf] %v3161
    %3505 = vst [vmem:[#allocation2 + $0x2fc] sm:$0xf] %v3162
    %3506 = vst [vmem:[#allocation2 + $0x300] sm:$0xf] %v3163
    %3507 = vst [vmem:[#allocation2 + $0x304] sm:$0xf] %v3164
    %3508 = vst [vmem:[#allocation2 + $0x308] sm:$0xf] %v3165
    %3509 = vst [vmem:[#allocation2 + $0x30c] sm:$0xf] %v3166
    %3510 = vst [vmem:[#allocation2 + $0x310] sm:$0xf] %v3167
    %3511 = vst [vmem:[#allocation2 + $0x314] sm:$0xf] %v3168
    %3512 = vst [vmem:[#allocation2 + $0x318] sm:$0xf] %v3169
    %3513 = vst [vmem:[#allocation2 + $0x31c] sm:$0xf] %v3170
    %3514 = vst [vmem:[#allocation2 + $0x320] sm:$0xf] %v3171
    %3515 = vst [vmem:[#allocation2 + $0x324] sm:$0xf] %v3172
    %3516 = vst [vmem:[#allocation2 + $0x328] sm:$0xf] %v3173
    %3517 = vst [vmem:[#allocation2 + $0x32c] sm:$0xf] %v3174
    %3518 = vst [vmem:[#allocation2 + $0x330] sm:$0xf] %v3175
    %3519 = vst [vmem:[#allocation2 + $0x334] sm:$0xf] %v3176
    %3520 = vst [vmem:[#allocation2 + $0x338] sm:$0xf] %v3177
    %3521 = vst [vmem:[#allocation2 + $0x33c] sm:$0xf] %v3178
    %3522 = vst [vmem:[#allocation2 + $0x340] sm:$0xf] %v3179
    %3523 = vst [vmem:[#allocation2 + $0x344] sm:$0xf] %v3180
    %3524 = vst [vmem:[#allocation2 + $0x348] sm:$0xf] %v3181
    %3525 = vst [vmem:[#allocation2 + $0x34c] sm:$0xf] %v3182
    %3526 = vst [vmem:[#allocation2 + $0x350] sm:$0xf] %v3183
    %3527 = vst [vmem:[#allocation2 + $0x354] sm:$0xf] %v3184
    %3528 = vst [vmem:[#allocation2 + $0x358] sm:$0xf] %v3185
    %3529 = vst [vmem:[#allocation2 + $0x35c] sm:$0xf] %v3186
    %3530 = vst [vmem:[#allocation2 + $0x360] sm:$0xf] %v3187
    %3531 = vst [vmem:[#allocation2 + $0x364] sm:$0xf] %v3188
    %3532 = vst [vmem:[#allocation2 + $0x368] sm:$0xf] %v3189
    %3533 = vst [vmem:[#allocation2 + $0x36c] sm:$0xf] %v3190
    %3534 = vst [vmem:[#allocation2 + $0x370] sm:$0xf] %v3191
    %3535 = vst [vmem:[#allocation2 + $0x374] sm:$0xf] %v3192
    %3536 = vst [vmem:[#allocation2 + $0x378] sm:$0xf] %v3193
    %3537 = vst [vmem:[#allocation2 + $0x37c] sm:$0xf] %v3194
    %3538 = vst [vmem:[#allocation2 + $0x380] sm:$0xf] %v3195
    %3539 = vst [vmem:[#allocation2 + $0x384] sm:$0xf] %v3196
    %3540 = vst [vmem:[#allocation2 + $0x388] sm:$0xf] %v3197
    %3541 = vst [vmem:[#allocation2 + $0x38c] sm:$0xf] %v3198
    %3542 = vst [vmem:[#allocation2 + $0x390] sm:$0xf] %v3199
    %3543 = vst [vmem:[#allocation2 + $0x394] sm:$0xf] %v3200
    %3544 = vst [vmem:[#allocation2 + $0x398] sm:$0xf] %v3201
    %3545 = vst [vmem:[#allocation2 + $0x39c] sm:$0xf] %v3202
    %3546 = vst [vmem:[#allocation2 + $0x3a0] sm:$0xf] %v3203
    %3547 = vst [vmem:[#allocation2 + $0x3a4] sm:$0xf] %v3204
    %3548 = vst [vmem:[#allocation2 + $0x3a8] sm:$0xf] %v3205
    %3549 = vst [vmem:[#allocation2 + $0x3ac] sm:$0xf] %v3206
    %3550 = vst [vmem:[#allocation2 + $0x3b0] sm:$0xf] %v3207
    %3551 = vst [vmem:[#allocation2 + $0x3b4] sm:$0xf] %v3208
    %3552 = vst [vmem:[#allocation2 + $0x3b8] sm:$0xf] %v3209
    %3553 = vst [vmem:[#allocation2 + $0x3bc] sm:$0xf] %v3210
    %3554 = vst [vmem:[#allocation2 + $0x3c0] sm:$0xf] %v3211
    %3555 = vst [vmem:[#allocation2 + $0x3c4] sm:$0xf] %v3212
    %3556 = vst [vmem:[#allocation2 + $0x3c8] sm:$0xf] %v3213
    %3557 = vst [vmem:[#allocation2 + $0x3cc] sm:$0xf] %v3214
    %3558 = vst [vmem:[#allocation2 + $0x3d0] sm:$0xf] %v3215
    %3559 = vst [vmem:[#allocation2 + $0x3d4] sm:$0xf] %v3216
    %3560 = vst [vmem:[#allocation2 + $0x3d8] sm:$0xf] %v3217
    %3561 = vst [vmem:[#allocation2 + $0x3dc] sm:$0xf] %v3218
    %3562 = vst [vmem:[#allocation2 + $0x3e0] sm:$0xf] %v3219
    %3563 = vst [vmem:[#allocation2 + $0x3e4] sm:$0xf] %v3220
    %3564 = vst [vmem:[#allocation2 + $0x3e8] sm:$0xf] %v3221
    %3565 = vst [vmem:[#allocation2 + $0x3ec] sm:$0xf] %v3222
    %3566 = vst [vmem:[#allocation2 + $0x3f0] sm:$0xf] %v3223
    %3567 = vst [vmem:[#allocation2 + $0x3f4] sm:$0xf] %v3224
    %3568 = vst [vmem:[#allocation2 + $0x3f8] sm:$0xf] %v3225
    %3569 = vst [vmem:[#allocation2 + $0x3fc] sm:$0xf] %v3226
    %3570 = vst [vmem:[#allocation2 + $0x400] sm:$0xf] %v3227
    %3571 = vst [vmem:[#allocation2 + $0x404] sm:$0xf] %v3228
    %3572 = vst [vmem:[#allocation2 + $0x408] sm:$0xf] %v3229
    %3573 = vst [vmem:[#allocation2 + $0x40c] sm:$0xf] %v3230
    %3574 = vst [vmem:[#allocation2 + $0x410] sm:$0xf] %v3231
    %3575 = vst [vmem:[#allocation2 + $0x414] sm:$0xf] %v3232
    %3576 = vst [vmem:[#allocation2 + $0x418] sm:$0xf] %v3233
    %3577 = vst [vmem:[#allocation2 + $0x41c] sm:$0xf] %v3234
    %3578 = vst [vmem:[#allocation2 + $0x420] sm:$0xf] %v3235
    %3579 = vst [vmem:[#allocation2 + $0x424] sm:$0xf] %v3236
    %3580 = vst [vmem:[#allocation2 + $0x428] sm:$0xf] %v3237
    %3581 = vst [vmem:[#allocation2 + $0x42c] sm:$0xf] %v3238
    %3582 = vst [vmem:[#allocation2 + $0x430] sm:$0xf] %v3239
    %3583 = vst [vmem:[#allocation2 + $0x434] sm:$0xf] %v3240
    %3584 = vst [vmem:[#allocation2 + $0x438] sm:$0xf] %v3241
    %3585 = vst [vmem:[#allocation2 + $0x43c] sm:$0xf] %v3242
    %3586 = vst [vmem:[#allocation2 + $0x440] sm:$0xf] %v3243
    %3587 = vst [vmem:[#allocation2 + $0x444] sm:$0xf] %v3244
    %3588 = vst [vmem:[#allocation2 + $0x448] sm:$0xf] %v3245
    %3589 = vst [vmem:[#allocation2 + $0x44c] sm:$0xf] %v3246
    %3590 = vst [vmem:[#allocation2 + $0x450] sm:$0xf] %v3247
    %3591 = vst [vmem:[#allocation2 + $0x454] sm:$0xf] %v3248
    %3592 = vst [vmem:[#allocation2 + $0x458] sm:$0xf] %v3249
    %3593 = vst [vmem:[#allocation2 + $0x45c] sm:$0xf] %v3250
    %3594 = vst [vmem:[#allocation2 + $0x460] sm:$0xf] %v3251
    %3595 = vst [vmem:[#allocation2 + $0x464] sm:$0xf] %v3252
    %3596 = vst [vmem:[#allocation2 + $0x468] sm:$0xf] %v3253
    %3597 = vst [vmem:[#allocation2 + $0x46c] sm:$0xf] %v3254
    %3598 = vst [vmem:[#allocation2 + $0x470] sm:$0xf] %v3255
    %3599 = vst [vmem:[#allocation2 + $0x474] sm:$0xf] %v3256
    %3600 = vst [vmem:[#allocation2 + $0x478] sm:$0xf] %v3257
    %3601 = vst [vmem:[#allocation2 + $0x47c] sm:$0xf] %v3258
    %3602 = vst [vmem:[#allocation2 + $0x480] sm:$0xf] %v3259
    %3603 = vst [vmem:[#allocation2 + $0x484] sm:$0xf] %v3260
    %3604 = vst [vmem:[#allocation2 + $0x488] sm:$0xf] %v3261
    %3605 = vst [vmem:[#allocation2 + $0x48c] sm:$0xf] %v3262
    %3606 = vst [vmem:[#allocation2 + $0x490] sm:$0xf] %v3263
    %3607 = vst [vmem:[#allocation2 + $0x494] sm:$0xf] %v3264
    %3608 = vst [vmem:[#allocation2 + $0x498] sm:$0xf] %v3265
    %3609 = vst [vmem:[#allocation2 + $0x49c] sm:$0xf] %v3266
    %3610 = vst [vmem:[#allocation2 + $0x4a0] sm:$0xf] %v3267
    %3611 = vst [vmem:[#allocation2 + $0x4a4] sm:$0xf] %v3268
    %3612 = vst [vmem:[#allocation2 + $0x4a8] sm:$0xf] %v3269
    %3613 = vst [vmem:[#allocation2 + $0x4ac] sm:$0xf] %v3270
    %3614 = vst [vmem:[#allocation2 + $0x4b0] sm:$0xf] %v3271
    %3615 = vst [vmem:[#allocation2 + $0x4b4] sm:$0xf] %v3272
    %3616 = vst [vmem:[#allocation2 + $0x4b8] sm:$0xf] %v3273
    %3617 = vst [vmem:[#allocation2 + $0x4bc] sm:$0xf] %v3274
    %3618 = vst [vmem:[#allocation2 + $0x4c0] sm:$0xf] %v3275
    %3619 = vst [vmem:[#allocation2 + $0x4c4] sm:$0xf] %v3276
    %3620 = vst [vmem:[#allocation2 + $0x4c8] sm:$0xf] %v3277
    %3621 = vst [vmem:[#allocation2 + $0x4cc] sm:$0xf] %v3278
    %3622 = vst [vmem:[#allocation2 + $0x4d0] sm:$0xf] %v3279
    %3623 = vst [vmem:[#allocation2 + $0x4d4] sm:$0xf] %v3280
    %3624 = vst [vmem:[#allocation2 + $0x4d8] sm:$0xf] %v3281
    %3625 = vst [vmem:[#allocation2 + $0x4dc] sm:$0xf] %v3282
    %3626 = vst [vmem:[#allocation2 + $0x4e0] sm:$0xf] %v3283
    %3627 = vst [vmem:[#allocation2 + $0x4e4] sm:$0xf] %v3284
    %3628 = vst [vmem:[#allocation2 + $0x4e8] sm:$0xf] %v3285
    %3629 = vst [vmem:[#allocation2 + $0x4ec] sm:$0xf] %v3286
    %3630 = vst [vmem:[#allocation2 + $0x4f0] sm:$0xf] %v3287
    %3631 = vst [vmem:[#allocation2 + $0x4f4] sm:$0xf] %v3288
    %3632 = vst [vmem:[#allocation2 + $0x4f8] sm:$0xf] %v3289
    %3633 = vst [vmem:[#allocation2 + $0x4fc] sm:$0xf] %v3290
    %3634 = vst [vmem:[#allocation2 + $0x500] sm:$0xf] %v3291
    %3635 = vst [vmem:[#allocation2 + $0x504] sm:$0xf] %v3292
    %3636 = vst [vmem:[#allocation2 + $0x508] sm:$0xf] %v3293
    %3637 = vst [vmem:[#allocation2 + $0x50c] sm:$0xf] %v3294
    %3638 = vst [vmem:[#allocation2 + $0x510] sm:$0xf] %v3295
    %3639 = vst [vmem:[#allocation2 + $0x514] sm:$0xf] %v3296
    %3640 = vst [vmem:[#allocation2 + $0x518] sm:$0xf] %v3297
    %3641 = vst [vmem:[#allocation2 + $0x51c] sm:$0xf] %v3298
    %3642 = vst [vmem:[#allocation2 + $0x520] sm:$0xf] %v3299
    %3643 = vst [vmem:[#allocation2 + $0x524] sm:$0xf] %v3300
    %3644 = vst [vmem:[#allocation2 + $0x528] sm:$0xf] %v3301
    %3645 = vst [vmem:[#allocation2 + $0x52c] sm:$0xf] %v3302
    %3646 = vst [vmem:[#allocation2 + $0x530] sm:$0xf] %v3303
    %3647 = vst [vmem:[#allocation2 + $0x534] sm:$0xf] %v3304
    %3648 = vst [vmem:[#allocation2 + $0x538] sm:$0xf] %v3305
    %3649 = vst [vmem:[#allocation2 + $0x53c] sm:$0xf] %v3306
    %3650 = vst [vmem:[#allocation2 + $0x540] sm:$0xf] %v3307
    %3651 = vst [vmem:[#allocation2 + $0x544] sm:$0xf] %v3308
    %3652 = vst [vmem:[#allocation2 + $0x548] sm:$0xf] %v3309
    %3653 = vst [vmem:[#allocation2 + $0x54c] sm:$0xf] %v3310
    %3654 = vst [vmem:[#allocation2 + $0x550] sm:$0xf] %v3311
    %3655 = vst [vmem:[#allocation2 + $0x554] sm:$0xf] %v3312
    %3656 = vst [vmem:[#allocation2 + $0x558] sm:$0x1] %v3313
    // Predicated region
    $region14: #{_mm_bias_relu.1} parent=1 // pred_check
      _
    $region15: #{_mm_bias_relu.1} parent=1 // pred_check_branch
      %3658 = sbr.rel (0) target = $region17
    $region16: #{_mm_bias_relu.1} parent=1 // pred_region
      %3660 = vsyncadd [#allocation3], 0
      %s3661 = sshll.u32 [#allocation2], 4
      %s3662 = int_to_ptr.vmem [resolvable:$true] %s3661
      %s3663 = sshll.u32 %s3, 4
      %s3664 = int_to_ptr.hbm [resolvable:$true] %s3663
      %3669 = dma.vmem_to_hbm [thread:$0]  %s3662, 21952, %s3664, [#allocation3], 64, 64, 4
    $region17: #{_mm_bias_relu.1} parent=1 // pred_fallthru
      _
    // Predicated region
    $region18: #{_mm_bias_relu.1} parent=1 // pred_check
      _
    $region19: #{_mm_bias_relu.1} parent=1 // pred_check_branch
      %3671 = sbr.rel (0) target = $region21
    $region20: #{_mm_bias_relu.1} parent=1 // pred_region
      %3673 = dma.done [#allocation3], 21952
    $region21: #{_mm_bias_relu.1} parent=1 // pred_fallthru
      _
    %3674 = vsyncpa [#allocation3], 1

</llo_original>
